<compile_context>
chip_gen: v6e
topology: v6e:2x2x1
jax: 0.10.0
libtpu: 0.0.40
codegen_flags: <defaults>
</compile_context>

<pallas_src>
import functools

import jax
import jax.numpy as jnp
from jax.experimental import pallas as pl
from jax.experimental.pallas import tpu as pltpu

HIDDEN = 64          # MLP hidden width (matches the PyTorch module)
OUT_PAD = 128        # node-update output lane padding (lane-dense stores)
IN_EF = 512          # edge feature width
LAYER_DIMS = ((10, 512, 32), (32, 512, 16), (16, 512, 4))

# Tile / VMEM defaults.  edge_tile=4096 keeps the double-buffered ef tile of the
# projection kernel well inside v7x's 64 MiB VMEM; v5e/v6e (128 MiB) can raise it.
EDGE_TILE = 4096
NODE_TILE = 2048
VMEM_LIMIT = 48 * 1024 * 1024


def _round_up(x, m):
    return ((x + m - 1) // m) * m


def _tile(n, t):
    """Row tile <= t, kept a multiple of 8 (sublane rule) for small n."""
    return min(t, _round_up(n, 8))


# ----------------------------------------------------------------------------
# Pallas kernels
# ----------------------------------------------------------------------------
def _ef_proj_kernel(ef_ref, w0_ref, w1_ref, w2_ref, p0_ref, p1_ref, p2_ref):
    # One pass over ef: compute ef @ w1_ef for all three convs while the tile is in VMEM.
    ef = ef_ref[...]
    p0_ref[...] = jnp.dot(ef, w0_ref[...],
                          preferred_element_type=jnp.float32).astype(jnp.bfloat16)
    p1_ref[...] = jnp.dot(ef, w1_ref[...],
                          preferred_element_type=jnp.float32).astype(jnp.bfloat16)
    p2_ref[...] = jnp.dot(ef, w2_ref[...],
                          preferred_element_type=jnp.float32).astype(jnp.bfloat16)


def _edge_msg_kernel(sd_ref, proj_ref, w1_ref, b1_ref, w2_ref, b2_ref, msg_ref):
    # msg_net: Linear -> LeakyReLU(0.2) -> Linear, per edge.  The first Linear is
    # one small-K matmul over [nf_src || nf_dst] plus the precomputed ef projection.
    h = (jnp.dot(sd_ref[...], w1_ref[...], preferred_element_type=jnp.float32)
         + proj_ref[...].astype(jnp.float32)
         + b1_ref[...])
    h = jnp.where(h > 0, h, 0.2 * h)                          # LeakyReLU(0.2), f32
    msg = jnp.dot(h.astype(jnp.bfloat16), w2_ref[...],
                  preferred_element_type=jnp.float32) + b2_ref[...]
    msg_ref[...] = msg.astype(msg_ref.dtype)                  # bf16 store (f32 segsum later)


def _node_update_kernel(nf_ref, agg_ref, u1n_ref, u1a_ref, c1_ref, u2_ref, c2_ref,
                        out_ref, *, apply_relu):
    # update_net: Linear -> LeakyReLU(0.2) -> Linear, per node; u1 split so no concat.
    h = (jnp.dot(nf_ref[...], u1n_ref[...], preferred_element_type=jnp.float32)
         + jnp.dot(agg_ref[...], u1a_ref[...], preferred_element_type=jnp.float32)
         + c1_ref[...])
    h = jnp.where(h > 0, h, 0.2 * h)
    out = jnp.dot(h.astype(jnp.bfloat16), u2_ref[...],
                  preferred_element_type=jnp.float32) + c2_ref[...]
    if apply_relu:                                            # F.relu between convs
        out = jnp.maximum(out, 0.0)
    out_ref[...] = out.astype(out_ref.dtype)


# ----------------------------------------------------------------------------
# ef projection (shared by all three convs)
# ----------------------------------------------------------------------------
def ef_projection(ef_b, proj_ws, *, edge_tile=EDGE_TILE, vmem_limit=VMEM_LIMIT):
    n_edges = ef_b.shape[0]
    te = _tile(n_edges, edge_tile)
    cost = pl.CostEstimate(
        flops=2 * n_edges * IN_EF * HIDDEN * 3,
        transcendentals=0,
        bytes_accessed=(n_edges * IN_EF * 2
                        + 3 * (n_edges * HIDDEN * 2 + IN_EF * HIDDEN * 2)))
    out_sd = jax.ShapeDtypeStruct((n_edges, HIDDEN), jnp.bfloat16)
    w_spec = pl.BlockSpec((IN_EF, HIDDEN), lambda i: (0, 0))
    p_spec = pl.BlockSpec((te, HIDDEN), lambda i: (i, 0))
    # dimension_semantics=("parallel",) shards the grid across v7x's two TensorCores.
    # TODO(synk): verify on an xprof trace both TCs are busy; else try pltpu.CORE_PARALLEL.
    return pl.pallas_call(
        _ef_proj_kernel,
        out_shape=(out_sd, out_sd, out_sd),
        grid=(pl.cdiv(n_edges, te),),
        in_specs=[pl.BlockSpec((te, IN_EF), lambda i: (i, 0)),
                  w_spec, w_spec, w_spec],
        out_specs=(p_spec, p_spec, p_spec),
        compiler_params=pltpu.CompilerParams(
            dimension_semantics=("parallel",), vmem_limit_bytes=vmem_limit),
        cost_estimate=cost,
    )(ef_b, *proj_ws)


# ----------------------------------------------------------------------------
# One NetConv layer
# ----------------------------------------------------------------------------
def netconv(nf_b, proj, src, dst, prep, *, in_nf, out_nf, apply_relu,
            edge_tile=EDGE_TILE, node_tile=NODE_TILE, vmem_limit=VMEM_LIMIT):
    """One NetConv layer: gathers / scatter-sum are XLA glue; all matmuls and
    activations run in tiled, software-pipelined Pallas kernels."""
    (w1sd, b1, w2, b2, u1n, u1a, c1, u2, c2) = prep
    n_nodes = nf_b.shape[0]
    n_edges = proj.shape[0]

    # ---- glue: single merged endpoint gather [nf[src] || nf[dst]] (bf16) ----
    sd = jnp.concatenate([nf_b[src], nf_b[dst]], axis=1)       # (E, 2*in_nf)

    full = lambda shape: pl.BlockSpec(shape, lambda i: (0, 0))

    # ---- edge kernel: tiled over edges, ragged last block (no padding copies) ----
    te = _tile(n_edges, edge_tile)
    edge_cost = pl.CostEstimate(
        flops=2 * n_edges * (2 * in_nf * HIDDEN + HIDDEN * out_nf),
        transcendentals=0,
        bytes_accessed=n_edges * (2 * in_nf + HIDDEN + out_nf) * 2)

    msg = pl.pallas_call(
        _edge_msg_kernel,
        out_shape=jax.ShapeDtypeStruct((n_edges, out_nf), jnp.bfloat16),
        grid=(pl.cdiv(n_edges, te),),
        in_specs=[
            pl.BlockSpec((te, 2 * in_nf), lambda i: (i, 0)),   # [nf_src || nf_dst] tile
            pl.BlockSpec((te, HIDDEN), lambda i: (i, 0)),      # precomputed ef @ w1_ef
            full((2 * in_nf, HIDDEN)),                         # w1 rows for src/dst
            full((1, HIDDEN)),                                 # b1
            full((HIDDEN, out_nf)),                            # w2
            full((1, out_nf)),                                 # b2
        ],
        out_specs=pl.BlockSpec((te, out_nf), lambda i: (i, 0)),
        compiler_params=pltpu.CompilerParams(
            dimension_semantics=("parallel",), vmem_limit_bytes=vmem_limit),
        cost_estimate=edge_cost,
    )(sd, proj, w1sd, b1, w2, b2)

    # ---- aggregation: per-dst sum of messages, f32 accumulation over bf16 msg ----
    # TODO(synk): fuse in-kernel (sorted edges + PrefetchScalarGridSpec offsets) to drop
    # the (E, out_nf) HBM round trip; zero-in-degree nodes get a zero aggregate.
    agg_b = jax.ops.segment_sum(msg.astype(jnp.float32), dst,
                                num_segments=n_nodes).astype(jnp.bfloat16)

    # ---- node kernel: tiled over nodes ----
    tn = _tile(n_nodes, node_tile)
    out_dtype = jnp.bfloat16 if apply_relu else jnp.float32   # hidden convs stay bf16
    node_cost = pl.CostEstimate(
        flops=2 * n_nodes * ((in_nf + out_nf) * HIDDEN + HIDDEN * OUT_PAD),
        transcendentals=0,
        bytes_accessed=n_nodes * ((in_nf + out_nf) * 2
                                  + OUT_PAD * jnp.dtype(out_dtype).itemsize))

    out = pl.pallas_call(
        functools.partial(_node_update_kernel, apply_relu=apply_relu),
        out_shape=jax.ShapeDtypeStruct((n_nodes, OUT_PAD), out_dtype),
        grid=(pl.cdiv(n_nodes, tn),),
        in_specs=[
            pl.BlockSpec((tn, in_nf), lambda i: (i, 0)),       # nf tile
            pl.BlockSpec((tn, out_nf), lambda i: (i, 0)),      # agg tile
            full((in_nf, HIDDEN)),                             # u1_nf
            full((out_nf, HIDDEN)),                            # u1_agg
            full((1, HIDDEN)),                                 # c1
            full((HIDDEN, OUT_PAD)),                           # u2 (output zero-padded)
            full((1, OUT_PAD)),                                # c2
        ],
        out_specs=pl.BlockSpec((tn, OUT_PAD), lambda i: (i, 0)),
        compiler_params=pltpu.CompilerParams(
            dimension_semantics=("parallel",), vmem_limit_bytes=vmem_limit),
        cost_estimate=node_cost,
    )(nf_b, agg_b, u1n, u1a, c1, u2, c2)

    return out[:, :out_nf]        # strip lane padding (exact: padded weights are zero)


# ----------------------------------------------------------------------------
# Parameter construction (deterministic, matches torch.nn.Linear shapes)
# ----------------------------------------------------------------------------
def _linear_params(key, fan_in, fan_out):
    k_w, k_b = jax.random.split(key)
    # stored pre-transposed: (in, out), so kernels compute x @ W + b
    w = jax.random.normal(k_w, (fan_in, fan_out), jnp.float32) * 0.05
    b = jax.random.normal(k_b, (fan_out,), jnp.float32) * 0.05
    return w, b


def make_netconv_params(key, in_nf, in_ef, out_nf):
    k1, k2, k3, k4 = jax.random.split(key, 4)
    w1, b1 = _linear_params(k1, 2 * in_nf + in_ef, HIDDEN)    # msg_net layer 1
    w2, b2 = _linear_params(k2, HIDDEN, out_nf)               # msg_net layer 2
    u1, c1 = _linear_params(k3, in_nf + out_nf, HIDDEN)       # update_net layer 1
    u2, c2 = _linear_params(k4, HIDDEN, out_nf)               # update_net layer 2
    return (w1, b1, w2, b2, u1, c1, u2, c2)


def _pad_cols(a, n):
    return jnp.pad(a, ((0, 0), (0, n - a.shape[1])))


def prepare_timing_gcn_params(all_params):
    """Split / cast / pad weights ONCE for all three convs (hoisted out of the forward).
    Math is exactly equivalent to the unsplit f32 weights."""
    bf = jnp.bfloat16
    per_layer, proj_ws = [], []
    for (in_nf, _, out_nf), params in zip(LAYER_DIMS, all_params):
        (w1, b1, w2, b2, u1, c1, u2, c2) = params
        # msg_net first Linear: rows split over [nf_src || nf_dst | ef]
        w1sd = w1[:2 * in_nf].astype(bf)                      # (2*in_nf, 64)
        proj_ws.append(w1[2 * in_nf:].astype(bf))             # (512, 64) -> ef projection
        b1p = b1[None, :]                                     # f32 (1, 64)
        w2p = w2.astype(bf)                                   # (64, out_nf)
        b2p = b2[None, :]                                     # f32 (1, out_nf)
        # update_net: u1 split over [nf | agg]; u2/c2 zero-padded to 128 output lanes
        u1n = u1[:in_nf].astype(bf)
        u1a = u1[in_nf:].astype(bf)
        c1p = c1[None, :]
        u2p = _pad_cols(u2, OUT_PAD).astype(bf)               # (64, 128)
        c2p = _pad_cols(c2[None, :], OUT_PAD)                 # f32 (1, 128)
        per_layer.append((w1sd, b1p, w2p, b2p, u1n, u1a, c1p, u2p, c2p))
    return tuple(per_layer), tuple(proj_ws)


# ----------------------------------------------------------------------------
# TimingGCN forward
# ----------------------------------------------------------------------------
def timing_gcn_forward(nf, ef, e_cell_delays, src, dst, prepped):
    per_layer, proj_ws = prepped
    ef_b = ef.astype(jnp.bfloat16)                  # cast once; dominant HBM traffic
    projs = ef_projection(ef_b, proj_ws)            # ef streamed ONCE for all 3 convs
    x = nf.astype(jnp.bfloat16)
    for layer, (in_nf, _, out_nf) in enumerate(LAYER_DIMS):
        x = netconv(x, projs[layer], src, dst, per_layer[layer],
                    in_nf=in_nf, out_nf=out_nf,
                    apply_relu=(layer < 2))         # F.relu after conv1 / conv2 only
    net_delays = x                                  # conv3 emits f32
    cell_delays = e_cell_delays                     # g.edata['e_cell_delays'] passthrough
    return net_delays, cell_delays, x


# ----------------------------------------------------------------------------
# Pure-JAX f32 reference (same semantics, used for a tolerance check)
# ----------------------------------------------------------------------------
def timing_gcn_reference(nf, ef, src, dst, all_params):
    x = nf
    n_nodes = nf.shape[0]
    for layer, params in enumerate(all_params):
        (w1, b1, w2, b2, u1, c1, u2, c2) = params
        e_in = jnp.concatenate([x[src], x[dst], ef], axis=1)
        h = e_in @ w1 + b1
        h = jnp.where(h > 0, h, 0.2 * h)
        msg = h @ w2 + b2
        agg = jax.ops.segment_sum(msg, dst, num_segments=n_nodes)
        n_in = jnp.concatenate([x, agg], axis=1)
        h = n_in @ u1 + c1
        h = jnp.where(h > 0, h, 0.2 * h)
        x = h @ u2 + c2
        if layer < 2:
            x = jnp.maximum(x, 0.0)
    return x


if __name__ == "__main__":
    key = jax.random.PRNGKey(0)
    k_nf, k_ef, k_cd, k_src, k_dst, k_p1, k_p2, k_p3 = jax.random.split(key, 8)

    # Small synthetic graph consistent with the module dims:
    #   node feature dim 10, edge feature dim 512 (NetConv(10, 512, 32), ...)
    N_NODES, N_EDGES = 16, 32
    nf = jax.random.normal(k_nf, (N_NODES, 10), jnp.float32)
    ef = jax.random.normal(k_ef, (N_EDGES, 512), jnp.float32)
    e_cell_delays = jax.random.normal(k_cd, (N_EDGES, 4), jnp.float32)
    src = jax.random.randint(k_src, (N_EDGES,), 0, N_NODES)
    dst = jax.random.randint(k_dst, (N_EDGES,), 0, N_NODES)

    params = (
        make_netconv_params(k_p1, 10, 512, 32),   # conv1
        make_netconv_params(k_p2, 32, 512, 16),   # conv2
        make_netconv_params(k_p3, 16, 512, 4),    # conv3
    )
    prepped = prepare_timing_gcn_params(params)    # weight prep runs once, not per call

    fwd = jax.jit(timing_gcn_forward)
    net_delays, cell_delays, x = fwd(nf, ef, e_cell_delays, src, dst, prepped)
    jax.block_until_ready((net_delays, cell_delays, x))

    assert net_delays.shape == (N_NODES, 4)
    assert cell_delays.shape == (N_EDGES, 4)
    assert x.shape == (N_NODES, 4)

    ref = timing_gcn_reference(nf, ef, src, dst, params)
    assert jnp.allclose(net_delays, ref, rtol=1e-1, atol=2e-2), (
        "max abs err %f" % float(jnp.max(jnp.abs(net_delays - ref))))

    print("KERNEL_OK")
</pallas_src>

<mosaic_0001>
module attributes {stable_mosaic.version = 11 : i64} {
  func.func @_ef_proj_kernel(%arg0: i32, %arg1: memref<32x512xbf16, #tpu.memory_space<vmem>>, %arg2: memref<512x64xbf16, #tpu.memory_space<vmem>>, %arg3: memref<512x64xbf16, #tpu.memory_space<vmem>>, %arg4: memref<512x64xbf16, #tpu.memory_space<vmem>>, %arg5: memref<32x64xbf16, #tpu.memory_space<vmem>>, %arg6: memref<32x64xbf16, #tpu.memory_space<vmem>>, %arg7: memref<32x64xbf16, #tpu.memory_space<vmem>>) attributes {dimension_semantics = [#tpu.dimension_semantics<parallel>], iteration_bounds = array<i64: 1>, scalar_prefetch = 0 : i64, scratch_operands = 0 : i64, tpu.core_type = #tpu.core_type<tc>, window_params = [{transform_indices = @transform_0, window_bounds = array<i64: 32, 512>}, {pipeline_mode = #tpu.pipeline_mode<synchronous>, transform_indices = @transform_1, window_bounds = array<i64: 512, 64>}, {pipeline_mode = #tpu.pipeline_mode<synchronous>, transform_indices = @transform_2, window_bounds = array<i64: 512, 64>}, {pipeline_mode = #tpu.pipeline_mode<synchronous>, transform_indices = @transform_3, window_bounds = array<i64: 512, 64>}, {transform_indices = @transform_4, window_bounds = array<i64: 32, 64>}, {transform_indices = @transform_5, window_bounds = array<i64: 32, 64>}, {transform_indices = @transform_6, window_bounds = array<i64: 32, 64>}]} {
    %c0 = arith.constant 0 : index
    %c0_0 = arith.constant 0 : index
    %0 = vector.load %arg1[%c0, %c0_0] : memref<32x512xbf16, #tpu.memory_space<vmem>>, vector<32x512xbf16>
    %c0_1 = arith.constant 0 : index
    %c0_2 = arith.constant 0 : index
    %1 = vector.load %arg2[%c0_1, %c0_2] : memref<512x64xbf16, #tpu.memory_space<vmem>>, vector<512x64xbf16>
    %cst = arith.constant dense<0.000000e+00> : vector<32x64xf32>
    %2 = tpu.matmul %0, %1, %cst {dimension_numbers = #tpu.dot_dimension_numbers<[1], [0], [0], [1], [0, 0, 1, 1], [], []>} : vector<32x512xbf16>, vector<512x64xbf16>, vector<32x64xf32> -> vector<32x64xf32>
    %3 = arith.truncf %2 : vector<32x64xf32> to vector<32x64xbf16>
    %c0_3 = arith.constant 0 : index
    %c0_4 = arith.constant 0 : index
    %4 = vector.load %arg5[%c0_3, %c0_4] : memref<32x64xbf16, #tpu.memory_space<vmem>>, vector<32x64xbf16>
    tpu.vector_store %arg5[%c0_3, %c0_4], %3 {strides = array<i32>} : memref<32x64xbf16, #tpu.memory_space<vmem>>, vector<32x64xbf16>,
    %c0_5 = arith.constant 0 : index
    %c0_6 = arith.constant 0 : index
    %5 = vector.load %arg3[%c0_5, %c0_6] : memref<512x64xbf16, #tpu.memory_space<vmem>>, vector<512x64xbf16>
    %cst_7 = arith.constant dense<0.000000e+00> : vector<32x64xf32>
    %6 = tpu.matmul %0, %5, %cst_7 {dimension_numbers = #tpu.dot_dimension_numbers<[1], [0], [0], [1], [0, 0, 1, 1], [], []>} : vector<32x512xbf16>, vector<512x64xbf16>, vector<32x64xf32> -> vector<32x64xf32>
    %7 = arith.truncf %6 : vector<32x64xf32> to vector<32x64xbf16>
    %c0_8 = arith.constant 0 : index
    %c0_9 = arith.constant 0 : index
    %8 = vector.load %arg6[%c0_8, %c0_9] : memref<32x64xbf16, #tpu.memory_space<vmem>>, vector<32x64xbf16>
    tpu.vector_store %arg6[%c0_8, %c0_9], %7 {strides = array<i32>} : memref<32x64xbf16, #tpu.memory_space<vmem>>, vector<32x64xbf16>,
    %c0_10 = arith.constant 0 : index
    %c0_11 = arith.constant 0 : index
    %9 = vector.load %arg4[%c0_10, %c0_11] : memref<512x64xbf16, #tpu.memory_space<vmem>>, vector<512x64xbf16>
    %cst_12 = arith.constant dense<0.000000e+00> : vector<32x64xf32>
    %10 = tpu.matmul %0, %9, %cst_12 {dimension_numbers = #tpu.dot_dimension_numbers<[1], [0], [0], [1], [0, 0, 1, 1], [], []>} : vector<32x512xbf16>, vector<512x64xbf16>, vector<32x64xf32> -> vector<32x64xf32>
    %11 = arith.truncf %10 : vector<32x64xf32> to vector<32x64xbf16>
    %c0_13 = arith.constant 0 : index
    %c0_14 = arith.constant 0 : index
    %12 = vector.load %arg7[%c0_13, %c0_14] : memref<32x64xbf16, #tpu.memory_space<vmem>>, vector<32x64xbf16>
    tpu.vector_store %arg7[%c0_13, %c0_14], %11 {strides = array<i32>} : memref<32x64xbf16, #tpu.memory_space<vmem>>, vector<32x64xbf16>,
    return
  }
  func.func @transform_0(%arg0: i32) -> (i32, i32) {
    %c0_i32 = arith.constant 0 : i32
    %c0_i32_0 = arith.constant 0 : i32
    return %arg0, %c0_i32 : i32, i32
  }
  func.func @transform_1(%arg0: i32) -> (i32, i32) {
    %c0_i32 = arith.constant 0 : i32
    %c0_i32_0 = arith.constant 0 : i32
    %c0_i32_1 = arith.constant 0 : i32
    return %c0_i32, %c0_i32_0 : i32, i32
  }
  func.func @transform_2(%arg0: i32) -> (i32, i32) {
    %c0_i32 = arith.constant 0 : i32
    %c0_i32_0 = arith.constant 0 : i32
    %c0_i32_1 = arith.constant 0 : i32
    return %c0_i32, %c0_i32_0 : i32, i32
  }
  func.func @transform_3(%arg0: i32) -> (i32, i32) {
    %c0_i32 = arith.constant 0 : i32
    %c0_i32_0 = arith.constant 0 : i32
    %c0_i32_1 = arith.constant 0 : i32
    return %c0_i32, %c0_i32_0 : i32, i32
  }
  func.func @transform_4(%arg0: i32) -> (i32, i32) {
    %c0_i32 = arith.constant 0 : i32
    %c0_i32_0 = arith.constant 0 : i32
    return %arg0, %c0_i32 : i32, i32
  }
  func.func @transform_5(%arg0: i32) -> (i32, i32) {
    %c0_i32 = arith.constant 0 : i32
    %c0_i32_0 = arith.constant 0 : i32
    return %arg0, %c0_i32 : i32, i32
  }
  func.func @transform_6(%arg0: i32) -> (i32, i32) {
    %c0_i32 = arith.constant 0 : i32
    %c0_i32_0 = arith.constant 0 : i32
    return %arg0, %c0_i32 : i32, i32
  }
}

module attributes {stable_mosaic.version = 11 : i64} {
  func.func @_edge_msg_kernel(%arg0: i32, %arg1: memref<32x20xbf16, #tpu.memory_space<vmem>>, %arg2: memref<32x64xbf16, #tpu.memory_space<vmem>>, %arg3: memref<20x64xbf16, #tpu.memory_space<vmem>>, %arg4: memref<1x64xf32, #tpu.memory_space<vmem>>, %arg5: memref<64x32xbf16, #tpu.memory_space<vmem>>, %arg6: memref<1x32xf32, #tpu.memory_space<vmem>>, %arg7: memref<32x32xbf16, #tpu.memory_space<vmem>>) attributes {dimension_semantics = [#tpu.dimension_semantics<parallel>], iteration_bounds = array<i64: 1>, scalar_prefetch = 0 : i64, scratch_operands = 0 : i64, tpu.core_type = #tpu.core_type<tc>, window_params = [{transform_indices = @transform_0, window_bounds = array<i64: 32, 20>}, {transform_indices = @transform_1, window_bounds = array<i64: 32, 64>}, {pipeline_mode = #tpu.pipeline_mode<synchronous>, transform_indices = @transform_2, window_bounds = array<i64: 20, 64>}, {pipeline_mode = #tpu.pipeline_mode<synchronous>, transform_indices = @transform_3, window_bounds = array<i64: 1, 64>}, {pipeline_mode = #tpu.pipeline_mode<synchronous>, transform_indices = @transform_4, window_bounds = array<i64: 64, 32>}, {pipeline_mode = #tpu.pipeline_mode<synchronous>, transform_indices = @transform_5, window_bounds = array<i64: 1, 32>}, {transform_indices = @transform_6, window_bounds = array<i64: 32, 32>}]} {
    %c0 = arith.constant 0 : index
    %c0_0 = arith.constant 0 : index
    %0 = vector.load %arg1[%c0, %c0_0] : memref<32x20xbf16, #tpu.memory_space<vmem>>, vector<32x20xbf16>
    %c0_1 = arith.constant 0 : index
    %c0_2 = arith.constant 0 : index
    %1 = vector.load %arg3[%c0_1, %c0_2] : memref<20x64xbf16, #tpu.memory_space<vmem>>, vector<20x64xbf16>
    %cst = arith.constant dense<0.000000e+00> : vector<32x64xf32>
    %2 = tpu.matmul %0, %1, %cst {dimension_numbers = #tpu.dot_dimension_numbers<[1], [0], [0], [1], [0, 0, 1, 1], [], []>} : vector<32x20xbf16>, vector<20x64xbf16>, vector<32x64xf32> -> vector<32x64xf32>
    %c0_3 = arith.constant 0 : index
    %c0_4 = arith.constant 0 : index
    %3 = vector.load %arg2[%c0_3, %c0_4] : memref<32x64xbf16, #tpu.memory_space<vmem>>, vector<32x64xbf16>
    %4 = arith.extf %3 : vector<32x64xbf16> to vector<32x64xf32>
    %5 = arith.addf %2, %4 : vector<32x64xf32>
    %c0_5 = arith.constant 0 : index
    %c0_6 = arith.constant 0 : index
    %6 = vector.load %arg4[%c0_5, %c0_6] : memref<1x64xf32, #tpu.memory_space<vmem>>, vector<1x64xf32>
    %7 = vector.broadcast %6 : vector<1x64xf32> to vector<32x64xf32>
    %8 = arith.addf %5, %7 : vector<32x64xf32>
    %cst_7 = arith.constant 0.000000e+00 : f32
    %9 = vector.broadcast %cst_7 : f32 to vector<32x64xf32>
    %10 = arith.cmpf ogt, %8, %9 : vector<32x64xf32>
    %cst_8 = arith.constant 2.000000e-01 : f32
    %11 = vector.broadcast %cst_8 : f32 to vector<32x64xf32>
    %12 = arith.mulf %11, %8 : vector<32x64xf32>
    %13 = arith.select %10, %8, %12 : vector<32x64xi1>, vector<32x64xf32>
    %14 = arith.truncf %13 : vector<32x64xf32> to vector<32x64xbf16>
    %c0_9 = arith.constant 0 : index
    %c0_10 = arith.constant 0 : index
    %15 = vector.load %arg5[%c0_9, %c0_10] : memref<64x32xbf16, #tpu.memory_space<vmem>>, vector<64x32xbf16>
    %cst_11 = arith.constant dense<0.000000e+00> : vector<32x32xf32>
    %16 = tpu.matmul %14, %15, %cst_11 {dimension_numbers = #tpu.dot_dimension_numbers<[1], [0], [0], [1], [0, 0, 1, 1], [], []>} : vector<32x64xbf16>, vector<64x32xbf16>, vector<32x32xf32> -> vector<32x32xf32>
    %c0_12 = arith.constant 0 : index
    %c0_13 = arith.constant 0 : index
    %17 = vector.load %arg6[%c0_12, %c0_13] : memref<1x32xf32, #tpu.memory_space<vmem>>, vector<1x32xf32>
    %18 = vector.broadcast %17 : vector<1x32xf32> to vector<32x32xf32>
    %19 = arith.addf %16, %18 : vector<32x32xf32>
    %20 = arith.truncf %19 : vector<32x32xf32> to vector<32x32xbf16>
    %c0_14 = arith.constant 0 : index
    %c0_15 = arith.constant 0 : index
    %21 = vector.load %arg7[%c0_14, %c0_15] : memref<32x32xbf16, #tpu.memory_space<vmem>>, vector<32x32xbf16>
    tpu.vector_store %arg7[%c0_14, %c0_15], %20 {strides = array<i32>} : memref<32x32xbf16, #tpu.memory_space<vmem>>, vector<32x32xbf16>,
    return
  }
  func.func @transform_0(%arg0: i32) -> (i32, i32) {
    %c0_i32 = arith.constant 0 : i32
    %c0_i32_0 = arith.constant 0 : i32
    return %arg0, %c0_i32 : i32, i32
  }
  func.func @transform_1(%arg0: i32) -> (i32, i32) {
    %c0_i32 = arith.constant 0 : i32
    %c0_i32_0 = arith.constant 0 : i32
    return %arg0, %c0_i32 : i32, i32
  }
  func.func @transform_2(%arg0: i32) -> (i32, i32) {
    %c0_i32 = arith.constant 0 : i32
    %c0_i32_0 = arith.constant 0 : i32
    %c0_i32_1 = arith.constant 0 : i32
    return %c0_i32, %c0_i32_0 : i32, i32
  }
  func.func @transform_3(%arg0: i32) -> (i32, i32) {
    %c0_i32 = arith.constant 0 : i32
    %c0_i32_0 = arith.constant 0 : i32
    %c0_i32_1 = arith.constant 0 : i32
    return %c0_i32, %c0_i32_0 : i32, i32
  }
  func.func @transform_4(%arg0: i32) -> (i32, i32) {
    %c0_i32 = arith.constant 0 : i32
    %c0_i32_0 = arith.constant 0 : i32
    %c0_i32_1 = arith.constant 0 : i32
    return %c0_i32, %c0_i32_0 : i32, i32
  }
  func.func @transform_5(%arg0: i32) -> (i32, i32) {
    %c0_i32 = arith.constant 0 : i32
    %c0_i32_0 = arith.constant 0 : i32
    %c0_i32_1 = arith.constant 0 : i32
    return %c0_i32, %c0_i32_0 : i32, i32
  }
  func.func @transform_6(%arg0: i32) -> (i32, i32) {
    %c0_i32 = arith.constant 0 : i32
    %c0_i32_0 = arith.constant 0 : i32
    return %arg0, %c0_i32 : i32, i32
  }
}

module attributes {stable_mosaic.version = 11 : i64} {
  func.func @_node_update_kernel(%arg0: i32, %arg1: memref<16x10xbf16, #tpu.memory_space<vmem>>, %arg2: memref<16x32xbf16, #tpu.memory_space<vmem>>, %arg3: memref<10x64xbf16, #tpu.memory_space<vmem>>, %arg4: memref<32x64xbf16, #tpu.memory_space<vmem>>, %arg5: memref<1x64xf32, #tpu.memory_space<vmem>>, %arg6: memref<64x128xbf16, #tpu.memory_space<vmem>>, %arg7: memref<1x128xf32, #tpu.memory_space<vmem>>, %arg8: memref<16x128xbf16, #tpu.memory_space<vmem>>) attributes {dimension_semantics = [#tpu.dimension_semantics<parallel>], iteration_bounds = array<i64: 1>, scalar_prefetch = 0 : i64, scratch_operands = 0 : i64, tpu.core_type = #tpu.core_type<tc>, window_params = [{transform_indices = @transform_0, window_bounds = array<i64: 16, 10>}, {transform_indices = @transform_1, window_bounds = array<i64: 16, 32>}, {pipeline_mode = #tpu.pipeline_mode<synchronous>, transform_indices = @transform_2, window_bounds = array<i64: 10, 64>}, {pipeline_mode = #tpu.pipeline_mode<synchronous>, transform_indices = @transform_3, window_bounds = array<i64: 32, 64>}, {pipeline_mode = #tpu.pipeline_mode<synchronous>, transform_indices = @transform_4, window_bounds = array<i64: 1, 64>}, {pipeline_mode = #tpu.pipeline_mode<synchronous>, transform_indices = @transform_5, window_bounds = array<i64: 64, 128>}, {pipeline_mode = #tpu.pipeline_mode<synchronous>, transform_indices = @transform_6, window_bounds = array<i64: 1, 128>}, {transform_indices = @transform_7, window_bounds = array<i64: 16, 128>}]} {
    %c0 = arith.constant 0 : index
    %c0_0 = arith.constant 0 : index
    %0 = vector.load %arg1[%c0, %c0_0] : memref<16x10xbf16, #tpu.memory_space<vmem>>, vector<16x10xbf16>
    %c0_1 = arith.constant 0 : index
    %c0_2 = arith.constant 0 : index
    %1 = vector.load %arg3[%c0_1, %c0_2] : memref<10x64xbf16, #tpu.memory_space<vmem>>, vector<10x64xbf16>
    %cst = arith.constant dense<0.000000e+00> : vector<16x64xf32>
    %2 = tpu.matmul %0, %1, %cst {dimension_numbers = #tpu.dot_dimension_numbers<[1], [0], [0], [1], [0, 0, 1, 1], [], []>} : vector<16x10xbf16>, vector<10x64xbf16>, vector<16x64xf32> -> vector<16x64xf32>
    %c0_3 = arith.constant 0 : index
    %c0_4 = arith.constant 0 : index
    %3 = vector.load %arg2[%c0_3, %c0_4] : memref<16x32xbf16, #tpu.memory_space<vmem>>, vector<16x32xbf16>
    %c0_5 = arith.constant 0 : index
    %c0_6 = arith.constant 0 : index
    %4 = vector.load %arg4[%c0_5, %c0_6] : memref<32x64xbf16, #tpu.memory_space<vmem>>, vector<32x64xbf16>
    %cst_7 = arith.constant dense<0.000000e+00> : vector<16x64xf32>
    %5 = tpu.matmul %3, %4, %cst_7 {dimension_numbers = #tpu.dot_dimension_numbers<[1], [0], [0], [1], [0, 0, 1, 1], [], []>} : vector<16x32xbf16>, vector<32x64xbf16>, vector<16x64xf32> -> vector<16x64xf32>
    %6 = arith.addf %2, %5 : vector<16x64xf32>
    %c0_8 = arith.constant 0 : index
    %c0_9 = arith.constant 0 : index
    %7 = vector.load %arg5[%c0_8, %c0_9] : memref<1x64xf32, #tpu.memory_space<vmem>>, vector<1x64xf32>
    %8 = vector.broadcast %7 : vector<1x64xf32> to vector<16x64xf32>
    %9 = arith.addf %6, %8 : vector<16x64xf32>
    %cst_10 = arith.constant 0.000000e+00 : f32
    %10 = vector.broadcast %cst_10 : f32 to vector<16x64xf32>
    %11 = arith.cmpf ogt, %9, %10 : vector<16x64xf32>
    %cst_11 = arith.constant 2.000000e-01 : f32
    %12 = vector.broadcast %cst_11 : f32 to vector<16x64xf32>
    %13 = arith.mulf %12, %9 : vector<16x64xf32>
    %14 = arith.select %11, %9, %13 : vector<16x64xi1>, vector<16x64xf32>
    %15 = arith.truncf %14 : vector<16x64xf32> to vector<16x64xbf16>
    %c0_12 = arith.constant 0 : index
    %c0_13 = arith.constant 0 : index
    %16 = vector.load %arg6[%c0_12, %c0_13] : memref<64x128xbf16, #tpu.memory_space<vmem>>, vector<64x128xbf16>
    %cst_14 = arith.constant dense<0.000000e+00> : vector<16x128xf32>
    %17 = tpu.matmul %15, %16, %cst_14 {dimension_numbers = #tpu.dot_dimension_numbers<[1], [0], [0], [1], [0, 0, 1, 1], [], []>} : vector<16x64xbf16>, vector<64x128xbf16>, vector<16x128xf32> -> vector<16x128xf32>
    %c0_15 = arith.constant 0 : index
    %c0_16 = arith.constant 0 : index
    %18 = vector.load %arg7[%c0_15, %c0_16] : memref<1x128xf32, #tpu.memory_space<vmem>>, vector<1x128xf32>
    %19 = vector.broadcast %18 : vector<1x128xf32> to vector<16x128xf32>
    %20 = arith.addf %17, %19 : vector<16x128xf32>
    %cst_17 = arith.constant 0.000000e+00 : f32
    %21 = vector.broadcast %cst_17 : f32 to vector<16x128xf32>
    %22 = arith.maximumf %20, %21 : vector<16x128xf32>
    %23 = arith.truncf %22 : vector<16x128xf32> to vector<16x128xbf16>
    %c0_18 = arith.constant 0 : index
    %c0_19 = arith.constant 0 : index
    %24 = vector.load %arg8[%c0_18, %c0_19] : memref<16x128xbf16, #tpu.memory_space<vmem>>, vector<16x128xbf16>
    tpu.vector_store %arg8[%c0_18, %c0_19], %23 {strides = array<i32>} : memref<16x128xbf16, #tpu.memory_space<vmem>>, vector<16x128xbf16>,
    return
  }
  func.func @transform_0(%arg0: i32) -> (i32, i32) {
    %c0_i32 = arith.constant 0 : i32
    %c0_i32_0 = arith.constant 0 : i32
    return %arg0, %c0_i32 : i32, i32
  }
  func.func @transform_1(%arg0: i32) -> (i32, i32) {
    %c0_i32 = arith.constant 0 : i32
    %c0_i32_0 = arith.constant 0 : i32
    return %arg0, %c0_i32 : i32, i32
  }
  func.func @transform_2(%arg0: i32) -> (i32, i32) {
    %c0_i32 = arith.constant 0 : i32
    %c0_i32_0 = arith.constant 0 : i32
    %c0_i32_1 = arith.constant 0 : i32
    return %c0_i32, %c0_i32_0 : i32, i32
  }
  func.func @transform_3(%arg0: i32) -> (i32, i32) {
    %c0_i32 = arith.constant 0 : i32
    %c0_i32_0 = arith.constant 0 : i32
    %c0_i32_1 = arith.constant 0 : i32
    return %c0_i32, %c0_i32_0 : i32, i32
  }
  func.func @transform_4(%arg0: i32) -> (i32, i32) {
    %c0_i32 = arith.constant 0 : i32
    %c0_i32_0 = arith.constant 0 : i32
    %c0_i32_1 = arith.constant 0 : i32
    return %c0_i32, %c0_i32_0 : i32, i32
  }
  func.func @transform_5(%arg0: i32) -> (i32, i32) {
    %c0_i32 = arith.constant 0 : i32
    %c0_i32_0 = arith.constant 0 : i32
    %c0_i32_1 = arith.constant 0 : i32
    return %c0_i32, %c0_i32_0 : i32, i32
  }
  func.func @transform_6(%arg0: i32) -> (i32, i32) {
    %c0_i32 = arith.constant 0 : i32
    %c0_i32_0 = arith.constant 0 : i32
    %c0_i32_1 = arith.constant 0 : i32
    return %c0_i32, %c0_i32_0 : i32, i32
  }
  func.func @transform_7(%arg0: i32) -> (i32, i32) {
    %c0_i32 = arith.constant 0 : i32
    %c0_i32_0 = arith.constant 0 : i32
    return %arg0, %c0_i32 : i32, i32
  }
}

module attributes {stable_mosaic.version = 11 : i64} {
  func.func @_edge_msg_kernel(%arg0: i32, %arg1: memref<32x64xbf16, #tpu.memory_space<vmem>>, %arg2: memref<32x64xbf16, #tpu.memory_space<vmem>>, %arg3: memref<64x64xbf16, #tpu.memory_space<vmem>>, %arg4: memref<1x64xf32, #tpu.memory_space<vmem>>, %arg5: memref<64x16xbf16, #tpu.memory_space<vmem>>, %arg6: memref<1x16xf32, #tpu.memory_space<vmem>>, %arg7: memref<32x16xbf16, #tpu.memory_space<vmem>>) attributes {dimension_semantics = [#tpu.dimension_semantics<parallel>], iteration_bounds = array<i64: 1>, scalar_prefetch = 0 : i64, scratch_operands = 0 : i64, tpu.core_type = #tpu.core_type<tc>, window_params = [{transform_indices = @transform_0, window_bounds = array<i64: 32, 64>}, {transform_indices = @transform_1, window_bounds = array<i64: 32, 64>}, {pipeline_mode = #tpu.pipeline_mode<synchronous>, transform_indices = @transform_2, window_bounds = array<i64: 64, 64>}, {pipeline_mode = #tpu.pipeline_mode<synchronous>, transform_indices = @transform_3, window_bounds = array<i64: 1, 64>}, {pipeline_mode = #tpu.pipeline_mode<synchronous>, transform_indices = @transform_4, window_bounds = array<i64: 64, 16>}, {pipeline_mode = #tpu.pipeline_mode<synchronous>, transform_indices = @transform_5, window_bounds = array<i64: 1, 16>}, {transform_indices = @transform_6, window_bounds = array<i64: 32, 16>}]} {
    %c0 = arith.constant 0 : index
    %c0_0 = arith.constant 0 : index
    %0 = vector.load %arg1[%c0, %c0_0] : memref<32x64xbf16, #tpu.memory_space<vmem>>, vector<32x64xbf16>
    %c0_1 = arith.constant 0 : index
    %c0_2 = arith.constant 0 : index
    %1 = vector.load %arg3[%c0_1, %c0_2] : memref<64x64xbf16, #tpu.memory_space<vmem>>, vector<64x64xbf16>
    %cst = arith.constant dense<0.000000e+00> : vector<32x64xf32>
    %2 = tpu.matmul %0, %1, %cst {dimension_numbers = #tpu.dot_dimension_numbers<[1], [0], [0], [1], [0, 0, 1, 1], [], []>} : vector<32x64xbf16>, vector<64x64xbf16>, vector<32x64xf32> -> vector<32x64xf32>
    %c0_3 = arith.constant 0 : index
    %c0_4 = arith.constant 0 : index
    %3 = vector.load %arg2[%c0_3, %c0_4] : memref<32x64xbf16, #tpu.memory_space<vmem>>, vector<32x64xbf16>
    %4 = arith.extf %3 : vector<32x64xbf16> to vector<32x64xf32>
    %5 = arith.addf %2, %4 : vector<32x64xf32>
    %c0_5 = arith.constant 0 : index
    %c0_6 = arith.constant 0 : index
    %6 = vector.load %arg4[%c0_5, %c0_6] : memref<1x64xf32, #tpu.memory_space<vmem>>, vector<1x64xf32>
    %7 = vector.broadcast %6 : vector<1x64xf32> to vector<32x64xf32>
    %8 = arith.addf %5, %7 : vector<32x64xf32>
    %cst_7 = arith.constant 0.000000e+00 : f32
    %9 = vector.broadcast %cst_7 : f32 to vector<32x64xf32>
    %10 = arith.cmpf ogt, %8, %9 : vector<32x64xf32>
    %cst_8 = arith.constant 2.000000e-01 : f32
    %11 = vector.broadcast %cst_8 : f32 to vector<32x64xf32>
    %12 = arith.mulf %11, %8 : vector<32x64xf32>
    %13 = arith.select %10, %8, %12 : vector<32x64xi1>, vector<32x64xf32>
    %14 = arith.truncf %13 : vector<32x64xf32> to vector<32x64xbf16>
    %c0_9 = arith.constant 0 : index
    %c0_10 = arith.constant 0 : index
    %15 = vector.load %arg5[%c0_9, %c0_10] : memref<64x16xbf16, #tpu.memory_space<vmem>>, vector<64x16xbf16>
    %cst_11 = arith.constant dense<0.000000e+00> : vector<32x16xf32>
    %16 = tpu.matmul %14, %15, %cst_11 {dimension_numbers = #tpu.dot_dimension_numbers<[1], [0], [0], [1], [0, 0, 1, 1], [], []>} : vector<32x64xbf16>, vector<64x16xbf16>, vector<32x16xf32> -> vector<32x16xf32>
    %c0_12 = arith.constant 0 : index
    %c0_13 = arith.constant 0 : index
    %17 = vector.load %arg6[%c0_12, %c0_13] : memref<1x16xf32, #tpu.memory_space<vmem>>, vector<1x16xf32>
    %18 = vector.broadcast %17 : vector<1x16xf32> to vector<32x16xf32>
    %19 = arith.addf %16, %18 : vector<32x16xf32>
    %20 = arith.truncf %19 : vector<32x16xf32> to vector<32x16xbf16>
    %c0_14 = arith.constant 0 : index
    %c0_15 = arith.constant 0 : index
    %21 = vector.load %arg7[%c0_14, %c0_15] : memref<32x16xbf16, #tpu.memory_space<vmem>>, vector<32x16xbf16>
    tpu.vector_store %arg7[%c0_14, %c0_15], %20 {strides = array<i32>} : memref<32x16xbf16, #tpu.memory_space<vmem>>, vector<32x16xbf16>,
    return
  }
  func.func @transform_0(%arg0: i32) -> (i32, i32) {
    %c0_i32 = arith.constant 0 : i32
    %c0_i32_0 = arith.constant 0 : i32
    return %arg0, %c0_i32 : i32, i32
  }
  func.func @transform_1(%arg0: i32) -> (i32, i32) {
    %c0_i32 = arith.constant 0 : i32
    %c0_i32_0 = arith.constant 0 : i32
    return %arg0, %c0_i32 : i32, i32
  }
  func.func @transform_2(%arg0: i32) -> (i32, i32) {
    %c0_i32 = arith.constant 0 : i32
    %c0_i32_0 = arith.constant 0 : i32
    %c0_i32_1 = arith.constant 0 : i32
    return %c0_i32, %c0_i32_0 : i32, i32
  }
  func.func @transform_3(%arg0: i32) -> (i32, i32) {
    %c0_i32 = arith.constant 0 : i32
    %c0_i32_0 = arith.constant 0 : i32
    %c0_i32_1 = arith.constant 0 : i32
    return %c0_i32, %c0_i32_0 : i32, i32
  }
  func.func @transform_4(%arg0: i32) -> (i32, i32) {
    %c0_i32 = arith.constant 0 : i32
    %c0_i32_0 = arith.constant 0 : i32
    %c0_i32_1 = arith.constant 0 : i32
    return %c0_i32, %c0_i32_0 : i32, i32
  }
  func.func @transform_5(%arg0: i32) -> (i32, i32) {
    %c0_i32 = arith.constant 0 : i32
    %c0_i32_0 = arith.constant 0 : i32
    %c0_i32_1 = arith.constant 0 : i32
    return %c0_i32, %c0_i32_0 : i32, i32
  }
  func.func @transform_6(%arg0: i32) -> (i32, i32) {
    %c0_i32 = arith.constant 0 : i32
    %c0_i32_0 = arith.constant 0 : i32
    return %arg0, %c0_i32 : i32, i32
  }
}

module attributes {stable_mosaic.version = 11 : i64} {
  func.func @_node_update_kernel(%arg0: i32, %arg1: memref<16x32xbf16, #tpu.memory_space<vmem>>, %arg2: memref<16x16xbf16, #tpu.memory_space<vmem>>, %arg3: memref<32x64xbf16, #tpu.memory_space<vmem>>, %arg4: memref<16x64xbf16, #tpu.memory_space<vmem>>, %arg5: memref<1x64xf32, #tpu.memory_space<vmem>>, %arg6: memref<64x128xbf16, #tpu.memory_space<vmem>>, %arg7: memref<1x128xf32, #tpu.memory_space<vmem>>, %arg8: memref<16x128xbf16, #tpu.memory_space<vmem>>) attributes {dimension_semantics = [#tpu.dimension_semantics<parallel>], iteration_bounds = array<i64: 1>, scalar_prefetch = 0 : i64, scratch_operands = 0 : i64, tpu.core_type = #tpu.core_type<tc>, window_params = [{transform_indices = @transform_0, window_bounds = array<i64: 16, 32>}, {transform_indices = @transform_1, window_bounds = array<i64: 16, 16>}, {pipeline_mode = #tpu.pipeline_mode<synchronous>, transform_indices = @transform_2, window_bounds = array<i64: 32, 64>}, {pipeline_mode = #tpu.pipeline_mode<synchronous>, transform_indices = @transform_3, window_bounds = array<i64: 16, 64>}, {pipeline_mode = #tpu.pipeline_mode<synchronous>, transform_indices = @transform_4, window_bounds = array<i64: 1, 64>}, {pipeline_mode = #tpu.pipeline_mode<synchronous>, transform_indices = @transform_5, window_bounds = array<i64: 64, 128>}, {pipeline_mode = #tpu.pipeline_mode<synchronous>, transform_indices = @transform_6, window_bounds = array<i64: 1, 128>}, {transform_indices = @transform_7, window_bounds = array<i64: 16, 128>}]} {
    %c0 = arith.constant 0 : index
    %c0_0 = arith.constant 0 : index
    %0 = vector.load %arg1[%c0, %c0_0] : memref<16x32xbf16, #tpu.memory_space<vmem>>, vector<16x32xbf16>
    %c0_1 = arith.constant 0 : index
    %c0_2 = arith.constant 0 : index
    %1 = vector.load %arg3[%c0_1, %c0_2] : memref<32x64xbf16, #tpu.memory_space<vmem>>, vector<32x64xbf16>
    %cst = arith.constant dense<0.000000e+00> : vector<16x64xf32>
    %2 = tpu.matmul %0, %1, %cst {dimension_numbers = #tpu.dot_dimension_numbers<[1], [0], [0], [1], [0, 0, 1, 1], [], []>} : vector<16x32xbf16>, vector<32x64xbf16>, vector<16x64xf32> -> vector<16x64xf32>
    %c0_3 = arith.constant 0 : index
    %c0_4 = arith.constant 0 : index
    %3 = vector.load %arg2[%c0_3, %c0_4] : memref<16x16xbf16, #tpu.memory_space<vmem>>, vector<16x16xbf16>
    %c0_5 = arith.constant 0 : index
    %c0_6 = arith.constant 0 : index
    %4 = vector.load %arg4[%c0_5, %c0_6] : memref<16x64xbf16, #tpu.memory_space<vmem>>, vector<16x64xbf16>
    %cst_7 = arith.constant dense<0.000000e+00> : vector<16x64xf32>
    %5 = tpu.matmul %3, %4, %cst_7 {dimension_numbers = #tpu.dot_dimension_numbers<[1], [0], [0], [1], [0, 0, 1, 1], [], []>} : vector<16x16xbf16>, vector<16x64xbf16>, vector<16x64xf32> -> vector<16x64xf32>
    %6 = arith.addf %2, %5 : vector<16x64xf32>
    %c0_8 = arith.constant 0 : index
    %c0_9 = arith.constant 0 : index
    %7 = vector.load %arg5[%c0_8, %c0_9] : memref<1x64xf32, #tpu.memory_space<vmem>>, vector<1x64xf32>
    %8 = vector.broadcast %7 : vector<1x64xf32> to vector<16x64xf32>
    %9 = arith.addf %6, %8 : vector<16x64xf32>
    %cst_10 = arith.constant 0.000000e+00 : f32
    %10 = vector.broadcast %cst_10 : f32 to vector<16x64xf32>
    %11 = arith.cmpf ogt, %9, %10 : vector<16x64xf32>
    %cst_11 = arith.constant 2.000000e-01 : f32
    %12 = vector.broadcast %cst_11 : f32 to vector<16x64xf32>
    %13 = arith.mulf %12, %9 : vector<16x64xf32>
    %14 = arith.select %11, %9, %13 : vector<16x64xi1>, vector<16x64xf32>
    %15 = arith.truncf %14 : vector<16x64xf32> to vector<16x64xbf16>
    %c0_12 = arith.constant 0 : index
    %c0_13 = arith.constant 0 : index
    %16 = vector.load %arg6[%c0_12, %c0_13] : memref<64x128xbf16, #tpu.memory_space<vmem>>, vector<64x128xbf16>
    %cst_14 = arith.constant dense<0.000000e+00> : vector<16x128xf32>
    %17 = tpu.matmul %15, %16, %cst_14 {dimension_numbers = #tpu.dot_dimension_numbers<[1], [0], [0], [1], [0, 0, 1, 1], [], []>} : vector<16x64xbf16>, vector<64x128xbf16>, vector<16x128xf32> -> vector<16x128xf32>
    %c0_15 = arith.constant 0 : index
    %c0_16 = arith.constant 0 : index
    %18 = vector.load %arg7[%c0_15, %c0_16] : memref<1x128xf32, #tpu.memory_space<vmem>>, vector<1x128xf32>
    %19 = vector.broadcast %18 : vector<1x128xf32> to vector<16x128xf32>
    %20 = arith.addf %17, %19 : vector<16x128xf32>
    %cst_17 = arith.constant 0.000000e+00 : f32
    %21 = vector.broadcast %cst_17 : f32 to vector<16x128xf32>
    %22 = arith.maximumf %20, %21 : vector<16x128xf32>
    %23 = arith.truncf %22 : vector<16x128xf32> to vector<16x128xbf16>
    %c0_18 = arith.constant 0 : index
    %c0_19 = arith.constant 0 : index
    %24 = vector.load %arg8[%c0_18, %c0_19] : memref<16x128xbf16, #tpu.memory_space<vmem>>, vector<16x128xbf16>
    tpu.vector_store %arg8[%c0_18, %c0_19], %23 {strides = array<i32>} : memref<16x128xbf16, #tpu.memory_space<vmem>>, vector<16x128xbf16>,
    return
  }
  func.func @transform_0(%arg0: i32) -> (i32, i32) {
    %c0_i32 = arith.constant 0 : i32
    %c0_i32_0 = arith.constant 0 : i32
    return %arg0, %c0_i32 : i32, i32
  }
  func.func @transform_1(%arg0: i32) -> (i32, i32) {
    %c0_i32 = arith.constant 0 : i32
    %c0_i32_0 = arith.constant 0 : i32
    return %arg0, %c0_i32 : i32, i32
  }
  func.func @transform_2(%arg0: i32) -> (i32, i32) {
    %c0_i32 = arith.constant 0 : i32
    %c0_i32_0 = arith.constant 0 : i32
    %c0_i32_1 = arith.constant 0 : i32
    return %c0_i32, %c0_i32_0 : i32, i32
  }
  func.func @transform_3(%arg0: i32) -> (i32, i32) {
    %c0_i32 = arith.constant 0 : i32
    %c0_i32_0 = arith.constant 0 : i32
    %c0_i32_1 = arith.constant 0 : i32
    return %c0_i32, %c0_i32_0 : i32, i32
  }
  func.func @transform_4(%arg0: i32) -> (i32, i32) {
    %c0_i32 = arith.constant 0 : i32
    %c0_i32_0 = arith.constant 0 : i32
    %c0_i32_1 = arith.constant 0 : i32
    return %c0_i32, %c0_i32_0 : i32, i32
  }
  func.func @transform_5(%arg0: i32) -> (i32, i32) {
    %c0_i32 = arith.constant 0 : i32
    %c0_i32_0 = arith.constant 0 : i32
    %c0_i32_1 = arith.constant 0 : i32
    return %c0_i32, %c0_i32_0 : i32, i32
  }
  func.func @transform_6(%arg0: i32) -> (i32, i32) {
    %c0_i32 = arith.constant 0 : i32
    %c0_i32_0 = arith.constant 0 : i32
    %c0_i32_1 = arith.constant 0 : i32
    return %c0_i32, %c0_i32_0 : i32, i32
  }
  func.func @transform_7(%arg0: i32) -> (i32, i32) {
    %c0_i32 = arith.constant 0 : i32
    %c0_i32_0 = arith.constant 0 : i32
    return %arg0, %c0_i32 : i32, i32
  }
}

module attributes {stable_mosaic.version = 11 : i64} {
  func.func @_edge_msg_kernel(%arg0: i32, %arg1: memref<32x32xbf16, #tpu.memory_space<vmem>>, %arg2: memref<32x64xbf16, #tpu.memory_space<vmem>>, %arg3: memref<32x64xbf16, #tpu.memory_space<vmem>>, %arg4: memref<1x64xf32, #tpu.memory_space<vmem>>, %arg5: memref<64x4xbf16, #tpu.memory_space<vmem>>, %arg6: memref<1x4xf32, #tpu.memory_space<vmem>>, %arg7: memref<32x4xbf16, #tpu.memory_space<vmem>>) attributes {dimension_semantics = [#tpu.dimension_semantics<parallel>], iteration_bounds = array<i64: 1>, scalar_prefetch = 0 : i64, scratch_operands = 0 : i64, tpu.core_type = #tpu.core_type<tc>, window_params = [{transform_indices = @transform_0, window_bounds = array<i64: 32, 32>}, {transform_indices = @transform_1, window_bounds = array<i64: 32, 64>}, {pipeline_mode = #tpu.pipeline_mode<synchronous>, transform_indices = @transform_2, window_bounds = array<i64: 32, 64>}, {pipeline_mode = #tpu.pipeline_mode<synchronous>, transform_indices = @transform_3, window_bounds = array<i64: 1, 64>}, {pipeline_mode = #tpu.pipeline_mode<synchronous>, transform_indices = @transform_4, window_bounds = array<i64: 64, 4>}, {pipeline_mode = #tpu.pipeline_mode<synchronous>, transform_indices = @transform_5, window_bounds = array<i64: 1, 4>}, {transform_indices = @transform_6, window_bounds = array<i64: 32, 4>}]} {
    %c0 = arith.constant 0 : index
    %c0_0 = arith.constant 0 : index
    %0 = vector.load %arg1[%c0, %c0_0] : memref<32x32xbf16, #tpu.memory_space<vmem>>, vector<32x32xbf16>
    %c0_1 = arith.constant 0 : index
    %c0_2 = arith.constant 0 : index
    %1 = vector.load %arg3[%c0_1, %c0_2] : memref<32x64xbf16, #tpu.memory_space<vmem>>, vector<32x64xbf16>
    %cst = arith.constant dense<0.000000e+00> : vector<32x64xf32>
    %2 = tpu.matmul %0, %1, %cst {dimension_numbers = #tpu.dot_dimension_numbers<[1], [0], [0], [1], [0, 0, 1, 1], [], []>} : vector<32x32xbf16>, vector<32x64xbf16>, vector<32x64xf32> -> vector<32x64xf32>
    %c0_3 = arith.constant 0 : index
    %c0_4 = arith.constant 0 : index
    %3 = vector.load %arg2[%c0_3, %c0_4] : memref<32x64xbf16, #tpu.memory_space<vmem>>, vector<32x64xbf16>
    %4 = arith.extf %3 : vector<32x64xbf16> to vector<32x64xf32>
    %5 = arith.addf %2, %4 : vector<32x64xf32>
    %c0_5 = arith.constant 0 : index
    %c0_6 = arith.constant 0 : index
    %6 = vector.load %arg4[%c0_5, %c0_6] : memref<1x64xf32, #tpu.memory_space<vmem>>, vector<1x64xf32>
    %7 = vector.broadcast %6 : vector<1x64xf32> to vector<32x64xf32>
    %8 = arith.addf %5, %7 : vector<32x64xf32>
    %cst_7 = arith.constant 0.000000e+00 : f32
    %9 = vector.broadcast %cst_7 : f32 to vector<32x64xf32>
    %10 = arith.cmpf ogt, %8, %9 : vector<32x64xf32>
    %cst_8 = arith.constant 2.000000e-01 : f32
    %11 = vector.broadcast %cst_8 : f32 to vector<32x64xf32>
    %12 = arith.mulf %11, %8 : vector<32x64xf32>
    %13 = arith.select %10, %8, %12 : vector<32x64xi1>, vector<32x64xf32>
    %14 = arith.truncf %13 : vector<32x64xf32> to vector<32x64xbf16>
    %c0_9 = arith.constant 0 : index
    %c0_10 = arith.constant 0 : index
    %15 = vector.load %arg5[%c0_9, %c0_10] : memref<64x4xbf16, #tpu.memory_space<vmem>>, vector<64x4xbf16>
    %cst_11 = arith.constant dense<0.000000e+00> : vector<32x4xf32>
    %16 = tpu.matmul %14, %15, %cst_11 {dimension_numbers = #tpu.dot_dimension_numbers<[1], [0], [0], [1], [0, 0, 1, 1], [], []>} : vector<32x64xbf16>, vector<64x4xbf16>, vector<32x4xf32> -> vector<32x4xf32>
    %c0_12 = arith.constant 0 : index
    %c0_13 = arith.constant 0 : index
    %17 = vector.load %arg6[%c0_12, %c0_13] : memref<1x4xf32, #tpu.memory_space<vmem>>, vector<1x4xf32>
    %18 = vector.broadcast %17 : vector<1x4xf32> to vector<32x4xf32>
    %19 = arith.addf %16, %18 : vector<32x4xf32>
    %20 = arith.truncf %19 : vector<32x4xf32> to vector<32x4xbf16>
    %c0_14 = arith.constant 0 : index
    %c0_15 = arith.constant 0 : index
    %21 = vector.load %arg7[%c0_14, %c0_15] : memref<32x4xbf16, #tpu.memory_space<vmem>>, vector<32x4xbf16>
    tpu.vector_store %arg7[%c0_14, %c0_15], %20 {strides = array<i32>} : memref<32x4xbf16, #tpu.memory_space<vmem>>, vector<32x4xbf16>,
    return
  }
  func.func @transform_0(%arg0: i32) -> (i32, i32) {
    %c0_i32 = arith.constant 0 : i32
    %c0_i32_0 = arith.constant 0 : i32
    return %arg0, %c0_i32 : i32, i32
  }
  func.func @transform_1(%arg0: i32) -> (i32, i32) {
    %c0_i32 = arith.constant 0 : i32
    %c0_i32_0 = arith.constant 0 : i32
    return %arg0, %c0_i32 : i32, i32
  }
  func.func @transform_2(%arg0: i32) -> (i32, i32) {
    %c0_i32 = arith.constant 0 : i32
    %c0_i32_0 = arith.constant 0 : i32
    %c0_i32_1 = arith.constant 0 : i32
    return %c0_i32, %c0_i32_0 : i32, i32
  }
  func.func @transform_3(%arg0: i32) -> (i32, i32) {
    %c0_i32 = arith.constant 0 : i32
    %c0_i32_0 = arith.constant 0 : i32
    %c0_i32_1 = arith.constant 0 : i32
    return %c0_i32, %c0_i32_0 : i32, i32
  }
  func.func @transform_4(%arg0: i32) -> (i32, i32) {
    %c0_i32 = arith.constant 0 : i32
    %c0_i32_0 = arith.constant 0 : i32
    %c0_i32_1 = arith.constant 0 : i32
    return %c0_i32, %c0_i32_0 : i32, i32
  }
  func.func @transform_5(%arg0: i32) -> (i32, i32) {
    %c0_i32 = arith.constant 0 : i32
    %c0_i32_0 = arith.constant 0 : i32
    %c0_i32_1 = arith.constant 0 : i32
    return %c0_i32, %c0_i32_0 : i32, i32
  }
  func.func @transform_6(%arg0: i32) -> (i32, i32) {
    %c0_i32 = arith.constant 0 : i32
    %c0_i32_0 = arith.constant 0 : i32
    return %arg0, %c0_i32 : i32, i32
  }
}

module attributes {stable_mosaic.version = 11 : i64} {
  func.func @_node_update_kernel(%arg0: i32, %arg1: memref<16x16xbf16, #tpu.memory_space<vmem>>, %arg2: memref<16x4xbf16, #tpu.memory_space<vmem>>, %arg3: memref<16x64xbf16, #tpu.memory_space<vmem>>, %arg4: memref<4x64xbf16, #tpu.memory_space<vmem>>, %arg5: memref<1x64xf32, #tpu.memory_space<vmem>>, %arg6: memref<64x128xbf16, #tpu.memory_space<vmem>>, %arg7: memref<1x128xf32, #tpu.memory_space<vmem>>, %arg8: memref<16x128xf32, #tpu.memory_space<vmem>>) attributes {dimension_semantics = [#tpu.dimension_semantics<parallel>], iteration_bounds = array<i64: 1>, scalar_prefetch = 0 : i64, scratch_operands = 0 : i64, tpu.core_type = #tpu.core_type<tc>, window_params = [{transform_indices = @transform_0, window_bounds = array<i64: 16, 16>}, {transform_indices = @transform_1, window_bounds = array<i64: 16, 4>}, {pipeline_mode = #tpu.pipeline_mode<synchronous>, transform_indices = @transform_2, window_bounds = array<i64: 16, 64>}, {pipeline_mode = #tpu.pipeline_mode<synchronous>, transform_indices = @transform_3, window_bounds = array<i64: 4, 64>}, {pipeline_mode = #tpu.pipeline_mode<synchronous>, transform_indices = @transform_4, window_bounds = array<i64: 1, 64>}, {pipeline_mode = #tpu.pipeline_mode<synchronous>, transform_indices = @transform_5, window_bounds = array<i64: 64, 128>}, {pipeline_mode = #tpu.pipeline_mode<synchronous>, transform_indices = @transform_6, window_bounds = array<i64: 1, 128>}, {transform_indices = @transform_7, window_bounds = array<i64: 16, 128>}]} {
    %c0 = arith.constant 0 : index
    %c0_0 = arith.constant 0 : index
    %0 = vector.load %arg1[%c0, %c0_0] : memref<16x16xbf16, #tpu.memory_space<vmem>>, vector<16x16xbf16>
    %c0_1 = arith.constant 0 : index
    %c0_2 = arith.constant 0 : index
    %1 = vector.load %arg3[%c0_1, %c0_2] : memref<16x64xbf16, #tpu.memory_space<vmem>>, vector<16x64xbf16>
    %cst = arith.constant dense<0.000000e+00> : vector<16x64xf32>
    %2 = tpu.matmul %0, %1, %cst {dimension_numbers = #tpu.dot_dimension_numbers<[1], [0], [0], [1], [0, 0, 1, 1], [], []>} : vector<16x16xbf16>, vector<16x64xbf16>, vector<16x64xf32> -> vector<16x64xf32>
    %c0_3 = arith.constant 0 : index
    %c0_4 = arith.constant 0 : index
    %3 = vector.load %arg2[%c0_3, %c0_4] : memref<16x4xbf16, #tpu.memory_space<vmem>>, vector<16x4xbf16>
    %c0_5 = arith.constant 0 : index
    %c0_6 = arith.constant 0 : index
    %4 = vector.load %arg4[%c0_5, %c0_6] : memref<4x64xbf16, #tpu.memory_space<vmem>>, vector<4x64xbf16>
    %cst_7 = arith.constant dense<0.000000e+00> : vector<16x64xf32>
    %5 = tpu.matmul %3, %4, %cst_7 {dimension_numbers = #tpu.dot_dimension_numbers<[1], [0], [0], [1], [0, 0, 1, 1], [], []>} : vector<16x4xbf16>, vector<4x64xbf16>, vector<16x64xf32> -> vector<16x64xf32>
    %6 = arith.addf %2, %5 : vector<16x64xf32>
    %c0_8 = arith.constant 0 : index
    %c0_9 = arith.constant 0 : index
    %7 = vector.load %arg5[%c0_8, %c0_9] : memref<1x64xf32, #tpu.memory_space<vmem>>, vector<1x64xf32>
    %8 = vector.broadcast %7 : vector<1x64xf32> to vector<16x64xf32>
    %9 = arith.addf %6, %8 : vector<16x64xf32>
    %cst_10 = arith.constant 0.000000e+00 : f32
    %10 = vector.broadcast %cst_10 : f32 to vector<16x64xf32>
    %11 = arith.cmpf ogt, %9, %10 : vector<16x64xf32>
    %cst_11 = arith.constant 2.000000e-01 : f32
    %12 = vector.broadcast %cst_11 : f32 to vector<16x64xf32>
    %13 = arith.mulf %12, %9 : vector<16x64xf32>
    %14 = arith.select %11, %9, %13 : vector<16x64xi1>, vector<16x64xf32>
    %15 = arith.truncf %14 : vector<16x64xf32> to vector<16x64xbf16>
    %c0_12 = arith.constant 0 : index
    %c0_13 = arith.constant 0 : index
    %16 = vector.load %arg6[%c0_12, %c0_13] : memref<64x128xbf16, #tpu.memory_space<vmem>>, vector<64x128xbf16>
    %cst_14 = arith.constant dense<0.000000e+00> : vector<16x128xf32>
    %17 = tpu.matmul %15, %16, %cst_14 {dimension_numbers = #tpu.dot_dimension_numbers<[1], [0], [0], [1], [0, 0, 1, 1], [], []>} : vector<16x64xbf16>, vector<64x128xbf16>, vector<16x128xf32> -> vector<16x128xf32>
    %c0_15 = arith.constant 0 : index
    %c0_16 = arith.constant 0 : index
    %18 = vector.load %arg7[%c0_15, %c0_16] : memref<1x128xf32, #tpu.memory_space<vmem>>, vector<1x128xf32>
    %19 = vector.broadcast %18 : vector<1x128xf32> to vector<16x128xf32>
    %20 = arith.addf %17, %19 : vector<16x128xf32>
    %c0_17 = arith.constant 0 : index
    %c0_18 = arith.constant 0 : index
    %21 = vector.load %arg8[%c0_17, %c0_18] : memref<16x128xf32, #tpu.memory_space<vmem>>, vector<16x128xf32>
    tpu.vector_store %arg8[%c0_17, %c0_18], %20 {strides = array<i32>} : memref<16x128xf32, #tpu.memory_space<vmem>>, vector<16x128xf32>,
    return
  }
  func.func @transform_0(%arg0: i32) -> (i32, i32) {
    %c0_i32 = arith.constant 0 : i32
    %c0_i32_0 = arith.constant 0 : i32
    return %arg0, %c0_i32 : i32, i32
  }
  func.func @transform_1(%arg0: i32) -> (i32, i32) {
    %c0_i32 = arith.constant 0 : i32
    %c0_i32_0 = arith.constant 0 : i32
    return %arg0, %c0_i32 : i32, i32
  }
  func.func @transform_2(%arg0: i32) -> (i32, i32) {
    %c0_i32 = arith.constant 0 : i32
    %c0_i32_0 = arith.constant 0 : i32
    %c0_i32_1 = arith.constant 0 : i32
    return %c0_i32, %c0_i32_0 : i32, i32
  }
  func.func @transform_3(%arg0: i32) -> (i32, i32) {
    %c0_i32 = arith.constant 0 : i32
    %c0_i32_0 = arith.constant 0 : i32
    %c0_i32_1 = arith.constant 0 : i32
    return %c0_i32, %c0_i32_0 : i32, i32
  }
  func.func @transform_4(%arg0: i32) -> (i32, i32) {
    %c0_i32 = arith.constant 0 : i32
    %c0_i32_0 = arith.constant 0 : i32
    %c0_i32_1 = arith.constant 0 : i32
    return %c0_i32, %c0_i32_0 : i32, i32
  }
  func.func @transform_5(%arg0: i32) -> (i32, i32) {
    %c0_i32 = arith.constant 0 : i32
    %c0_i32_0 = arith.constant 0 : i32
    %c0_i32_1 = arith.constant 0 : i32
    return %c0_i32, %c0_i32_0 : i32, i32
  }
  func.func @transform_6(%arg0: i32) -> (i32, i32) {
    %c0_i32 = arith.constant 0 : i32
    %c0_i32_0 = arith.constant 0 : i32
    %c0_i32_1 = arith.constant 0 : i32
    return %c0_i32, %c0_i32_0 : i32, i32
  }
  func.func @transform_7(%arg0: i32) -> (i32, i32) {
    %c0_i32 = arith.constant 0 : i32
    %c0_i32_0 = arith.constant 0 : i32
    return %arg0, %c0_i32 : i32, i32
  }
}

</mosaic_0001>

<llo_original>
// kernel: timing_gcn_forward.9
$region0: #{timing_gcn_forward.9}
  #allocation0 [shape = 'u32[]', space=smem, size = 0x4, offset = 0x4, fixed_abs, tag = 'smem constant byte address 0x4 - core index']
  #allocation1 [shape = 'u32[144,128]{1,0:T(1,128)}', space=vmem, size = 0x12000, scoped, tag = 'internal scratch']
  %s0 = inlined_call_operand.vmem [shape: bf16[16,10], index: 0, kind: input, shape index: {}]
  %s1 = inlined_call_operand.vmem [shape: bf16[16,32], index: 1, kind: input, shape index: {}]
  %s2 = inlined_call_operand.vmem [shape: bf16[10,64], index: 2, kind: input, shape index: {}]
  %s3 = inlined_call_operand.vmem [shape: bf16[32,64], index: 3, kind: input, shape index: {}]
  %s4 = inlined_call_operand.vmem [shape: f32[1,64], index: 4, kind: input, shape index: {}]
  %s5 = inlined_call_operand.vmem [shape: bf16[64,128], index: 5, kind: input, shape index: {}]
  %s6 = inlined_call_operand.vmem [shape: f32[1,128], index: 6, kind: input, shape index: {}]
  %s7 = inlined_call_operand.vmem [shape: bf16[16,128], index: 7, kind: output, shape index: {}]
  %s8 = sld [smem:[#allocation0]]
  $region38: #{timing_gcn_forward.9} parent=0
    _
  %s10 = ssub.s32 1, %s8
  %s11 = scalar_select 0, %s10, %s8
  // Predicated region
  $region2: #{timing_gcn_forward.9} parent=0 // pred_check
    _
  $region3: #{timing_gcn_forward.9} parent=0 // pred_check_branch
    %13 = sbr.rel (0) target = $region5
  $region4: #{timing_gcn_forward.9} parent=0 // pred_region
    _
  $region5: #{timing_gcn_forward.9} parent=0 // pred_fallthru
    _
  // Predicated region
  $region6: #{timing_gcn_forward.9} parent=0 // pred_check
    _
  $region7: #{timing_gcn_forward.9} parent=0 // pred_check_branch
    %15 = sbr.rel (0) target = $region9
  $region8: #{timing_gcn_forward.9} parent=0 // pred_region
    _
  $region9: #{timing_gcn_forward.9} parent=0 // pred_fallthru
    _
  // Predicated region
  $region10: #{timing_gcn_forward.9} parent=0 // pred_check
    _
  $region11: #{timing_gcn_forward.9} parent=0 // pred_check_branch
    %17 = sbr.rel (0) target = $region13
  $region12: #{timing_gcn_forward.9} parent=0 // pred_region
    _
  $region13: #{timing_gcn_forward.9} parent=0 // pred_fallthru
    _
  // Predicated region
  $region14: #{timing_gcn_forward.9} parent=0 // pred_check
    _
  $region15: #{timing_gcn_forward.9} parent=0 // pred_check_branch
    %19 = sbr.rel (0) target = $region17
  $region16: #{timing_gcn_forward.9} parent=0 // pred_region
    _
  $region17: #{timing_gcn_forward.9} parent=0 // pred_fallthru
    _
  // Predicated region
  $region18: #{timing_gcn_forward.9} parent=0 // pred_check
    _
  $region19: #{timing_gcn_forward.9} parent=0 // pred_check_branch
    %21 = sbr.rel (0) target = $region21
  $region20: #{timing_gcn_forward.9} parent=0 // pred_region
    _
  $region21: #{timing_gcn_forward.9} parent=0 // pred_fallthru
    _
  // Predicated region
  $region22: #{timing_gcn_forward.9} parent=0 // pred_check
    _
  $region23: #{timing_gcn_forward.9} parent=0 // pred_check_branch
    %23 = sbr.rel (0) target = $region25
  $region24: #{timing_gcn_forward.9} parent=0 // pred_region
    _
  $region25: #{timing_gcn_forward.9} parent=0 // pred_fallthru
    _
  // Predicated region
  $region26: #{timing_gcn_forward.9} parent=0 // pred_check
    _
  $region27: #{timing_gcn_forward.9} parent=0 // pred_check_branch
    %25 = sbr.rel (0) target = $region29
  $region28: #{timing_gcn_forward.9} parent=0 // pred_region
    _
  $region29: #{timing_gcn_forward.9} parent=0 // pred_fallthru
    _
  %v27 = vld [vmem:[%s0] sm:$0xf]
  %v28 = vld [vmem:[%s0 + $0x4] sm:$0xf]
  %v29 = vld [vmem:[%s2] sm:$0xf]
  %v30 = vld [vmem:[%s2 + $0x4] sm:$0x1]
  %v31 = vld [vmem:[%s1] sm:$0xf]
  %v32 = vld [vmem:[%s1 + $0x4] sm:$0xf]
  %v33 = vld [vmem:[%s3] sm:$0xf]
  %v34 = vld [vmem:[%s3 + $0x4] sm:$0xf]
  %v35 = vld [vmem:[%s3 + $0x8] sm:$0xf]
  %v36 = vld [vmem:[%s3 + $0xc] sm:$0xf]
  %v39 = vunpack.c.l.b16 %v31
  %v40 = vunpack.c.l.b16 %v32
  %v41 = vpack.c.b16 %v40, %v39
  %v46 = vunpack.c.l.b16 %v33
  %v47 = vunpack.c.l.b16 %v34
  %v48 = vunpack.c.l.b16 %v35
  %v49 = vunpack.c.l.b16 %v36
  %v50 = vpack.c.b16 %v47, %v46
  %v51 = vpack.c.b16 %v49, %v48
  %vm54 = vcmask 261120
  %v56 = vsel %vm54, %v41, 0
  %58 = vmatprep.subr.bf16.mxu0 0
  %59 = vmatpush1.bf16.msra.mxu0 0
  %60 = vmatprep.subr.bf16.mxu0 0
  %61 = vmatpush1.bf16.msra.mxu0 0
  %62 = vmatprep.subr.bf16.mxu0 0
  %63 = vmatpush1.bf16.msra.mxu0 0
  %64 = vmatprep.subr.bf16.mxu0 0
  %65 = vmatpush1.bf16.msra.mxu0 0
  %66 = vmatprep.subr.bf16.mxu0 0
  %67 = vmatpush1.bf16.msra.mxu0 0
  %68 = vmatprep.subr.bf16.mxu0 0
  %69 = vmatpush1.bf16.msra.mxu0 0
  %70 = vmatprep.subr.bf16.mxu0 0
  %71 = vmatpush1.bf16.msra.mxu0 %v51
  %72 = vmatprep.subr.bf16.mxu0 0
  %73 = vmatpush1.bf16.msra.mxu0 %v50
  %74 = vmatprep.subr.bf16.mxu0 0
  %75 = vmatpush2.bf16.msra.mxu0 0
  %76 = vmatprep.subr.bf16.mxu0 0
  %77 = vmatpush2.bf16.msra.mxu0 0
  %78 = vmatprep.subr.bf16.mxu0 0
  %79 = vmatpush2.bf16.msra.mxu0 0
  %80 = vmatprep.subr.bf16.mxu0 0
  %81 = vmatpush2.bf16.msra.mxu0 0
  %82 = vmatprep.subr.bf16.mxu0 0
  %83 = vmatpush2.bf16.msra.mxu0 0
  %84 = vmatprep.subr.bf16.mxu0 0
  %85 = vmatpush2.bf16.msra.mxu0 0
  %86 = vmatprep.subr.bf16.mxu0 0
  %87 = vmatpush2.bf16.msra.mxu0 0
  %88 = vmatprep.subr.bf16.mxu0 0
  %89 = vmatpush2.bf16.msra.mxu0 0
  %90 = vmatprep.mubr.bf16.mxu0 0
  %91 = vmatmul.mubr.bf16.gmra.mxu0 %v56
  %v92 = vpop.f32.mrf.mxu0
  %v93 = vadd.f32 0.0, %v92
  %v94 = vpop.f32.mrf.mxu0
  %v95 = vpop.f32.mrf.mxu0
  %v96 = vadd.f32 0.0, %v95
  %v97 = vpop.f32.mrf.mxu0
  %98 = vdwg.mxu0
  %v101 = vunpack.c.l.b16 %v27
  %v102 = vunpack.c.l.b16 %v28
  %v103 = vpack.c.b16 %v102, %v101
  %v106 = vunpack.c.l.b16 %v29
  %v107 = vunpack.c.l.b16 %v30
  %v108 = vpack.c.b16 %v107, %v106
  %vm109 = vcmask 80896
  %v111 = vsel %vm109, %v103, 0
  %vm113 = vcmask 1044480
  %v115 = vsel %vm113, %v108, 0
  %117 = vmatprep.subr.bf16.mxu0 0
  %118 = vmatpush1.bf16.msra.mxu0 0
  %119 = vmatprep.subr.bf16.mxu0 0
  %120 = vmatpush1.bf16.msra.mxu0 0
  %121 = vmatprep.subr.bf16.mxu0 0
  %122 = vmatpush1.bf16.msra.mxu0 0
  %123 = vmatprep.subr.bf16.mxu0 0
  %124 = vmatpush1.bf16.msra.mxu0 0
  %125 = vmatprep.subr.bf16.mxu0 0
  %126 = vmatpush1.bf16.msra.mxu0 0
  %127 = vmatprep.subr.bf16.mxu0 0
  %128 = vmatpush1.bf16.msra.mxu0 0
  %129 = vmatprep.subr.bf16.mxu0 0
  %130 = vmatpush1.bf16.msra.mxu0 0
  %131 = vmatprep.subr.bf16.mxu0 0
  %132 = vmatpush1.bf16.msra.mxu0 %v115
  %133 = vmatprep.subr.bf16.mxu0 0
  %134 = vmatpush2.bf16.msra.mxu0 0
  %135 = vmatprep.subr.bf16.mxu0 0
  %136 = vmatpush2.bf16.msra.mxu0 0
  %137 = vmatprep.subr.bf16.mxu0 0
  %138 = vmatpush2.bf16.msra.mxu0 0
  %139 = vmatprep.subr.bf16.mxu0 0
  %140 = vmatpush2.bf16.msra.mxu0 0
  %141 = vmatprep.subr.bf16.mxu0 0
  %142 = vmatpush2.bf16.msra.mxu0 0
  %143 = vmatprep.subr.bf16.mxu0 0
  %144 = vmatpush2.bf16.msra.mxu0 0
  %145 = vmatprep.subr.bf16.mxu0 0
  %146 = vmatpush2.bf16.msra.mxu0 0
  %147 = vmatprep.subr.bf16.mxu0 0
  %148 = vmatpush2.bf16.msra.mxu0 0
  %149 = vmatprep.mubr.bf16.mxu0 0
  %150 = vmatmul.mubr.bf16.gmra.mxu0 %v111
  %v151 = vpop.f32.mrf.mxu0
  %v152 = vadd.f32 %v93, %v151
  %v153 = vpop.f32.mrf.mxu0
  %v154 = vpop.f32.mrf.mxu0
  %v155 = vadd.f32 %v96, %v154
  %v156 = vpop.f32.mrf.mxu0
  %157 = vdwg.mxu0
  %v158 = vld [vmem:[%s4] sm:$0x1]
  %v160 = vlaneseq
  %v161 = vshrl.u32 %v160, 7
  %v162 = vsub.s32 0, %v161
  %v163 = vrot.slane %v158, %v162
  %v165 = vadd.f32 %v152, %v163
  %v166 = vadd.f32 %v155, %v163
  %vm167 = vcmp.gt.f32.partialorder %v165, 0.0
  %vm168 = vcmp.gt.f32.partialorder %v166, 0.0
  %v169 = vmul.f32 %v165, 0.2
  %v170 = vmul.f32 %v166, 0.2
  %v171 = vsel %vm167, %v165, %v169
  %v172 = vsel %vm168, %v166, %v170
  %v173 = vpack.c.bf16 %v172, %v171
  %v174 = vld [vmem:[%s5] sm:$0xf]
  %v175 = vld [vmem:[%s5 + $0x4] sm:$0xf]
  %v176 = vld [vmem:[%s5 + $0x8] sm:$0xf]
  %v177 = vld [vmem:[%s5 + $0xc] sm:$0xf]
  %v178 = vld [vmem:[%s5 + $0x10] sm:$0xf]
  %v179 = vld [vmem:[%s5 + $0x14] sm:$0xf]
  %v180 = vld [vmem:[%s5 + $0x18] sm:$0xf]
  %v181 = vld [vmem:[%s5 + $0x1c] sm:$0xf]
  %v182 = vld [vmem:[%s6] sm:$0x1]
  %v184 = vlaneseq
  %v185 = vshrl.u32 %v184, 7
  %v186 = vsub.s32 0, %v185
  %v187 = vrot.slane %v182, %v186
  %v197 = vunpack.c.l.b16 %v174
  %v198 = vunpack.c.l.b16 %v175
  %v199 = vunpack.c.l.b16 %v176
  %v200 = vunpack.c.l.b16 %v177
  %v201 = vunpack.c.l.b16 %v178
  %v202 = vunpack.c.l.b16 %v179
  %v203 = vunpack.c.l.b16 %v180
  %v204 = vunpack.c.l.b16 %v181
  %v205 = vpack.c.b16 %v198, %v197
  %v206 = vpack.c.b16 %v200, %v199
  %v207 = vpack.c.b16 %v202, %v201
  %v208 = vpack.c.b16 %v204, %v203
  %vm213 = vcmask 523264
  %v215 = vsel %vm213, %v173, 0
  %217 = vmatprep.subr.bf16.mxu0 0
  %218 = vmatpush1.bf16.msra.mxu0 0
  %219 = vmatprep.subr.bf16.mxu0 0
  %220 = vmatpush1.bf16.msra.mxu0 0
  %221 = vmatprep.subr.bf16.mxu0 0
  %222 = vmatpush1.bf16.msra.mxu0 0
  %223 = vmatprep.subr.bf16.mxu0 0
  %224 = vmatpush1.bf16.msra.mxu0 0
  %225 = vmatprep.subr.bf16.mxu0 0
  %226 = vmatpush1.bf16.msra.mxu0 %v208
  %227 = vmatprep.subr.bf16.mxu0 0
  %228 = vmatpush1.bf16.msra.mxu0 %v207
  %229 = vmatprep.subr.bf16.mxu0 0
  %230 = vmatpush1.bf16.msra.mxu0 %v206
  %231 = vmatprep.subr.bf16.mxu0 0
  %232 = vmatpush1.bf16.msra.mxu0 %v205
  %233 = vmatprep.subr.bf16.mxu0 0
  %234 = vmatpush2.bf16.msra.mxu0 0
  %235 = vmatprep.subr.bf16.mxu0 0
  %236 = vmatpush2.bf16.msra.mxu0 0
  %237 = vmatprep.subr.bf16.mxu0 0
  %238 = vmatpush2.bf16.msra.mxu0 0
  %239 = vmatprep.subr.bf16.mxu0 0
  %240 = vmatpush2.bf16.msra.mxu0 0
  %241 = vmatprep.subr.bf16.mxu0 0
  %242 = vmatpush2.bf16.msra.mxu0 0
  %243 = vmatprep.subr.bf16.mxu0 0
  %244 = vmatpush2.bf16.msra.mxu0 0
  %245 = vmatprep.subr.bf16.mxu0 0
  %246 = vmatpush2.bf16.msra.mxu0 0
  %247 = vmatprep.subr.bf16.mxu0 0
  %248 = vmatpush2.bf16.msra.mxu0 0
  %249 = vmatprep.mubr.bf16.mxu0 0
  %250 = vmatmul.mubr.bf16.gmra.mxu0 %v215
  %v251 = vpop.f32.mrf.mxu0
  %v252 = vadd.f32 %v187, %v251
  %v253 = vpop.f32.mrf.mxu0
  %v254 = vpop.f32.mrf.mxu0
  %v255 = vadd.f32 %v187, %v254
  %v256 = vpop.f32.mrf.mxu0
  %257 = vdwg.mxu0
  %v258 = vmax.f32 %v252, 0.0
  %v259 = vmax.f32 %v255, 0.0
  %v260 = vpack.c.bf16 %v259, %v258
  %v262 = vunpack.c.l.b16 %v260
  %v263 = vunpack.c.h.b16 %v260
  %v264 = vpack.c.b16 %v262, %v262
  %v265 = vpack.c.b16 %v263, %v263
  %268 = vst [vmem:[%s7] sm:$0xf] %v264
  %269 = vst [vmem:[%s7 + $0x4] sm:$0xf] %v265
  // Predicated region
  $region30: #{timing_gcn_forward.9} parent=0 // pred_check
    _
  $region31: #{timing_gcn_forward.9} parent=0 // pred_check_branch
    %271 = sbr.rel (0) target = $region33
  $region32: #{timing_gcn_forward.9} parent=0 // pred_region
    _
  $region33: #{timing_gcn_forward.9} parent=0 // pred_fallthru
    _
  // Predicated region
  $region34: #{timing_gcn_forward.9} parent=0 // pred_check
    _
  $region35: #{timing_gcn_forward.9} parent=0 // pred_check_branch
    %273 = sbr.rel (0) target = $region37
  $region36: #{timing_gcn_forward.9} parent=0 // pred_region
    _
  $region37: #{timing_gcn_forward.9} parent=0 // pred_fallthru
    _

// kernel: timing_gcn_forward.8
$region0: #{timing_gcn_forward.8}
  #allocation0 [shape = 'u32[]', space=smem, size = 0x4, offset = 0x4, fixed_abs, tag = 'smem constant byte address 0x4 - core index']
  #allocation1 [shape = 'u32[144,128]{1,0:T(1,128)}', space=vmem, size = 0x12000, scoped, tag = 'internal scratch']
  %s0 = inlined_call_operand.vmem [shape: bf16[32,20], index: 0, kind: input, shape index: {}]
  %s1 = inlined_call_operand.vmem [shape: bf16[32,64], index: 1, kind: input, shape index: {}]
  %s2 = inlined_call_operand.vmem [shape: bf16[20,64], index: 2, kind: input, shape index: {}]
  %s3 = inlined_call_operand.vmem [shape: f32[1,64], index: 3, kind: input, shape index: {}]
  %s4 = inlined_call_operand.vmem [shape: bf16[64,32], index: 4, kind: input, shape index: {}]
  %s5 = inlined_call_operand.vmem [shape: f32[1,32], index: 5, kind: input, shape index: {}]
  %s6 = inlined_call_operand.vmem [shape: bf16[32,32], index: 6, kind: output, shape index: {}]
  %s7 = sld [smem:[#allocation0]]
  $region34: #{timing_gcn_forward.8} parent=0
    _
  %s9 = ssub.s32 1, %s7
  %s10 = scalar_select 0, %s9, %s7
  // Predicated region
  $region2: #{timing_gcn_forward.8} parent=0 // pred_check
    _
  $region3: #{timing_gcn_forward.8} parent=0 // pred_check_branch
    %12 = sbr.rel (0) target = $region5
  $region4: #{timing_gcn_forward.8} parent=0 // pred_region
    _
  $region5: #{timing_gcn_forward.8} parent=0 // pred_fallthru
    _
  // Predicated region
  $region6: #{timing_gcn_forward.8} parent=0 // pred_check
    _
  $region7: #{timing_gcn_forward.8} parent=0 // pred_check_branch
    %14 = sbr.rel (0) target = $region9
  $region8: #{timing_gcn_forward.8} parent=0 // pred_region
    _
  $region9: #{timing_gcn_forward.8} parent=0 // pred_fallthru
    _
  // Predicated region
  $region10: #{timing_gcn_forward.8} parent=0 // pred_check
    _
  $region11: #{timing_gcn_forward.8} parent=0 // pred_check_branch
    %16 = sbr.rel (0) target = $region13
  $region12: #{timing_gcn_forward.8} parent=0 // pred_region
    _
  $region13: #{timing_gcn_forward.8} parent=0 // pred_fallthru
    _
  // Predicated region
  $region14: #{timing_gcn_forward.8} parent=0 // pred_check
    _
  $region15: #{timing_gcn_forward.8} parent=0 // pred_check_branch
    %18 = sbr.rel (0) target = $region17
  $region16: #{timing_gcn_forward.8} parent=0 // pred_region
    _
  $region17: #{timing_gcn_forward.8} parent=0 // pred_fallthru
    _
  // Predicated region
  $region18: #{timing_gcn_forward.8} parent=0 // pred_check
    _
  $region19: #{timing_gcn_forward.8} parent=0 // pred_check_branch
    %20 = sbr.rel (0) target = $region21
  $region20: #{timing_gcn_forward.8} parent=0 // pred_region
    _
  $region21: #{timing_gcn_forward.8} parent=0 // pred_fallthru
    _
  // Predicated region
  $region22: #{timing_gcn_forward.8} parent=0 // pred_check
    _
  $region23: #{timing_gcn_forward.8} parent=0 // pred_check_branch
    %22 = sbr.rel (0) target = $region25
  $region24: #{timing_gcn_forward.8} parent=0 // pred_region
    _
  $region25: #{timing_gcn_forward.8} parent=0 // pred_fallthru
    _
  %v24 = vld [vmem:[%s0] sm:$0xf]
  %v25 = vld [vmem:[%s0 + $0x4] sm:$0xf]
  %v26 = vld [vmem:[%s0 + $0x8] sm:$0xf]
  %v27 = vld [vmem:[%s0 + $0xc] sm:$0xf]
  %v28 = vld [vmem:[%s2] sm:$0xf]
  %v29 = vld [vmem:[%s2 + $0x4] sm:$0xf]
  %v30 = vld [vmem:[%s2 + $0x8] sm:$0x3]
  %v31 = vld [vmem:[%s1] sm:$0xf]
  %v32 = vld [vmem:[%s1 + $0x4] sm:$0xf]
  %v33 = vld [vmem:[%s1 + $0x8] sm:$0xf]
  %v34 = vld [vmem:[%s1 + $0xc] sm:$0xf]
  %v35 = vunpack.c.l.bf16 %v31
  %v36 = vunpack.c.l.bf16 %v32
  %v37 = vunpack.c.l.bf16 %v33
  %v38 = vunpack.c.l.bf16 %v34
  %v43 = vunpack.c.l.b16 %v24
  %v44 = vunpack.c.l.b16 %v25
  %v45 = vunpack.c.l.b16 %v26
  %v46 = vunpack.c.l.b16 %v27
  %v47 = vpack.c.b16 %v44, %v43
  %v48 = vpack.c.b16 %v46, %v45
  %v52 = vunpack.c.l.b16 %v28
  %v53 = vunpack.c.l.b16 %v29
  %v54 = vunpack.c.l.b16 %v30
  %v55 = vpack.c.b16 %v53, %v52
  %v56 = vpack.c.b16 %v54, %v54
  %vm58 = vcmask 162816
  %v60 = vsel %vm58, %v47, 0
  %v63 = vsel %vm58, %v48, 0
  %vm65 = vcmask 1041408
  %v67 = vsel %vm65, %v56, 0
  %69 = vmatprep.subr.bf16.mxu0 0
  %70 = vmatpush1.bf16.msra.mxu0 0
  %71 = vmatprep.subr.bf16.mxu0 0
  %72 = vmatpush1.bf16.msra.mxu0 0
  %73 = vmatprep.subr.bf16.mxu0 0
  %74 = vmatpush1.bf16.msra.mxu0 0
  %75 = vmatprep.subr.bf16.mxu0 0
  %76 = vmatpush1.bf16.msra.mxu0 0
  %77 = vmatprep.subr.bf16.mxu0 0
  %78 = vmatpush1.bf16.msra.mxu0 0
  %79 = vmatprep.subr.bf16.mxu0 0
  %80 = vmatpush1.bf16.msra.mxu0 0
  %81 = vmatprep.subr.bf16.mxu0 0
  %82 = vmatpush1.bf16.msra.mxu0 %v67
  %83 = vmatprep.subr.bf16.mxu0 0
  %84 = vmatpush1.bf16.msra.mxu0 %v55
  %85 = vmatprep.subr.bf16.mxu0 0
  %86 = vmatpush2.bf16.msra.mxu0 0
  %87 = vmatprep.subr.bf16.mxu0 0
  %88 = vmatpush2.bf16.msra.mxu0 0
  %89 = vmatprep.subr.bf16.mxu0 0
  %90 = vmatpush2.bf16.msra.mxu0 0
  %91 = vmatprep.subr.bf16.mxu0 0
  %92 = vmatpush2.bf16.msra.mxu0 0
  %93 = vmatprep.subr.bf16.mxu0 0
  %94 = vmatpush2.bf16.msra.mxu0 0
  %95 = vmatprep.subr.bf16.mxu0 0
  %96 = vmatpush2.bf16.msra.mxu0 0
  %97 = vmatprep.subr.bf16.mxu0 0
  %98 = vmatpush2.bf16.msra.mxu0 0
  %99 = vmatprep.subr.bf16.mxu0 0
  %100 = vmatpush2.bf16.msra.mxu0 0
  %101 = vmatprep.mubr.bf16.mxu0 0
  %102 = vmatmul.mubr.bf16.gmra.mxu0 %v60
  %v103 = vpop.f32.mrf.mxu0
  %v104 = vadd.f32 %v35, %v103
  %v105 = vpop.f32.mrf.mxu0
  %v106 = vpop.f32.mrf.mxu0
  %v107 = vadd.f32 %v36, %v106
  %v108 = vpop.f32.mrf.mxu0
  %109 = vmatprep.mubr.bf16.mxu0 0
  %110 = vmatmul.mubr.bf16.gmra.mxu0 %v63
  %v111 = vpop.f32.mrf.mxu0
  %v112 = vadd.f32 %v37, %v111
  %v113 = vpop.f32.mrf.mxu0
  %v114 = vpop.f32.mrf.mxu0
  %v115 = vadd.f32 %v38, %v114
  %v116 = vpop.f32.mrf.mxu0
  %117 = vdwg.mxu0
  %v118 = vld [vmem:[%s3] sm:$0x1]
  %v120 = vlaneseq
  %v121 = vshrl.u32 %v120, 7
  %v122 = vsub.s32 0, %v121
  %v123 = vrot.slane %v118, %v122
  %v125 = vadd.f32 %v104, %v123
  %v126 = vadd.f32 %v107, %v123
  %v127 = vadd.f32 %v112, %v123
  %v128 = vadd.f32 %v115, %v123
  %vm129 = vcmp.gt.f32.partialorder %v125, 0.0
  %vm130 = vcmp.gt.f32.partialorder %v126, 0.0
  %vm131 = vcmp.gt.f32.partialorder %v127, 0.0
  %vm132 = vcmp.gt.f32.partialorder %v128, 0.0
  %v133 = vmul.f32 %v125, 0.2
  %v134 = vmul.f32 %v126, 0.2
  %v135 = vmul.f32 %v127, 0.2
  %v136 = vmul.f32 %v128, 0.2
  %v137 = vsel %vm129, %v125, %v133
  %v138 = vsel %vm130, %v126, %v134
  %v139 = vsel %vm131, %v127, %v135
  %v140 = vsel %vm132, %v128, %v136
  %v141 = vpack.c.bf16 %v138, %v137
  %v142 = vpack.c.bf16 %v140, %v139
  %v143 = vld [vmem:[%s4] sm:$0xf]
  %v144 = vld [vmem:[%s4 + $0x4] sm:$0xf]
  %v145 = vld [vmem:[%s4 + $0x8] sm:$0xf]
  %v146 = vld [vmem:[%s4 + $0xc] sm:$0xf]
  %v147 = vld [vmem:[%s4 + $0x10] sm:$0xf]
  %v148 = vld [vmem:[%s4 + $0x14] sm:$0xf]
  %v149 = vld [vmem:[%s4 + $0x18] sm:$0xf]
  %v150 = vld [vmem:[%s4 + $0x1c] sm:$0xf]
  %v151 = vld [vmem:[%s5] sm:$0x1]
  %v153 = vlaneseq
  %v154 = vshrl.u32 %v153, 7
  %v155 = vsub.s32 0, %v154
  %v156 = vrot.slane %v151, %v155
  %v166 = vunpack.c.l.b16 %v143
  %v167 = vunpack.c.l.b16 %v144
  %v168 = vunpack.c.l.b16 %v145
  %v169 = vunpack.c.l.b16 %v146
  %v170 = vunpack.c.l.b16 %v147
  %v171 = vunpack.c.l.b16 %v148
  %v172 = vunpack.c.l.b16 %v149
  %v173 = vunpack.c.l.b16 %v150
  %v174 = vpack.c.b16 %v167, %v166
  %v175 = vpack.c.b16 %v169, %v168
  %v176 = vpack.c.b16 %v171, %v170
  %v177 = vpack.c.b16 %v173, %v172
  %vm182 = vcmask 523264
  %v184 = vsel %vm182, %v141, 0
  %v187 = vsel %vm182, %v142, 0
  %189 = vmatprep.subr.bf16.mxu0 0
  %190 = vmatpush1.bf16.msra.mxu0 0
  %191 = vmatprep.subr.bf16.mxu0 0
  %192 = vmatpush1.bf16.msra.mxu0 0
  %193 = vmatprep.subr.bf16.mxu0 0
  %194 = vmatpush1.bf16.msra.mxu0 0
  %195 = vmatprep.subr.bf16.mxu0 0
  %196 = vmatpush1.bf16.msra.mxu0 0
  %197 = vmatprep.subr.bf16.mxu0 0
  %198 = vmatpush1.bf16.msra.mxu0 %v177
  %199 = vmatprep.subr.bf16.mxu0 0
  %200 = vmatpush1.bf16.msra.mxu0 %v176
  %201 = vmatprep.subr.bf16.mxu0 0
  %202 = vmatpush1.bf16.msra.mxu0 %v175
  %203 = vmatprep.subr.bf16.mxu0 0
  %204 = vmatpush1.bf16.msra.mxu0 %v174
  %205 = vmatprep.subr.bf16.mxu0 0
  %206 = vmatpush2.bf16.msra.mxu0 0
  %207 = vmatprep.subr.bf16.mxu0 0
  %208 = vmatpush2.bf16.msra.mxu0 0
  %209 = vmatprep.subr.bf16.mxu0 0
  %210 = vmatpush2.bf16.msra.mxu0 0
  %211 = vmatprep.subr.bf16.mxu0 0
  %212 = vmatpush2.bf16.msra.mxu0 0
  %213 = vmatprep.subr.bf16.mxu0 0
  %214 = vmatpush2.bf16.msra.mxu0 0
  %215 = vmatprep.subr.bf16.mxu0 0
  %216 = vmatpush2.bf16.msra.mxu0 0
  %217 = vmatprep.subr.bf16.mxu0 0
  %218 = vmatpush2.bf16.msra.mxu0 0
  %219 = vmatprep.subr.bf16.mxu0 0
  %220 = vmatpush2.bf16.msra.mxu0 0
  %221 = vmatprep.mubr.bf16.mxu0 0
  %222 = vmatmul.mubr.bf16.gmra.mxu0 %v184
  %v223 = vpop.f32.mrf.mxu0
  %v224 = vadd.f32 %v156, %v223
  %v225 = vpop.f32.mrf.mxu0
  %v226 = vpop.f32.mrf.mxu0
  %v227 = vadd.f32 %v156, %v226
  %v228 = vpop.f32.mrf.mxu0
  %229 = vmatprep.mubr.bf16.mxu0 0
  %230 = vmatmul.mubr.bf16.gmra.mxu0 %v187
  %v231 = vpop.f32.mrf.mxu0
  %v232 = vadd.f32 %v156, %v231
  %v233 = vpop.f32.mrf.mxu0
  %v234 = vpop.f32.mrf.mxu0
  %v235 = vadd.f32 %v156, %v234
  %v236 = vpop.f32.mrf.mxu0
  %237 = vdwg.mxu0
  %v238 = vpack.c.bf16 %v227, %v224
  %v239 = vpack.c.bf16 %v235, %v232
  %v242 = vunpack.c.l.b16 %v238
  %v243 = vunpack.c.h.b16 %v238
  %v244 = vunpack.c.l.b16 %v239
  %v245 = vunpack.c.h.b16 %v239
  %v246 = vpack.c.b16 %v242, %v242
  %v247 = vpack.c.b16 %v243, %v243
  %v248 = vpack.c.b16 %v244, %v244
  %v249 = vpack.c.b16 %v245, %v245
  %vm254 = vcmask 257024
  %255 = vst.msk [vmem:[%s6] sm:$0xf] %vm254, %v246
  %256 = vst.msk [vmem:[%s6 + $0x4] sm:$0xf] %vm254, %v247
  %257 = vst.msk [vmem:[%s6 + $0x8] sm:$0xf] %vm254, %v248
  %258 = vst.msk [vmem:[%s6 + $0xc] sm:$0xf] %vm254, %v249
  // Predicated region
  $region26: #{timing_gcn_forward.8} parent=0 // pred_check
    _
  $region27: #{timing_gcn_forward.8} parent=0 // pred_check_branch
    %260 = sbr.rel (0) target = $region29
  $region28: #{timing_gcn_forward.8} parent=0 // pred_region
    _
  $region29: #{timing_gcn_forward.8} parent=0 // pred_fallthru
    _
  // Predicated region
  $region30: #{timing_gcn_forward.8} parent=0 // pred_check
    _
  $region31: #{timing_gcn_forward.8} parent=0 // pred_check_branch
    %262 = sbr.rel (0) target = $region33
  $region32: #{timing_gcn_forward.8} parent=0 // pred_region
    _
  $region33: #{timing_gcn_forward.8} parent=0 // pred_fallthru
    _

// kernel: timing_gcn_forward.10
$region0: #{timing_gcn_forward.10}
  #allocation0 [shape = 'u32[]', space=smem, size = 0x4, offset = 0x4, fixed_abs, tag = 'smem constant byte address 0x4 - core index']
  #allocation1 [shape = 'u32[144,128]{1,0:T(1,128)}', space=vmem, size = 0x12000, scoped, tag = 'internal scratch']
  %s0 = inlined_call_operand.vmem [shape: bf16[32,64], index: 0, kind: input, shape index: {}]
  %s1 = inlined_call_operand.vmem [shape: bf16[32,64], index: 1, kind: input, shape index: {}]
  %s2 = inlined_call_operand.vmem [shape: bf16[64,64], index: 2, kind: input, shape index: {}]
  %s3 = inlined_call_operand.vmem [shape: f32[1,64], index: 3, kind: input, shape index: {}]
  %s4 = inlined_call_operand.vmem [shape: bf16[64,16], index: 4, kind: input, shape index: {}]
  %s5 = inlined_call_operand.vmem [shape: f32[1,16], index: 5, kind: input, shape index: {}]
  %s6 = inlined_call_operand.vmem [shape: bf16[32,16], index: 6, kind: output, shape index: {}]
  %s7 = sld [smem:[#allocation0]]
  $region34: #{timing_gcn_forward.10} parent=0
    _
  %s9 = ssub.s32 1, %s7
  %s10 = scalar_select 0, %s9, %s7
  // Predicated region
  $region2: #{timing_gcn_forward.10} parent=0 // pred_check
    _
  $region3: #{timing_gcn_forward.10} parent=0 // pred_check_branch
    %12 = sbr.rel (0) target = $region5
  $region4: #{timing_gcn_forward.10} parent=0 // pred_region
    _
  $region5: #{timing_gcn_forward.10} parent=0 // pred_fallthru
    _
  // Predicated region
  $region6: #{timing_gcn_forward.10} parent=0 // pred_check
    _
  $region7: #{timing_gcn_forward.10} parent=0 // pred_check_branch
    %14 = sbr.rel (0) target = $region9
  $region8: #{timing_gcn_forward.10} parent=0 // pred_region
    _
  $region9: #{timing_gcn_forward.10} parent=0 // pred_fallthru
    _
  // Predicated region
  $region10: #{timing_gcn_forward.10} parent=0 // pred_check
    _
  $region11: #{timing_gcn_forward.10} parent=0 // pred_check_branch
    %16 = sbr.rel (0) target = $region13
  $region12: #{timing_gcn_forward.10} parent=0 // pred_region
    _
  $region13: #{timing_gcn_forward.10} parent=0 // pred_fallthru
    _
  // Predicated region
  $region14: #{timing_gcn_forward.10} parent=0 // pred_check
    _
  $region15: #{timing_gcn_forward.10} parent=0 // pred_check_branch
    %18 = sbr.rel (0) target = $region17
  $region16: #{timing_gcn_forward.10} parent=0 // pred_region
    _
  $region17: #{timing_gcn_forward.10} parent=0 // pred_fallthru
    _
  // Predicated region
  $region18: #{timing_gcn_forward.10} parent=0 // pred_check
    _
  $region19: #{timing_gcn_forward.10} parent=0 // pred_check_branch
    %20 = sbr.rel (0) target = $region21
  $region20: #{timing_gcn_forward.10} parent=0 // pred_region
    _
  $region21: #{timing_gcn_forward.10} parent=0 // pred_fallthru
    _
  // Predicated region
  $region22: #{timing_gcn_forward.10} parent=0 // pred_check
    _
  $region23: #{timing_gcn_forward.10} parent=0 // pred_check_branch
    %22 = sbr.rel (0) target = $region25
  $region24: #{timing_gcn_forward.10} parent=0 // pred_region
    _
  $region25: #{timing_gcn_forward.10} parent=0 // pred_fallthru
    _
  %v24 = vld [vmem:[%s0] sm:$0xf]
  %v25 = vld [vmem:[%s0 + $0x4] sm:$0xf]
  %v26 = vld [vmem:[%s0 + $0x8] sm:$0xf]
  %v27 = vld [vmem:[%s0 + $0xc] sm:$0xf]
  %v28 = vld [vmem:[%s2] sm:$0xf]
  %v29 = vld [vmem:[%s2 + $0x4] sm:$0xf]
  %v30 = vld [vmem:[%s2 + $0x8] sm:$0xf]
  %v31 = vld [vmem:[%s2 + $0xc] sm:$0xf]
  %v32 = vld [vmem:[%s2 + $0x10] sm:$0xf]
  %v33 = vld [vmem:[%s2 + $0x14] sm:$0xf]
  %v34 = vld [vmem:[%s2 + $0x18] sm:$0xf]
  %v35 = vld [vmem:[%s2 + $0x1c] sm:$0xf]
  %v36 = vld [vmem:[%s1] sm:$0xf]
  %v37 = vld [vmem:[%s1 + $0x4] sm:$0xf]
  %v38 = vld [vmem:[%s1 + $0x8] sm:$0xf]
  %v39 = vld [vmem:[%s1 + $0xc] sm:$0xf]
  %v40 = vunpack.c.l.bf16 %v36
  %v41 = vunpack.c.l.bf16 %v37
  %v42 = vunpack.c.l.bf16 %v38
  %v43 = vunpack.c.l.bf16 %v39
  %v48 = vunpack.c.l.b16 %v24
  %v49 = vunpack.c.l.b16 %v25
  %v50 = vunpack.c.l.b16 %v26
  %v51 = vunpack.c.l.b16 %v27
  %v52 = vpack.c.b16 %v49, %v48
  %v53 = vpack.c.b16 %v51, %v50
  %v62 = vunpack.c.l.b16 %v28
  %v63 = vunpack.c.l.b16 %v29
  %v64 = vunpack.c.l.b16 %v30
  %v65 = vunpack.c.l.b16 %v31
  %v66 = vunpack.c.l.b16 %v32
  %v67 = vunpack.c.l.b16 %v33
  %v68 = vunpack.c.l.b16 %v34
  %v69 = vunpack.c.l.b16 %v35
  %v70 = vpack.c.b16 %v63, %v62
  %v71 = vpack.c.b16 %v65, %v64
  %v72 = vpack.c.b16 %v67, %v66
  %v73 = vpack.c.b16 %v69, %v68
  %vm78 = vcmask 523264
  %v80 = vsel %vm78, %v52, 0
  %v83 = vsel %vm78, %v53, 0
  %85 = vmatprep.subr.bf16.mxu0 0
  %86 = vmatpush1.bf16.msra.mxu0 0
  %87 = vmatprep.subr.bf16.mxu0 0
  %88 = vmatpush1.bf16.msra.mxu0 0
  %89 = vmatprep.subr.bf16.mxu0 0
  %90 = vmatpush1.bf16.msra.mxu0 0
  %91 = vmatprep.subr.bf16.mxu0 0
  %92 = vmatpush1.bf16.msra.mxu0 0
  %93 = vmatprep.subr.bf16.mxu0 0
  %94 = vmatpush1.bf16.msra.mxu0 %v73
  %95 = vmatprep.subr.bf16.mxu0 0
  %96 = vmatpush1.bf16.msra.mxu0 %v72
  %97 = vmatprep.subr.bf16.mxu0 0
  %98 = vmatpush1.bf16.msra.mxu0 %v71
  %99 = vmatprep.subr.bf16.mxu0 0
  %100 = vmatpush1.bf16.msra.mxu0 %v70
  %101 = vmatprep.subr.bf16.mxu0 0
  %102 = vmatpush2.bf16.msra.mxu0 0
  %103 = vmatprep.subr.bf16.mxu0 0
  %104 = vmatpush2.bf16.msra.mxu0 0
  %105 = vmatprep.subr.bf16.mxu0 0
  %106 = vmatpush2.bf16.msra.mxu0 0
  %107 = vmatprep.subr.bf16.mxu0 0
  %108 = vmatpush2.bf16.msra.mxu0 0
  %109 = vmatprep.subr.bf16.mxu0 0
  %110 = vmatpush2.bf16.msra.mxu0 0
  %111 = vmatprep.subr.bf16.mxu0 0
  %112 = vmatpush2.bf16.msra.mxu0 0
  %113 = vmatprep.subr.bf16.mxu0 0
  %114 = vmatpush2.bf16.msra.mxu0 0
  %115 = vmatprep.subr.bf16.mxu0 0
  %116 = vmatpush2.bf16.msra.mxu0 0
  %117 = vmatprep.mubr.bf16.mxu0 0
  %118 = vmatmul.mubr.bf16.gmra.mxu0 %v80
  %v119 = vpop.f32.mrf.mxu0
  %v120 = vadd.f32 %v40, %v119
  %v121 = vpop.f32.mrf.mxu0
  %v122 = vpop.f32.mrf.mxu0
  %v123 = vadd.f32 %v41, %v122
  %v124 = vpop.f32.mrf.mxu0
  %125 = vmatprep.mubr.bf16.mxu0 0
  %126 = vmatmul.mubr.bf16.gmra.mxu0 %v83
  %v127 = vpop.f32.mrf.mxu0
  %v128 = vadd.f32 %v42, %v127
  %v129 = vpop.f32.mrf.mxu0
  %v130 = vpop.f32.mrf.mxu0
  %v131 = vadd.f32 %v43, %v130
  %v132 = vpop.f32.mrf.mxu0
  %133 = vdwg.mxu0
  %v134 = vld [vmem:[%s3] sm:$0x1]
  %v136 = vlaneseq
  %v137 = vshrl.u32 %v136, 7
  %v138 = vsub.s32 0, %v137
  %v139 = vrot.slane %v134, %v138
  %v141 = vadd.f32 %v120, %v139
  %v142 = vadd.f32 %v123, %v139
  %v143 = vadd.f32 %v128, %v139
  %v144 = vadd.f32 %v131, %v139
  %vm145 = vcmp.gt.f32.partialorder %v141, 0.0
  %vm146 = vcmp.gt.f32.partialorder %v142, 0.0
  %vm147 = vcmp.gt.f32.partialorder %v143, 0.0
  %vm148 = vcmp.gt.f32.partialorder %v144, 0.0
  %v149 = vmul.f32 %v141, 0.2
  %v150 = vmul.f32 %v142, 0.2
  %v151 = vmul.f32 %v143, 0.2
  %v152 = vmul.f32 %v144, 0.2
  %v153 = vsel %vm145, %v141, %v149
  %v154 = vsel %vm146, %v142, %v150
  %v155 = vsel %vm147, %v143, %v151
  %v156 = vsel %vm148, %v144, %v152
  %v157 = vpack.c.bf16 %v154, %v153
  %v158 = vpack.c.bf16 %v156, %v155
  %v159 = vld [vmem:[%s4] sm:$0xf]
  %v160 = vld [vmem:[%s4 + $0x4] sm:$0xf]
  %v161 = vld [vmem:[%s4 + $0x8] sm:$0xf]
  %v162 = vld [vmem:[%s4 + $0xc] sm:$0xf]
  %v163 = vld [vmem:[%s4 + $0x10] sm:$0xf]
  %v164 = vld [vmem:[%s4 + $0x14] sm:$0xf]
  %v165 = vld [vmem:[%s4 + $0x18] sm:$0xf]
  %v166 = vld [vmem:[%s4 + $0x1c] sm:$0xf]
  %v167 = vld [vmem:[%s5] sm:$0x1]
  %v169 = vlaneseq
  %v170 = vshrl.u32 %v169, 7
  %v171 = vsub.s32 0, %v170
  %v172 = vrot.slane %v167, %v171
  %v182 = vunpack.c.l.b16 %v159
  %v183 = vunpack.c.l.b16 %v160
  %v184 = vunpack.c.l.b16 %v161
  %v185 = vunpack.c.l.b16 %v162
  %v186 = vunpack.c.l.b16 %v163
  %v187 = vunpack.c.l.b16 %v164
  %v188 = vunpack.c.l.b16 %v165
  %v189 = vunpack.c.l.b16 %v166
  %v190 = vpack.c.b16 %v183, %v182
  %v191 = vpack.c.b16 %v185, %v184
  %v192 = vpack.c.b16 %v187, %v186
  %v193 = vpack.c.b16 %v189, %v188
  %v199 = vsel %vm78, %v157, 0
  %v202 = vsel %vm78, %v158, 0
  %204 = vmatprep.subr.bf16.mxu0 0
  %205 = vmatpush1.bf16.msra.mxu0 0
  %206 = vmatprep.subr.bf16.mxu0 0
  %207 = vmatpush1.bf16.msra.mxu0 0
  %208 = vmatprep.subr.bf16.mxu0 0
  %209 = vmatpush1.bf16.msra.mxu0 0
  %210 = vmatprep.subr.bf16.mxu0 0
  %211 = vmatpush1.bf16.msra.mxu0 0
  %212 = vmatprep.subr.bf16.mxu0 0
  %213 = vmatpush1.bf16.msra.mxu0 %v193
  %214 = vmatprep.subr.bf16.mxu0 0
  %215 = vmatpush1.bf16.msra.mxu0 %v192
  %216 = vmatprep.subr.bf16.mxu0 0
  %217 = vmatpush1.bf16.msra.mxu0 %v191
  %218 = vmatprep.subr.bf16.mxu0 0
  %219 = vmatpush1.bf16.msra.mxu0 %v190
  %220 = vmatprep.subr.bf16.mxu0 0
  %221 = vmatpush2.bf16.msra.mxu0 0
  %222 = vmatprep.subr.bf16.mxu0 0
  %223 = vmatpush2.bf16.msra.mxu0 0
  %224 = vmatprep.subr.bf16.mxu0 0
  %225 = vmatpush2.bf16.msra.mxu0 0
  %226 = vmatprep.subr.bf16.mxu0 0
  %227 = vmatpush2.bf16.msra.mxu0 0
  %228 = vmatprep.subr.bf16.mxu0 0
  %229 = vmatpush2.bf16.msra.mxu0 0
  %230 = vmatprep.subr.bf16.mxu0 0
  %231 = vmatpush2.bf16.msra.mxu0 0
  %232 = vmatprep.subr.bf16.mxu0 0
  %233 = vmatpush2.bf16.msra.mxu0 0
  %234 = vmatprep.subr.bf16.mxu0 0
  %235 = vmatpush2.bf16.msra.mxu0 0
  %236 = vmatprep.mubr.bf16.mxu0 0
  %237 = vmatmul.mubr.bf16.gmra.mxu0 %v199
  %v238 = vpop.f32.mrf.mxu0
  %v239 = vadd.f32 %v172, %v238
  %v240 = vpop.f32.mrf.mxu0
  %v241 = vpop.f32.mrf.mxu0
  %v242 = vadd.f32 %v172, %v241
  %v243 = vpop.f32.mrf.mxu0
  %244 = vmatprep.mubr.bf16.mxu0 0
  %245 = vmatmul.mubr.bf16.gmra.mxu0 %v202
  %v246 = vpop.f32.mrf.mxu0
  %v247 = vadd.f32 %v172, %v246
  %v248 = vpop.f32.mrf.mxu0
  %v249 = vpop.f32.mrf.mxu0
  %v250 = vadd.f32 %v172, %v249
  %v251 = vpop.f32.mrf.mxu0
  %252 = vdwg.mxu0
  %v253 = vpack.c.bf16 %v242, %v239
  %v254 = vpack.c.bf16 %v250, %v247
  %v257 = vunpack.c.l.b16 %v253
  %v258 = vunpack.c.h.b16 %v253
  %v259 = vunpack.c.l.b16 %v254
  %v260 = vunpack.c.h.b16 %v254
  %v261 = vpack.c.b16 %v257, %v257
  %v262 = vpack.c.b16 %v258, %v258
  %v263 = vpack.c.b16 %v259, %v259
  %v264 = vpack.c.b16 %v260, %v260
  %vm269 = vcmask 125952
  %270 = vst.msk [vmem:[%s6] sm:$0xf] %vm269, %v261
  %271 = vst.msk [vmem:[%s6 + $0x4] sm:$0xf] %vm269, %v262
  %272 = vst.msk [vmem:[%s6 + $0x8] sm:$0xf] %vm269, %v263
  %273 = vst.msk [vmem:[%s6 + $0xc] sm:$0xf] %vm269, %v264
  // Predicated region
  $region26: #{timing_gcn_forward.10} parent=0 // pred_check
    _
  $region27: #{timing_gcn_forward.10} parent=0 // pred_check_branch
    %275 = sbr.rel (0) target = $region29
  $region28: #{timing_gcn_forward.10} parent=0 // pred_region
    _
  $region29: #{timing_gcn_forward.10} parent=0 // pred_fallthru
    _
  // Predicated region
  $region30: #{timing_gcn_forward.10} parent=0 // pred_check
    _
  $region31: #{timing_gcn_forward.10} parent=0 // pred_check_branch
    %277 = sbr.rel (0) target = $region33
  $region32: #{timing_gcn_forward.10} parent=0 // pred_region
    _
  $region33: #{timing_gcn_forward.10} parent=0 // pred_fallthru
    _

// kernel: timing_gcn_forward.7
$region0: #{timing_gcn_forward.7}
  #allocation0 [shape = 'u32[]', space=smem, size = 0x4, offset = 0x4, fixed_abs, tag = 'smem constant byte address 0x4 - core index']
  #allocation1 [shape = 'u32[144,128]{1,0:T(1,128)}', space=vmem, size = 0x12000, scoped, tag = 'internal scratch']
  %s0 = inlined_call_operand.vmem [shape: bf16[32,512], index: 0, kind: input, shape index: {}]
  %s1 = inlined_call_operand.vmem [shape: bf16[512,64], index: 1, kind: input, shape index: {}]
  %s2 = inlined_call_operand.vmem [shape: bf16[512,64], index: 2, kind: input, shape index: {}]
  %s3 = inlined_call_operand.vmem [shape: bf16[512,64], index: 3, kind: input, shape index: {}]
  %s4 = inlined_call_operand.vmem [shape: bf16[32,64], index: 4, kind: output, shape index: {0}]
  %s5 = inlined_call_operand.vmem [shape: bf16[32,64], index: 5, kind: output, shape index: {1}]
  %s6 = inlined_call_operand.vmem [shape: bf16[32,64], index: 6, kind: output, shape index: {2}]
  %7 = xla_tuple %s4, %s5, %s6
  %s8 = sld [smem:[#allocation0]]
  $region42: #{timing_gcn_forward.7} parent=0
    _
  %s10 = ssub.s32 1, %s8
  %s11 = scalar_select 0, %s10, %s8
  // Predicated region
  $region2: #{timing_gcn_forward.7} parent=0 // pred_check
    _
  $region3: #{timing_gcn_forward.7} parent=0 // pred_check_branch
    %13 = sbr.rel (0) target = $region5
  $region4: #{timing_gcn_forward.7} parent=0 // pred_region
    _
  $region5: #{timing_gcn_forward.7} parent=0 // pred_fallthru
    _
  // Predicated region
  $region6: #{timing_gcn_forward.7} parent=0 // pred_check
    _
  $region7: #{timing_gcn_forward.7} parent=0 // pred_check_branch
    %15 = sbr.rel (0) target = $region9
  $region8: #{timing_gcn_forward.7} parent=0 // pred_region
    _
  $region9: #{timing_gcn_forward.7} parent=0 // pred_fallthru
    _
  // Predicated region
  $region10: #{timing_gcn_forward.7} parent=0 // pred_check
    _
  $region11: #{timing_gcn_forward.7} parent=0 // pred_check_branch
    %17 = sbr.rel (0) target = $region13
  $region12: #{timing_gcn_forward.7} parent=0 // pred_region
    _
  $region13: #{timing_gcn_forward.7} parent=0 // pred_fallthru
    _
  // Predicated region
  $region14: #{timing_gcn_forward.7} parent=0 // pred_check
    _
  $region15: #{timing_gcn_forward.7} parent=0 // pred_check_branch
    %19 = sbr.rel (0) target = $region17
  $region16: #{timing_gcn_forward.7} parent=0 // pred_region
    _
  $region17: #{timing_gcn_forward.7} parent=0 // pred_fallthru
    _
  %v21 = vld [vmem:[%s0] sm:$0xff]
  %v22 = vld [vmem:[%s0 + $0x8] sm:$0xff]
  %v23 = vld [vmem:[%s0 + $0x10] sm:$0xff]
  %v24 = vld [vmem:[%s0 + $0x18] sm:$0xff]
  %v25 = vld [vmem:[%s0 + $0x20] sm:$0xff]
  %v26 = vld [vmem:[%s0 + $0x28] sm:$0xff]
  %v27 = vld [vmem:[%s0 + $0x30] sm:$0xff]
  %v28 = vld [vmem:[%s0 + $0x38] sm:$0xff]
  %v29 = vld [vmem:[%s1] sm:$0xf]
  %v30 = vld [vmem:[%s1 + $0x4] sm:$0xf]
  %v31 = vld [vmem:[%s1 + $0x8] sm:$0xf]
  %v32 = vld [vmem:[%s1 + $0xc] sm:$0xf]
  %v33 = vld [vmem:[%s1 + $0x10] sm:$0xf]
  %v34 = vld [vmem:[%s1 + $0x14] sm:$0xf]
  %v35 = vld [vmem:[%s1 + $0x18] sm:$0xf]
  %v36 = vld [vmem:[%s1 + $0x1c] sm:$0xf]
  %v37 = vld [vmem:[%s1 + $0x20] sm:$0xf]
  %v38 = vld [vmem:[%s1 + $0x24] sm:$0xf]
  %v39 = vld [vmem:[%s1 + $0x28] sm:$0xf]
  %v40 = vld [vmem:[%s1 + $0x2c] sm:$0xf]
  %v41 = vld [vmem:[%s1 + $0x30] sm:$0xf]
  %v42 = vld [vmem:[%s1 + $0x34] sm:$0xf]
  %v43 = vld [vmem:[%s1 + $0x38] sm:$0xf]
  %v44 = vld [vmem:[%s1 + $0x3c] sm:$0xf]
  %v45 = vld [vmem:[%s1 + $0x40] sm:$0xf]
  %v46 = vld [vmem:[%s1 + $0x44] sm:$0xf]
  %v47 = vld [vmem:[%s1 + $0x48] sm:$0xf]
  %v48 = vld [vmem:[%s1 + $0x4c] sm:$0xf]
  %v49 = vld [vmem:[%s1 + $0x50] sm:$0xf]
  %v50 = vld [vmem:[%s1 + $0x54] sm:$0xf]
  %v51 = vld [vmem:[%s1 + $0x58] sm:$0xf]
  %v52 = vld [vmem:[%s1 + $0x5c] sm:$0xf]
  %v53 = vld [vmem:[%s1 + $0x60] sm:$0xf]
  %v54 = vld [vmem:[%s1 + $0x64] sm:$0xf]
  %v55 = vld [vmem:[%s1 + $0x68] sm:$0xf]
  %v56 = vld [vmem:[%s1 + $0x6c] sm:$0xf]
  %v57 = vld [vmem:[%s1 + $0x70] sm:$0xf]
  %v58 = vld [vmem:[%s1 + $0x74] sm:$0xf]
  %v59 = vld [vmem:[%s1 + $0x78] sm:$0xf]
  %v60 = vld [vmem:[%s1 + $0x7c] sm:$0xf]
  %v61 = vld [vmem:[%s1 + $0x80] sm:$0xf]
  %v62 = vld [vmem:[%s1 + $0x84] sm:$0xf]
  %v63 = vld [vmem:[%s1 + $0x88] sm:$0xf]
  %v64 = vld [vmem:[%s1 + $0x8c] sm:$0xf]
  %v65 = vld [vmem:[%s1 + $0x90] sm:$0xf]
  %v66 = vld [vmem:[%s1 + $0x94] sm:$0xf]
  %v67 = vld [vmem:[%s1 + $0x98] sm:$0xf]
  %v68 = vld [vmem:[%s1 + $0x9c] sm:$0xf]
  %v69 = vld [vmem:[%s1 + $0xa0] sm:$0xf]
  %v70 = vld [vmem:[%s1 + $0xa4] sm:$0xf]
  %v71 = vld [vmem:[%s1 + $0xa8] sm:$0xf]
  %v72 = vld [vmem:[%s1 + $0xac] sm:$0xf]
  %v73 = vld [vmem:[%s1 + $0xb0] sm:$0xf]
  %v74 = vld [vmem:[%s1 + $0xb4] sm:$0xf]
  %v75 = vld [vmem:[%s1 + $0xb8] sm:$0xf]
  %v76 = vld [vmem:[%s1 + $0xbc] sm:$0xf]
  %v77 = vld [vmem:[%s1 + $0xc0] sm:$0xf]
  %v78 = vld [vmem:[%s1 + $0xc4] sm:$0xf]
  %v79 = vld [vmem:[%s1 + $0xc8] sm:$0xf]
  %v80 = vld [vmem:[%s1 + $0xcc] sm:$0xf]
  %v81 = vld [vmem:[%s1 + $0xd0] sm:$0xf]
  %v82 = vld [vmem:[%s1 + $0xd4] sm:$0xf]
  %v83 = vld [vmem:[%s1 + $0xd8] sm:$0xf]
  %v84 = vld [vmem:[%s1 + $0xdc] sm:$0xf]
  %v85 = vld [vmem:[%s1 + $0xe0] sm:$0xf]
  %v86 = vld [vmem:[%s1 + $0xe4] sm:$0xf]
  %v87 = vld [vmem:[%s1 + $0xe8] sm:$0xf]
  %v88 = vld [vmem:[%s1 + $0xec] sm:$0xf]
  %v89 = vld [vmem:[%s1 + $0xf0] sm:$0xf]
  %v90 = vld [vmem:[%s1 + $0xf4] sm:$0xf]
  %v91 = vld [vmem:[%s1 + $0xf8] sm:$0xf]
  %v92 = vld [vmem:[%s1 + $0xfc] sm:$0xf]
  %v101 = vunpack.c.l.b16 %v21
  %v102 = vunpack.c.h.b16 %v21
  %v103 = vunpack.c.l.b16 %v22
  %v104 = vunpack.c.h.b16 %v22
  %v105 = vunpack.c.l.b16 %v23
  %v106 = vunpack.c.h.b16 %v23
  %v107 = vunpack.c.l.b16 %v24
  %v108 = vunpack.c.h.b16 %v24
  %v109 = vunpack.c.l.b16 %v25
  %v110 = vunpack.c.h.b16 %v25
  %v111 = vunpack.c.l.b16 %v26
  %v112 = vunpack.c.h.b16 %v26
  %v113 = vunpack.c.l.b16 %v27
  %v114 = vunpack.c.h.b16 %v27
  %v115 = vunpack.c.l.b16 %v28
  %v116 = vunpack.c.h.b16 %v28
  %v117 = vpack.c.b16 %v105, %v101
  %v118 = vpack.c.b16 %v106, %v102
  %v119 = vpack.c.b16 %v107, %v103
  %v120 = vpack.c.b16 %v108, %v104
  %v121 = vpack.c.b16 %v113, %v109
  %v122 = vpack.c.b16 %v114, %v110
  %v123 = vpack.c.b16 %v115, %v111
  %v124 = vpack.c.b16 %v116, %v112
  %v197 = vunpack.c.l.b16 %v29
  %v198 = vunpack.c.l.b16 %v30
  %v199 = vunpack.c.l.b16 %v31
  %v200 = vunpack.c.l.b16 %v32
  %v201 = vunpack.c.l.b16 %v33
  %v202 = vunpack.c.l.b16 %v34
  %v203 = vunpack.c.l.b16 %v35
  %v204 = vunpack.c.l.b16 %v36
  %v205 = vunpack.c.l.b16 %v37
  %v206 = vunpack.c.l.b16 %v38
  %v207 = vunpack.c.l.b16 %v39
  %v208 = vunpack.c.l.b16 %v40
  %v209 = vunpack.c.l.b16 %v41
  %v210 = vunpack.c.l.b16 %v42
  %v211 = vunpack.c.l.b16 %v43
  %v212 = vunpack.c.l.b16 %v44
  %v213 = vunpack.c.l.b16 %v45
  %v214 = vunpack.c.l.b16 %v46
  %v215 = vunpack.c.l.b16 %v47
  %v216 = vunpack.c.l.b16 %v48
  %v217 = vunpack.c.l.b16 %v49
  %v218 = vunpack.c.l.b16 %v50
  %v219 = vunpack.c.l.b16 %v51
  %v220 = vunpack.c.l.b16 %v52
  %v221 = vunpack.c.l.b16 %v53
  %v222 = vunpack.c.l.b16 %v54
  %v223 = vunpack.c.l.b16 %v55
  %v224 = vunpack.c.l.b16 %v56
  %v225 = vunpack.c.l.b16 %v57
  %v226 = vunpack.c.l.b16 %v58
  %v227 = vunpack.c.l.b16 %v59
  %v228 = vunpack.c.l.b16 %v60
  %v229 = vunpack.c.l.b16 %v61
  %v230 = vunpack.c.l.b16 %v62
  %v231 = vunpack.c.l.b16 %v63
  %v232 = vunpack.c.l.b16 %v64
  %v233 = vunpack.c.l.b16 %v65
  %v234 = vunpack.c.l.b16 %v66
  %v235 = vunpack.c.l.b16 %v67
  %v236 = vunpack.c.l.b16 %v68
  %v237 = vunpack.c.l.b16 %v69
  %v238 = vunpack.c.l.b16 %v70
  %v239 = vunpack.c.l.b16 %v71
  %v240 = vunpack.c.l.b16 %v72
  %v241 = vunpack.c.l.b16 %v73
  %v242 = vunpack.c.l.b16 %v74
  %v243 = vunpack.c.l.b16 %v75
  %v244 = vunpack.c.l.b16 %v76
  %v245 = vunpack.c.l.b16 %v77
  %v246 = vunpack.c.l.b16 %v78
  %v247 = vunpack.c.l.b16 %v79
  %v248 = vunpack.c.l.b16 %v80
  %v249 = vunpack.c.l.b16 %v81
  %v250 = vunpack.c.l.b16 %v82
  %v251 = vunpack.c.l.b16 %v83
  %v252 = vunpack.c.l.b16 %v84
  %v253 = vunpack.c.l.b16 %v85
  %v254 = vunpack.c.l.b16 %v86
  %v255 = vunpack.c.l.b16 %v87
  %v256 = vunpack.c.l.b16 %v88
  %v257 = vunpack.c.l.b16 %v89
  %v258 = vunpack.c.l.b16 %v90
  %v259 = vunpack.c.l.b16 %v91
  %v260 = vunpack.c.l.b16 %v92
  %v261 = vpack.c.b16 %v198, %v197
  %v262 = vpack.c.b16 %v200, %v199
  %v263 = vpack.c.b16 %v202, %v201
  %v264 = vpack.c.b16 %v204, %v203
  %v265 = vpack.c.b16 %v206, %v205
  %v266 = vpack.c.b16 %v208, %v207
  %v267 = vpack.c.b16 %v210, %v209
  %v268 = vpack.c.b16 %v212, %v211
  %v269 = vpack.c.b16 %v214, %v213
  %v270 = vpack.c.b16 %v216, %v215
  %v271 = vpack.c.b16 %v218, %v217
  %v272 = vpack.c.b16 %v220, %v219
  %v273 = vpack.c.b16 %v222, %v221
  %v274 = vpack.c.b16 %v224, %v223
  %v275 = vpack.c.b16 %v226, %v225
  %v276 = vpack.c.b16 %v228, %v227
  %v277 = vpack.c.b16 %v230, %v229
  %v278 = vpack.c.b16 %v232, %v231
  %v279 = vpack.c.b16 %v234, %v233
  %v280 = vpack.c.b16 %v236, %v235
  %v281 = vpack.c.b16 %v238, %v237
  %v282 = vpack.c.b16 %v240, %v239
  %v283 = vpack.c.b16 %v242, %v241
  %v284 = vpack.c.b16 %v244, %v243
  %v285 = vpack.c.b16 %v246, %v245
  %v286 = vpack.c.b16 %v248, %v247
  %v287 = vpack.c.b16 %v250, %v249
  %v288 = vpack.c.b16 %v252, %v251
  %v289 = vpack.c.b16 %v254, %v253
  %v290 = vpack.c.b16 %v256, %v255
  %v291 = vpack.c.b16 %v258, %v257
  %v292 = vpack.c.b16 %v260, %v259
  %325 = vmatprep.subr.bf16.mxu0 0
  %326 = vmatpush1.bf16.msra.mxu0 %v268
  %327 = vmatprep.subr.bf16.mxu0 0
  %328 = vmatpush1.bf16.msra.mxu0 %v267
  %329 = vmatprep.subr.bf16.mxu0 0
  %330 = vmatpush1.bf16.msra.mxu0 %v266
  %331 = vmatprep.subr.bf16.mxu0 0
  %332 = vmatpush1.bf16.msra.mxu0 %v265
  %333 = vmatprep.subr.bf16.mxu0 0
  %334 = vmatpush1.bf16.msra.mxu0 %v264
  %335 = vmatprep.subr.bf16.mxu0 0
  %336 = vmatpush1.bf16.msra.mxu0 %v263
  %337 = vmatprep.subr.bf16.mxu0 0
  %338 = vmatpush1.bf16.msra.mxu0 %v262
  %339 = vmatprep.subr.bf16.mxu0 0
  %340 = vmatpush1.bf16.msra.mxu0 %v261
  %341 = vmatprep.subr.bf16.mxu0 0
  %342 = vmatpush2.bf16.msra.mxu0 %v276
  %343 = vmatprep.subr.bf16.mxu0 0
  %344 = vmatpush2.bf16.msra.mxu0 %v275
  %345 = vmatprep.subr.bf16.mxu0 0
  %346 = vmatpush2.bf16.msra.mxu0 %v274
  %347 = vmatprep.subr.bf16.mxu0 0
  %348 = vmatpush2.bf16.msra.mxu0 %v273
  %349 = vmatprep.subr.bf16.mxu0 0
  %350 = vmatpush2.bf16.msra.mxu0 %v272
  %351 = vmatprep.subr.bf16.mxu0 0
  %352 = vmatpush2.bf16.msra.mxu0 %v271
  %353 = vmatprep.subr.bf16.mxu0 0
  %354 = vmatpush2.bf16.msra.mxu0 %v270
  %355 = vmatprep.subr.bf16.mxu0 0
  %356 = vmatpush2.bf16.msra.mxu0 %v269
  %357 = vmatprep.mubr.bf16.mxu0 %v118
  %358 = vmatmul.mubr.bf16.gmra.mxu0 %v117
  %v359 = vpop.f32.mrf.mxu0
  %v360 = vadd.f32 0.0, %v359
  %v361 = vpop.f32.mrf.mxu0
  %v362 = vpop.f32.mrf.mxu0
  %v363 = vadd.f32 0.0, %v362
  %v364 = vpop.f32.mrf.mxu0
  %365 = vmatprep.mubr.bf16.mxu0 %v122
  %366 = vmatmul.mubr.bf16.gmra.mxu0 %v121
  %v367 = vpop.f32.mrf.mxu0
  %v368 = vadd.f32 0.0, %v367
  %v369 = vpop.f32.mrf.mxu0
  %v370 = vpop.f32.mrf.mxu0
  %v371 = vadd.f32 0.0, %v370
  %v372 = vpop.f32.mrf.mxu0
  %373 = vdwg.mxu0
  %374 = vmatprep.subr.bf16.mxu0 0
  %375 = vmatpush1.bf16.msra.mxu0 %v284
  %376 = vmatprep.subr.bf16.mxu0 0
  %377 = vmatpush1.bf16.msra.mxu0 %v283
  %378 = vmatprep.subr.bf16.mxu0 0
  %379 = vmatpush1.bf16.msra.mxu0 %v282
  %380 = vmatprep.subr.bf16.mxu0 0
  %381 = vmatpush1.bf16.msra.mxu0 %v281
  %382 = vmatprep.subr.bf16.mxu0 0
  %383 = vmatpush1.bf16.msra.mxu0 %v280
  %384 = vmatprep.subr.bf16.mxu0 0
  %385 = vmatpush1.bf16.msra.mxu0 %v279
  %386 = vmatprep.subr.bf16.mxu0 0
  %387 = vmatpush1.bf16.msra.mxu0 %v278
  %388 = vmatprep.subr.bf16.mxu0 0
  %389 = vmatpush1.bf16.msra.mxu0 %v277
  %390 = vmatprep.subr.bf16.mxu0 0
  %391 = vmatpush2.bf16.msra.mxu0 %v292
  %392 = vmatprep.subr.bf16.mxu0 0
  %393 = vmatpush2.bf16.msra.mxu0 %v291
  %394 = vmatprep.subr.bf16.mxu0 0
  %395 = vmatpush2.bf16.msra.mxu0 %v290
  %396 = vmatprep.subr.bf16.mxu0 0
  %397 = vmatpush2.bf16.msra.mxu0 %v289
  %398 = vmatprep.subr.bf16.mxu0 0
  %399 = vmatpush2.bf16.msra.mxu0 %v288
  %400 = vmatprep.subr.bf16.mxu0 0
  %401 = vmatpush2.bf16.msra.mxu0 %v287
  %402 = vmatprep.subr.bf16.mxu0 0
  %403 = vmatpush2.bf16.msra.mxu0 %v286
  %404 = vmatprep.subr.bf16.mxu0 0
  %405 = vmatpush2.bf16.msra.mxu0 %v285
  %406 = vmatprep.mubr.bf16.mxu0 %v120
  %407 = vmatmul.mubr.bf16.gmra.mxu0 %v119
  %v408 = vpop.f32.mrf.mxu0
  %v409 = vadd.f32 %v360, %v408
  %v410 = vpop.f32.mrf.mxu0
  %v411 = vpop.f32.mrf.mxu0
  %v412 = vadd.f32 %v363, %v411
  %v413 = vpop.f32.mrf.mxu0
  %414 = vmatprep.mubr.bf16.mxu0 %v124
  %415 = vmatmul.mubr.bf16.gmra.mxu0 %v123
  %v416 = vpop.f32.mrf.mxu0
  %v417 = vadd.f32 %v368, %v416
  %v418 = vpop.f32.mrf.mxu0
  %v419 = vpop.f32.mrf.mxu0
  %v420 = vadd.f32 %v371, %v419
  %v421 = vpop.f32.mrf.mxu0
  %422 = vdwg.mxu0
  %v423 = vpack.c.bf16 %v412, %v409
  %v424 = vpack.c.bf16 %v420, %v417
  %v427 = vunpack.c.l.b16 %v423
  %v428 = vunpack.c.h.b16 %v423
  %v429 = vunpack.c.l.b16 %v424
  %v430 = vunpack.c.h.b16 %v424
  %v431 = vpack.c.b16 %v427, %v427
  %v432 = vpack.c.b16 %v428, %v428
  %v433 = vpack.c.b16 %v429, %v429
  %v434 = vpack.c.b16 %v430, %v430
  %vm439 = vcmask 519168
  %440 = vst.msk [vmem:[%s4] sm:$0xf] %vm439, %v431
  %441 = vst.msk [vmem:[%s4 + $0x4] sm:$0xf] %vm439, %v432
  %442 = vst.msk [vmem:[%s4 + $0x8] sm:$0xf] %vm439, %v433
  %443 = vst.msk [vmem:[%s4 + $0xc] sm:$0xf] %vm439, %v434
  %v444 = vld [vmem:[%s2] sm:$0xf]
  %v445 = vld [vmem:[%s2 + $0x4] sm:$0xf]
  %v446 = vld [vmem:[%s2 + $0x8] sm:$0xf]
  %v447 = vld [vmem:[%s2 + $0xc] sm:$0xf]
  %v448 = vld [vmem:[%s2 + $0x10] sm:$0xf]
  %v449 = vld [vmem:[%s2 + $0x14] sm:$0xf]
  %v450 = vld [vmem:[%s2 + $0x18] sm:$0xf]
  %v451 = vld [vmem:[%s2 + $0x1c] sm:$0xf]
  %v452 = vld [vmem:[%s2 + $0x20] sm:$0xf]
  %v453 = vld [vmem:[%s2 + $0x24] sm:$0xf]
  %v454 = vld [vmem:[%s2 + $0x28] sm:$0xf]
  %v455 = vld [vmem:[%s2 + $0x2c] sm:$0xf]
  %v456 = vld [vmem:[%s2 + $0x30] sm:$0xf]
  %v457 = vld [vmem:[%s2 + $0x34] sm:$0xf]
  %v458 = vld [vmem:[%s2 + $0x38] sm:$0xf]
  %v459 = vld [vmem:[%s2 + $0x3c] sm:$0xf]
  %v460 = vld [vmem:[%s2 + $0x40] sm:$0xf]
  %v461 = vld [vmem:[%s2 + $0x44] sm:$0xf]
  %v462 = vld [vmem:[%s2 + $0x48] sm:$0xf]
  %v463 = vld [vmem:[%s2 + $0x4c] sm:$0xf]
  %v464 = vld [vmem:[%s2 + $0x50] sm:$0xf]
  %v465 = vld [vmem:[%s2 + $0x54] sm:$0xf]
  %v466 = vld [vmem:[%s2 + $0x58] sm:$0xf]
  %v467 = vld [vmem:[%s2 + $0x5c] sm:$0xf]
  %v468 = vld [vmem:[%s2 + $0x60] sm:$0xf]
  %v469 = vld [vmem:[%s2 + $0x64] sm:$0xf]
  %v470 = vld [vmem:[%s2 + $0x68] sm:$0xf]
  %v471 = vld [vmem:[%s2 + $0x6c] sm:$0xf]
  %v472 = vld [vmem:[%s2 + $0x70] sm:$0xf]
  %v473 = vld [vmem:[%s2 + $0x74] sm:$0xf]
  %v474 = vld [vmem:[%s2 + $0x78] sm:$0xf]
  %v475 = vld [vmem:[%s2 + $0x7c] sm:$0xf]
  %v476 = vld [vmem:[%s2 + $0x80] sm:$0xf]
  %v477 = vld [vmem:[%s2 + $0x84] sm:$0xf]
  %v478 = vld [vmem:[%s2 + $0x88] sm:$0xf]
  %v479 = vld [vmem:[%s2 + $0x8c] sm:$0xf]
  %v480 = vld [vmem:[%s2 + $0x90] sm:$0xf]
  %v481 = vld [vmem:[%s2 + $0x94] sm:$0xf]
  %v482 = vld [vmem:[%s2 + $0x98] sm:$0xf]
  %v483 = vld [vmem:[%s2 + $0x9c] sm:$0xf]
  %v484 = vld [vmem:[%s2 + $0xa0] sm:$0xf]
  %v485 = vld [vmem:[%s2 + $0xa4] sm:$0xf]
  %v486 = vld [vmem:[%s2 + $0xa8] sm:$0xf]
  %v487 = vld [vmem:[%s2 + $0xac] sm:$0xf]
  %v488 = vld [vmem:[%s2 + $0xb0] sm:$0xf]
  %v489 = vld [vmem:[%s2 + $0xb4] sm:$0xf]
  %v490 = vld [vmem:[%s2 + $0xb8] sm:$0xf]
  %v491 = vld [vmem:[%s2 + $0xbc] sm:$0xf]
  %v492 = vld [vmem:[%s2 + $0xc0] sm:$0xf]
  %v493 = vld [vmem:[%s2 + $0xc4] sm:$0xf]
  %v494 = vld [vmem:[%s2 + $0xc8] sm:$0xf]
  %v495 = vld [vmem:[%s2 + $0xcc] sm:$0xf]
  %v496 = vld [vmem:[%s2 + $0xd0] sm:$0xf]
  %v497 = vld [vmem:[%s2 + $0xd4] sm:$0xf]
  %v498 = vld [vmem:[%s2 + $0xd8] sm:$0xf]
  %v499 = vld [vmem:[%s2 + $0xdc] sm:$0xf]
  %v500 = vld [vmem:[%s2 + $0xe0] sm:$0xf]
  %v501 = vld [vmem:[%s2 + $0xe4] sm:$0xf]
  %v502 = vld [vmem:[%s2 + $0xe8] sm:$0xf]
  %v503 = vld [vmem:[%s2 + $0xec] sm:$0xf]
  %v504 = vld [vmem:[%s2 + $0xf0] sm:$0xf]
  %v505 = vld [vmem:[%s2 + $0xf4] sm:$0xf]
  %v506 = vld [vmem:[%s2 + $0xf8] sm:$0xf]
  %v507 = vld [vmem:[%s2 + $0xfc] sm:$0xf]
  %v572 = vunpack.c.l.b16 %v444
  %v573 = vunpack.c.l.b16 %v445
  %v574 = vunpack.c.l.b16 %v446
  %v575 = vunpack.c.l.b16 %v447
  %v576 = vunpack.c.l.b16 %v448
  %v577 = vunpack.c.l.b16 %v449
  %v578 = vunpack.c.l.b16 %v450
  %v579 = vunpack.c.l.b16 %v451
  %v580 = vunpack.c.l.b16 %v452
  %v581 = vunpack.c.l.b16 %v453
  %v582 = vunpack.c.l.b16 %v454
  %v583 = vunpack.c.l.b16 %v455
  %v584 = vunpack.c.l.b16 %v456
  %v585 = vunpack.c.l.b16 %v457
  %v586 = vunpack.c.l.b16 %v458
  %v587 = vunpack.c.l.b16 %v459
  %v588 = vunpack.c.l.b16 %v460
  %v589 = vunpack.c.l.b16 %v461
  %v590 = vunpack.c.l.b16 %v462
  %v591 = vunpack.c.l.b16 %v463
  %v592 = vunpack.c.l.b16 %v464
  %v593 = vunpack.c.l.b16 %v465
  %v594 = vunpack.c.l.b16 %v466
  %v595 = vunpack.c.l.b16 %v467
  %v596 = vunpack.c.l.b16 %v468
  %v597 = vunpack.c.l.b16 %v469
  %v598 = vunpack.c.l.b16 %v470
  %v599 = vunpack.c.l.b16 %v471
  %v600 = vunpack.c.l.b16 %v472
  %v601 = vunpack.c.l.b16 %v473
  %v602 = vunpack.c.l.b16 %v474
  %v603 = vunpack.c.l.b16 %v475
  %v604 = vunpack.c.l.b16 %v476
  %v605 = vunpack.c.l.b16 %v477
  %v606 = vunpack.c.l.b16 %v478
  %v607 = vunpack.c.l.b16 %v479
  %v608 = vunpack.c.l.b16 %v480
  %v609 = vunpack.c.l.b16 %v481
  %v610 = vunpack.c.l.b16 %v482
  %v611 = vunpack.c.l.b16 %v483
  %v612 = vunpack.c.l.b16 %v484
  %v613 = vunpack.c.l.b16 %v485
  %v614 = vunpack.c.l.b16 %v486
  %v615 = vunpack.c.l.b16 %v487
  %v616 = vunpack.c.l.b16 %v488
  %v617 = vunpack.c.l.b16 %v489
  %v618 = vunpack.c.l.b16 %v490
  %v619 = vunpack.c.l.b16 %v491
  %v620 = vunpack.c.l.b16 %v492
  %v621 = vunpack.c.l.b16 %v493
  %v622 = vunpack.c.l.b16 %v494
  %v623 = vunpack.c.l.b16 %v495
  %v624 = vunpack.c.l.b16 %v496
  %v625 = vunpack.c.l.b16 %v497
  %v626 = vunpack.c.l.b16 %v498
  %v627 = vunpack.c.l.b16 %v499
  %v628 = vunpack.c.l.b16 %v500
  %v629 = vunpack.c.l.b16 %v501
  %v630 = vunpack.c.l.b16 %v502
  %v631 = vunpack.c.l.b16 %v503
  %v632 = vunpack.c.l.b16 %v504
  %v633 = vunpack.c.l.b16 %v505
  %v634 = vunpack.c.l.b16 %v506
  %v635 = vunpack.c.l.b16 %v507
  %v636 = vpack.c.b16 %v573, %v572
  %v637 = vpack.c.b16 %v575, %v574
  %v638 = vpack.c.b16 %v577, %v576
  %v639 = vpack.c.b16 %v579, %v578
  %v640 = vpack.c.b16 %v581, %v580
  %v641 = vpack.c.b16 %v583, %v582
  %v642 = vpack.c.b16 %v585, %v584
  %v643 = vpack.c.b16 %v587, %v586
  %v644 = vpack.c.b16 %v589, %v588
  %v645 = vpack.c.b16 %v591, %v590
  %v646 = vpack.c.b16 %v593, %v592
  %v647 = vpack.c.b16 %v595, %v594
  %v648 = vpack.c.b16 %v597, %v596
  %v649 = vpack.c.b16 %v599, %v598
  %v650 = vpack.c.b16 %v601, %v600
  %v651 = vpack.c.b16 %v603, %v602
  %v652 = vpack.c.b16 %v605, %v604
  %v653 = vpack.c.b16 %v607, %v606
  %v654 = vpack.c.b16 %v609, %v608
  %v655 = vpack.c.b16 %v611, %v610
  %v656 = vpack.c.b16 %v613, %v612
  %v657 = vpack.c.b16 %v615, %v614
  %v658 = vpack.c.b16 %v617, %v616
  %v659 = vpack.c.b16 %v619, %v618
  %v660 = vpack.c.b16 %v621, %v620
  %v661 = vpack.c.b16 %v623, %v622
  %v662 = vpack.c.b16 %v625, %v624
  %v663 = vpack.c.b16 %v627, %v626
  %v664 = vpack.c.b16 %v629, %v628
  %v665 = vpack.c.b16 %v631, %v630
  %v666 = vpack.c.b16 %v633, %v632
  %v667 = vpack.c.b16 %v635, %v634
  %700 = vmatprep.subr.bf16.mxu0 0
  %701 = vmatpush1.bf16.msra.mxu0 %v643
  %702 = vmatprep.subr.bf16.mxu0 0
  %703 = vmatpush1.bf16.msra.mxu0 %v642
  %704 = vmatprep.subr.bf16.mxu0 0
  %705 = vmatpush1.bf16.msra.mxu0 %v641
  %706 = vmatprep.subr.bf16.mxu0 0
  %707 = vmatpush1.bf16.msra.mxu0 %v640
  %708 = vmatprep.subr.bf16.mxu0 0
  %709 = vmatpush1.bf16.msra.mxu0 %v639
  %710 = vmatprep.subr.bf16.mxu0 0
  %711 = vmatpush1.bf16.msra.mxu0 %v638
  %712 = vmatprep.subr.bf16.mxu0 0
  %713 = vmatpush1.bf16.msra.mxu0 %v637
  %714 = vmatprep.subr.bf16.mxu0 0
  %715 = vmatpush1.bf16.msra.mxu0 %v636
  %716 = vmatprep.subr.bf16.mxu0 0
  %717 = vmatpush2.bf16.msra.mxu0 %v651
  %718 = vmatprep.subr.bf16.mxu0 0
  %719 = vmatpush2.bf16.msra.mxu0 %v650
  %720 = vmatprep.subr.bf16.mxu0 0
  %721 = vmatpush2.bf16.msra.mxu0 %v649
  %722 = vmatprep.subr.bf16.mxu0 0
  %723 = vmatpush2.bf16.msra.mxu0 %v648
  %724 = vmatprep.subr.bf16.mxu0 0
  %725 = vmatpush2.bf16.msra.mxu0 %v647
  %726 = vmatprep.subr.bf16.mxu0 0
  %727 = vmatpush2.bf16.msra.mxu0 %v646
  %728 = vmatprep.subr.bf16.mxu0 0
  %729 = vmatpush2.bf16.msra.mxu0 %v645
  %730 = vmatprep.subr.bf16.mxu0 0
  %731 = vmatpush2.bf16.msra.mxu0 %v644
  %732 = vmatprep.mubr.bf16.mxu0 %v118
  %733 = vmatmul.mubr.bf16.gmra.mxu0 %v117
  %v734 = vpop.f32.mrf.mxu0
  %v735 = vadd.f32 0.0, %v734
  %v736 = vpop.f32.mrf.mxu0
  %v737 = vpop.f32.mrf.mxu0
  %v738 = vadd.f32 0.0, %v737
  %v739 = vpop.f32.mrf.mxu0
  %740 = vmatprep.mubr.bf16.mxu0 %v122
  %741 = vmatmul.mubr.bf16.gmra.mxu0 %v121
  %v742 = vpop.f32.mrf.mxu0
  %v743 = vadd.f32 0.0, %v742
  %v744 = vpop.f32.mrf.mxu0
  %v745 = vpop.f32.mrf.mxu0
  %v746 = vadd.f32 0.0, %v745
  %v747 = vpop.f32.mrf.mxu0
  %748 = vdwg.mxu0
  %749 = vmatprep.subr.bf16.mxu0 0
  %750 = vmatpush1.bf16.msra.mxu0 %v659
  %751 = vmatprep.subr.bf16.mxu0 0
  %752 = vmatpush1.bf16.msra.mxu0 %v658
  %753 = vmatprep.subr.bf16.mxu0 0
  %754 = vmatpush1.bf16.msra.mxu0 %v657
  %755 = vmatprep.subr.bf16.mxu0 0
  %756 = vmatpush1.bf16.msra.mxu0 %v656
  %757 = vmatprep.subr.bf16.mxu0 0
  %758 = vmatpush1.bf16.msra.mxu0 %v655
  %759 = vmatprep.subr.bf16.mxu0 0
  %760 = vmatpush1.bf16.msra.mxu0 %v654
  %761 = vmatprep.subr.bf16.mxu0 0
  %762 = vmatpush1.bf16.msra.mxu0 %v653
  %763 = vmatprep.subr.bf16.mxu0 0
  %764 = vmatpush1.bf16.msra.mxu0 %v652
  %765 = vmatprep.subr.bf16.mxu0 0
  %766 = vmatpush2.bf16.msra.mxu0 %v667
  %767 = vmatprep.subr.bf16.mxu0 0
  %768 = vmatpush2.bf16.msra.mxu0 %v666
  %769 = vmatprep.subr.bf16.mxu0 0
  %770 = vmatpush2.bf16.msra.mxu0 %v665
  %771 = vmatprep.subr.bf16.mxu0 0
  %772 = vmatpush2.bf16.msra.mxu0 %v664
  %773 = vmatprep.subr.bf16.mxu0 0
  %774 = vmatpush2.bf16.msra.mxu0 %v663
  %775 = vmatprep.subr.bf16.mxu0 0
  %776 = vmatpush2.bf16.msra.mxu0 %v662
  %777 = vmatprep.subr.bf16.mxu0 0
  %778 = vmatpush2.bf16.msra.mxu0 %v661
  %779 = vmatprep.subr.bf16.mxu0 0
  %780 = vmatpush2.bf16.msra.mxu0 %v660
  %781 = vmatprep.mubr.bf16.mxu0 %v120
  %782 = vmatmul.mubr.bf16.gmra.mxu0 %v119
  %v783 = vpop.f32.mrf.mxu0
  %v784 = vadd.f32 %v735, %v783
  %v785 = vpop.f32.mrf.mxu0
  %v786 = vpop.f32.mrf.mxu0
  %v787 = vadd.f32 %v738, %v786
  %v788 = vpop.f32.mrf.mxu0
  %789 = vmatprep.mubr.bf16.mxu0 %v124
  %790 = vmatmul.mubr.bf16.gmra.mxu0 %v123
  %v791 = vpop.f32.mrf.mxu0
  %v792 = vadd.f32 %v743, %v791
  %v793 = vpop.f32.mrf.mxu0
  %v794 = vpop.f32.mrf.mxu0
  %v795 = vadd.f32 %v746, %v794
  %v796 = vpop.f32.mrf.mxu0
  %797 = vdwg.mxu0
  %v798 = vpack.c.bf16 %v787, %v784
  %v799 = vpack.c.bf16 %v795, %v792
  %v802 = vunpack.c.l.b16 %v798
  %v803 = vunpack.c.h.b16 %v798
  %v804 = vunpack.c.l.b16 %v799
  %v805 = vunpack.c.h.b16 %v799
  %v806 = vpack.c.b16 %v802, %v802
  %v807 = vpack.c.b16 %v803, %v803
  %v808 = vpack.c.b16 %v804, %v804
  %v809 = vpack.c.b16 %v805, %v805
  %814 = vst.msk [vmem:[%s5] sm:$0xf] %vm439, %v806
  %815 = vst.msk [vmem:[%s5 + $0x4] sm:$0xf] %vm439, %v807
  %816 = vst.msk [vmem:[%s5 + $0x8] sm:$0xf] %vm439, %v808
  %817 = vst.msk [vmem:[%s5 + $0xc] sm:$0xf] %vm439, %v809
  %v818 = vld [vmem:[%s3] sm:$0xf]
  %v819 = vld [vmem:[%s3 + $0x4] sm:$0xf]
  %v820 = vld [vmem:[%s3 + $0x8] sm:$0xf]
  %v821 = vld [vmem:[%s3 + $0xc] sm:$0xf]
  %v822 = vld [vmem:[%s3 + $0x10] sm:$0xf]
  %v823 = vld [vmem:[%s3 + $0x14] sm:$0xf]
  %v824 = vld [vmem:[%s3 + $0x18] sm:$0xf]
  %v825 = vld [vmem:[%s3 + $0x1c] sm:$0xf]
  %v826 = vld [vmem:[%s3 + $0x20] sm:$0xf]
  %v827 = vld [vmem:[%s3 + $0x24] sm:$0xf]
  %v828 = vld [vmem:[%s3 + $0x28] sm:$0xf]
  %v829 = vld [vmem:[%s3 + $0x2c] sm:$0xf]
  %v830 = vld [vmem:[%s3 + $0x30] sm:$0xf]
  %v831 = vld [vmem:[%s3 + $0x34] sm:$0xf]
  %v832 = vld [vmem:[%s3 + $0x38] sm:$0xf]
  %v833 = vld [vmem:[%s3 + $0x3c] sm:$0xf]
  %v834 = vld [vmem:[%s3 + $0x40] sm:$0xf]
  %v835 = vld [vmem:[%s3 + $0x44] sm:$0xf]
  %v836 = vld [vmem:[%s3 + $0x48] sm:$0xf]
  %v837 = vld [vmem:[%s3 + $0x4c] sm:$0xf]
  %v838 = vld [vmem:[%s3 + $0x50] sm:$0xf]
  %v839 = vld [vmem:[%s3 + $0x54] sm:$0xf]
  %v840 = vld [vmem:[%s3 + $0x58] sm:$0xf]
  %v841 = vld [vmem:[%s3 + $0x5c] sm:$0xf]
  %v842 = vld [vmem:[%s3 + $0x60] sm:$0xf]
  %v843 = vld [vmem:[%s3 + $0x64] sm:$0xf]
  %v844 = vld [vmem:[%s3 + $0x68] sm:$0xf]
  %v845 = vld [vmem:[%s3 + $0x6c] sm:$0xf]
  %v846 = vld [vmem:[%s3 + $0x70] sm:$0xf]
  %v847 = vld [vmem:[%s3 + $0x74] sm:$0xf]
  %v848 = vld [vmem:[%s3 + $0x78] sm:$0xf]
  %v849 = vld [vmem:[%s3 + $0x7c] sm:$0xf]
  %v850 = vld [vmem:[%s3 + $0x80] sm:$0xf]
  %v851 = vld [vmem:[%s3 + $0x84] sm:$0xf]
  %v852 = vld [vmem:[%s3 + $0x88] sm:$0xf]
  %v853 = vld [vmem:[%s3 + $0x8c] sm:$0xf]
  %v854 = vld [vmem:[%s3 + $0x90] sm:$0xf]
  %v855 = vld [vmem:[%s3 + $0x94] sm:$0xf]
  %v856 = vld [vmem:[%s3 + $0x98] sm:$0xf]
  %v857 = vld [vmem:[%s3 + $0x9c] sm:$0xf]
  %v858 = vld [vmem:[%s3 + $0xa0] sm:$0xf]
  %v859 = vld [vmem:[%s3 + $0xa4] sm:$0xf]
  %v860 = vld [vmem:[%s3 + $0xa8] sm:$0xf]
  %v861 = vld [vmem:[%s3 + $0xac] sm:$0xf]
  %v862 = vld [vmem:[%s3 + $0xb0] sm:$0xf]
  %v863 = vld [vmem:[%s3 + $0xb4] sm:$0xf]
  %v864 = vld [vmem:[%s3 + $0xb8] sm:$0xf]
  %v865 = vld [vmem:[%s3 + $0xbc] sm:$0xf]
  %v866 = vld [vmem:[%s3 + $0xc0] sm:$0xf]
  %v867 = vld [vmem:[%s3 + $0xc4] sm:$0xf]
  %v868 = vld [vmem:[%s3 + $0xc8] sm:$0xf]
  %v869 = vld [vmem:[%s3 + $0xcc] sm:$0xf]
  %v870 = vld [vmem:[%s3 + $0xd0] sm:$0xf]
  %v871 = vld [vmem:[%s3 + $0xd4] sm:$0xf]
  %v872 = vld [vmem:[%s3 + $0xd8] sm:$0xf]
  %v873 = vld [vmem:[%s3 + $0xdc] sm:$0xf]
  %v874 = vld [vmem:[%s3 + $0xe0] sm:$0xf]
  %v875 = vld [vmem:[%s3 + $0xe4] sm:$0xf]
  %v876 = vld [vmem:[%s3 + $0xe8] sm:$0xf]
  %v877 = vld [vmem:[%s3 + $0xec] sm:$0xf]
  %v878 = vld [vmem:[%s3 + $0xf0] sm:$0xf]
  %v879 = vld [vmem:[%s3 + $0xf4] sm:$0xf]
  %v880 = vld [vmem:[%s3 + $0xf8] sm:$0xf]
  %v881 = vld [vmem:[%s3 + $0xfc] sm:$0xf]
  %v946 = vunpack.c.l.b16 %v818
  %v947 = vunpack.c.l.b16 %v819
  %v948 = vunpack.c.l.b16 %v820
  %v949 = vunpack.c.l.b16 %v821
  %v950 = vunpack.c.l.b16 %v822
  %v951 = vunpack.c.l.b16 %v823
  %v952 = vunpack.c.l.b16 %v824
  %v953 = vunpack.c.l.b16 %v825
  %v954 = vunpack.c.l.b16 %v826
  %v955 = vunpack.c.l.b16 %v827
  %v956 = vunpack.c.l.b16 %v828
  %v957 = vunpack.c.l.b16 %v829
  %v958 = vunpack.c.l.b16 %v830
  %v959 = vunpack.c.l.b16 %v831
  %v960 = vunpack.c.l.b16 %v832
  %v961 = vunpack.c.l.b16 %v833
  %v962 = vunpack.c.l.b16 %v834
  %v963 = vunpack.c.l.b16 %v835
  %v964 = vunpack.c.l.b16 %v836
  %v965 = vunpack.c.l.b16 %v837
  %v966 = vunpack.c.l.b16 %v838
  %v967 = vunpack.c.l.b16 %v839
  %v968 = vunpack.c.l.b16 %v840
  %v969 = vunpack.c.l.b16 %v841
  %v970 = vunpack.c.l.b16 %v842
  %v971 = vunpack.c.l.b16 %v843
  %v972 = vunpack.c.l.b16 %v844
  %v973 = vunpack.c.l.b16 %v845
  %v974 = vunpack.c.l.b16 %v846
  %v975 = vunpack.c.l.b16 %v847
  %v976 = vunpack.c.l.b16 %v848
  %v977 = vunpack.c.l.b16 %v849
  %v978 = vunpack.c.l.b16 %v850
  %v979 = vunpack.c.l.b16 %v851
  %v980 = vunpack.c.l.b16 %v852
  %v981 = vunpack.c.l.b16 %v853
  %v982 = vunpack.c.l.b16 %v854
  %v983 = vunpack.c.l.b16 %v855
  %v984 = vunpack.c.l.b16 %v856
  %v985 = vunpack.c.l.b16 %v857
  %v986 = vunpack.c.l.b16 %v858
  %v987 = vunpack.c.l.b16 %v859
  %v988 = vunpack.c.l.b16 %v860
  %v989 = vunpack.c.l.b16 %v861
  %v990 = vunpack.c.l.b16 %v862
  %v991 = vunpack.c.l.b16 %v863
  %v992 = vunpack.c.l.b16 %v864
  %v993 = vunpack.c.l.b16 %v865
  %v994 = vunpack.c.l.b16 %v866
  %v995 = vunpack.c.l.b16 %v867
  %v996 = vunpack.c.l.b16 %v868
  %v997 = vunpack.c.l.b16 %v869
  %v998 = vunpack.c.l.b16 %v870
  %v999 = vunpack.c.l.b16 %v871
  %v1000 = vunpack.c.l.b16 %v872
  %v1001 = vunpack.c.l.b16 %v873
  %v1002 = vunpack.c.l.b16 %v874
  %v1003 = vunpack.c.l.b16 %v875
  %v1004 = vunpack.c.l.b16 %v876
  %v1005 = vunpack.c.l.b16 %v877
  %v1006 = vunpack.c.l.b16 %v878
  %v1007 = vunpack.c.l.b16 %v879
  %v1008 = vunpack.c.l.b16 %v880
  %v1009 = vunpack.c.l.b16 %v881
  %v1010 = vpack.c.b16 %v947, %v946
  %v1011 = vpack.c.b16 %v949, %v948
  %v1012 = vpack.c.b16 %v951, %v950
  %v1013 = vpack.c.b16 %v953, %v952
  %v1014 = vpack.c.b16 %v955, %v954
  %v1015 = vpack.c.b16 %v957, %v956
  %v1016 = vpack.c.b16 %v959, %v958
  %v1017 = vpack.c.b16 %v961, %v960
  %v1018 = vpack.c.b16 %v963, %v962
  %v1019 = vpack.c.b16 %v965, %v964
  %v1020 = vpack.c.b16 %v967, %v966
  %v1021 = vpack.c.b16 %v969, %v968
  %v1022 = vpack.c.b16 %v971, %v970
  %v1023 = vpack.c.b16 %v973, %v972
  %v1024 = vpack.c.b16 %v975, %v974
  %v1025 = vpack.c.b16 %v977, %v976
  %v1026 = vpack.c.b16 %v979, %v978
  %v1027 = vpack.c.b16 %v981, %v980
  %v1028 = vpack.c.b16 %v983, %v982
  %v1029 = vpack.c.b16 %v985, %v984
  %v1030 = vpack.c.b16 %v987, %v986
  %v1031 = vpack.c.b16 %v989, %v988
  %v1032 = vpack.c.b16 %v991, %v990
  %v1033 = vpack.c.b16 %v993, %v992
  %v1034 = vpack.c.b16 %v995, %v994
  %v1035 = vpack.c.b16 %v997, %v996
  %v1036 = vpack.c.b16 %v999, %v998
  %v1037 = vpack.c.b16 %v1001, %v1000
  %v1038 = vpack.c.b16 %v1003, %v1002
  %v1039 = vpack.c.b16 %v1005, %v1004
  %v1040 = vpack.c.b16 %v1007, %v1006
  %v1041 = vpack.c.b16 %v1009, %v1008
  %1074 = vmatprep.subr.bf16.mxu0 0
  %1075 = vmatpush1.bf16.msra.mxu0 %v1017
  %1076 = vmatprep.subr.bf16.mxu0 0
  %1077 = vmatpush1.bf16.msra.mxu0 %v1016
  %1078 = vmatprep.subr.bf16.mxu0 0
  %1079 = vmatpush1.bf16.msra.mxu0 %v1015
  %1080 = vmatprep.subr.bf16.mxu0 0
  %1081 = vmatpush1.bf16.msra.mxu0 %v1014
  %1082 = vmatprep.subr.bf16.mxu0 0
  %1083 = vmatpush1.bf16.msra.mxu0 %v1013
  %1084 = vmatprep.subr.bf16.mxu0 0
  %1085 = vmatpush1.bf16.msra.mxu0 %v1012
  %1086 = vmatprep.subr.bf16.mxu0 0
  %1087 = vmatpush1.bf16.msra.mxu0 %v1011
  %1088 = vmatprep.subr.bf16.mxu0 0
  %1089 = vmatpush1.bf16.msra.mxu0 %v1010
  %1090 = vmatprep.subr.bf16.mxu0 0
  %1091 = vmatpush2.bf16.msra.mxu0 %v1025
  %1092 = vmatprep.subr.bf16.mxu0 0
  %1093 = vmatpush2.bf16.msra.mxu0 %v1024
  %1094 = vmatprep.subr.bf16.mxu0 0
  %1095 = vmatpush2.bf16.msra.mxu0 %v1023
  %1096 = vmatprep.subr.bf16.mxu0 0
  %1097 = vmatpush2.bf16.msra.mxu0 %v1022
  %1098 = vmatprep.subr.bf16.mxu0 0
  %1099 = vmatpush2.bf16.msra.mxu0 %v1021
  %1100 = vmatprep.subr.bf16.mxu0 0
  %1101 = vmatpush2.bf16.msra.mxu0 %v1020
  %1102 = vmatprep.subr.bf16.mxu0 0
  %1103 = vmatpush2.bf16.msra.mxu0 %v1019
  %1104 = vmatprep.subr.bf16.mxu0 0
  %1105 = vmatpush2.bf16.msra.mxu0 %v1018
  %1106 = vmatprep.mubr.bf16.mxu0 %v118
  %1107 = vmatmul.mubr.bf16.gmra.mxu0 %v117
  %v1108 = vpop.f32.mrf.mxu0
  %v1109 = vadd.f32 0.0, %v1108
  %v1110 = vpop.f32.mrf.mxu0
  %v1111 = vpop.f32.mrf.mxu0
  %v1112 = vadd.f32 0.0, %v1111
  %v1113 = vpop.f32.mrf.mxu0
  %1114 = vmatprep.mubr.bf16.mxu0 %v122
  %1115 = vmatmul.mubr.bf16.gmra.mxu0 %v121
  %v1116 = vpop.f32.mrf.mxu0
  %v1117 = vadd.f32 0.0, %v1116
  %v1118 = vpop.f32.mrf.mxu0
  %v1119 = vpop.f32.mrf.mxu0
  %v1120 = vadd.f32 0.0, %v1119
  %v1121 = vpop.f32.mrf.mxu0
  %1122 = vdwg.mxu0
  %1123 = vmatprep.subr.bf16.mxu0 0
  %1124 = vmatpush1.bf16.msra.mxu0 %v1033
  %1125 = vmatprep.subr.bf16.mxu0 0
  %1126 = vmatpush1.bf16.msra.mxu0 %v1032
  %1127 = vmatprep.subr.bf16.mxu0 0
  %1128 = vmatpush1.bf16.msra.mxu0 %v1031
  %1129 = vmatprep.subr.bf16.mxu0 0
  %1130 = vmatpush1.bf16.msra.mxu0 %v1030
  %1131 = vmatprep.subr.bf16.mxu0 0
  %1132 = vmatpush1.bf16.msra.mxu0 %v1029
  %1133 = vmatprep.subr.bf16.mxu0 0
  %1134 = vmatpush1.bf16.msra.mxu0 %v1028
  %1135 = vmatprep.subr.bf16.mxu0 0
  %1136 = vmatpush1.bf16.msra.mxu0 %v1027
  %1137 = vmatprep.subr.bf16.mxu0 0
  %1138 = vmatpush1.bf16.msra.mxu0 %v1026
  %1139 = vmatprep.subr.bf16.mxu0 0
  %1140 = vmatpush2.bf16.msra.mxu0 %v1041
  %1141 = vmatprep.subr.bf16.mxu0 0
  %1142 = vmatpush2.bf16.msra.mxu0 %v1040
  %1143 = vmatprep.subr.bf16.mxu0 0
  %1144 = vmatpush2.bf16.msra.mxu0 %v1039
  %1145 = vmatprep.subr.bf16.mxu0 0
  %1146 = vmatpush2.bf16.msra.mxu0 %v1038
  %1147 = vmatprep.subr.bf16.mxu0 0
  %1148 = vmatpush2.bf16.msra.mxu0 %v1037
  %1149 = vmatprep.subr.bf16.mxu0 0
  %1150 = vmatpush2.bf16.msra.mxu0 %v1036
  %1151 = vmatprep.subr.bf16.mxu0 0
  %1152 = vmatpush2.bf16.msra.mxu0 %v1035
  %1153 = vmatprep.subr.bf16.mxu0 0
  %1154 = vmatpush2.bf16.msra.mxu0 %v1034
  %1155 = vmatprep.mubr.bf16.mxu0 %v120
  %1156 = vmatmul.mubr.bf16.gmra.mxu0 %v119
  %v1157 = vpop.f32.mrf.mxu0
  %v1158 = vadd.f32 %v1109, %v1157
  %v1159 = vpop.f32.mrf.mxu0
  %v1160 = vpop.f32.mrf.mxu0
  %v1161 = vadd.f32 %v1112, %v1160
  %v1162 = vpop.f32.mrf.mxu0
  %1163 = vmatprep.mubr.bf16.mxu0 %v124
  %1164 = vmatmul.mubr.bf16.gmra.mxu0 %v123
  %v1165 = vpop.f32.mrf.mxu0
  %v1166 = vadd.f32 %v1117, %v1165
  %v1167 = vpop.f32.mrf.mxu0
  %v1168 = vpop.f32.mrf.mxu0
  %v1169 = vadd.f32 %v1120, %v1168
  %v1170 = vpop.f32.mrf.mxu0
  %1171 = vdwg.mxu0
  %v1172 = vpack.c.bf16 %v1161, %v1158
  %v1173 = vpack.c.bf16 %v1169, %v1166
  %v1176 = vunpack.c.l.b16 %v1172
  %v1177 = vunpack.c.h.b16 %v1172
  %v1178 = vunpack.c.l.b16 %v1173
  %v1179 = vunpack.c.h.b16 %v1173
  %v1180 = vpack.c.b16 %v1176, %v1176
  %v1181 = vpack.c.b16 %v1177, %v1177
  %v1182 = vpack.c.b16 %v1178, %v1178
  %v1183 = vpack.c.b16 %v1179, %v1179
  %1188 = vst.msk [vmem:[%s6] sm:$0xf] %vm439, %v1180
  %1189 = vst.msk [vmem:[%s6 + $0x4] sm:$0xf] %vm439, %v1181
  %1190 = vst.msk [vmem:[%s6 + $0x8] sm:$0xf] %vm439, %v1182
  %1191 = vst.msk [vmem:[%s6 + $0xc] sm:$0xf] %vm439, %v1183
  // Predicated region
  $region18: #{timing_gcn_forward.7} parent=0 // pred_check
    _
  $region19: #{timing_gcn_forward.7} parent=0 // pred_check_branch
    %1193 = sbr.rel (0) target = $region21
  $region20: #{timing_gcn_forward.7} parent=0 // pred_region
    _
  $region21: #{timing_gcn_forward.7} parent=0 // pred_fallthru
    _
  // Predicated region
  $region22: #{timing_gcn_forward.7} parent=0 // pred_check
    _
  $region23: #{timing_gcn_forward.7} parent=0 // pred_check_branch
    %1195 = sbr.rel (0) target = $region25
  $region24: #{timing_gcn_forward.7} parent=0 // pred_region
    _
  $region25: #{timing_gcn_forward.7} parent=0 // pred_fallthru
    _
  // Predicated region
  $region26: #{timing_gcn_forward.7} parent=0 // pred_check
    _
  $region27: #{timing_gcn_forward.7} parent=0 // pred_check_branch
    %1197 = sbr.rel (0) target = $region29
  $region28: #{timing_gcn_forward.7} parent=0 // pred_region
    _
  $region29: #{timing_gcn_forward.7} parent=0 // pred_fallthru
    _
  // Predicated region
  $region30: #{timing_gcn_forward.7} parent=0 // pred_check
    _
  $region31: #{timing_gcn_forward.7} parent=0 // pred_check_branch
    %1199 = sbr.rel (0) target = $region33
  $region32: #{timing_gcn_forward.7} parent=0 // pred_region
    _
  $region33: #{timing_gcn_forward.7} parent=0 // pred_fallthru
    _
  // Predicated region
  $region34: #{timing_gcn_forward.7} parent=0 // pred_check
    _
  $region35: #{timing_gcn_forward.7} parent=0 // pred_check_branch
    %1201 = sbr.rel (0) target = $region37
  $region36: #{timing_gcn_forward.7} parent=0 // pred_region
    _
  $region37: #{timing_gcn_forward.7} parent=0 // pred_fallthru
    _
  // Predicated region
  $region38: #{timing_gcn_forward.7} parent=0 // pred_check
    _
  $region39: #{timing_gcn_forward.7} parent=0 // pred_check_branch
    %1203 = sbr.rel (0) target = $region41
  $region40: #{timing_gcn_forward.7} parent=0 // pred_region
    _
  $region41: #{timing_gcn_forward.7} parent=0 // pred_fallthru
    _

// kernel: timing_gcn_forward.11
$region0: #{timing_gcn_forward.11}
  #allocation0 [shape = 'u32[]', space=smem, size = 0x4, offset = 0x4, fixed_abs, tag = 'smem constant byte address 0x4 - core index']
  #allocation1 [shape = 'u32[144,128]{1,0:T(1,128)}', space=vmem, size = 0x12000, scoped, tag = 'internal scratch']
  %s0 = inlined_call_operand.vmem [shape: bf16[16,32], index: 0, kind: input, shape index: {}]
  %s1 = inlined_call_operand.vmem [shape: bf16[16,16], index: 1, kind: input, shape index: {}]
  %s2 = inlined_call_operand.vmem [shape: bf16[32,64], index: 2, kind: input, shape index: {}]
  %s3 = inlined_call_operand.vmem [shape: bf16[16,64], index: 3, kind: input, shape index: {}]
  %s4 = inlined_call_operand.vmem [shape: f32[1,64], index: 4, kind: input, shape index: {}]
  %s5 = inlined_call_operand.vmem [shape: bf16[64,128], index: 5, kind: input, shape index: {}]
  %s6 = inlined_call_operand.vmem [shape: f32[1,128], index: 6, kind: input, shape index: {}]
  %s7 = inlined_call_operand.vmem [shape: bf16[16,128], index: 7, kind: output, shape index: {}]
  %s8 = sld [smem:[#allocation0]]
  $region38: #{timing_gcn_forward.11} parent=0
    _
  %s10 = ssub.s32 1, %s8
  %s11 = scalar_select 0, %s10, %s8
  // Predicated region
  $region2: #{timing_gcn_forward.11} parent=0 // pred_check
    _
  $region3: #{timing_gcn_forward.11} parent=0 // pred_check_branch
    %13 = sbr.rel (0) target = $region5
  $region4: #{timing_gcn_forward.11} parent=0 // pred_region
    _
  $region5: #{timing_gcn_forward.11} parent=0 // pred_fallthru
    _
  // Predicated region
  $region6: #{timing_gcn_forward.11} parent=0 // pred_check
    _
  $region7: #{timing_gcn_forward.11} parent=0 // pred_check_branch
    %15 = sbr.rel (0) target = $region9
  $region8: #{timing_gcn_forward.11} parent=0 // pred_region
    _
  $region9: #{timing_gcn_forward.11} parent=0 // pred_fallthru
    _
  // Predicated region
  $region10: #{timing_gcn_forward.11} parent=0 // pred_check
    _
  $region11: #{timing_gcn_forward.11} parent=0 // pred_check_branch
    %17 = sbr.rel (0) target = $region13
  $region12: #{timing_gcn_forward.11} parent=0 // pred_region
    _
  $region13: #{timing_gcn_forward.11} parent=0 // pred_fallthru
    _
  // Predicated region
  $region14: #{timing_gcn_forward.11} parent=0 // pred_check
    _
  $region15: #{timing_gcn_forward.11} parent=0 // pred_check_branch
    %19 = sbr.rel (0) target = $region17
  $region16: #{timing_gcn_forward.11} parent=0 // pred_region
    _
  $region17: #{timing_gcn_forward.11} parent=0 // pred_fallthru
    _
  // Predicated region
  $region18: #{timing_gcn_forward.11} parent=0 // pred_check
    _
  $region19: #{timing_gcn_forward.11} parent=0 // pred_check_branch
    %21 = sbr.rel (0) target = $region21
  $region20: #{timing_gcn_forward.11} parent=0 // pred_region
    _
  $region21: #{timing_gcn_forward.11} parent=0 // pred_fallthru
    _
  // Predicated region
  $region22: #{timing_gcn_forward.11} parent=0 // pred_check
    _
  $region23: #{timing_gcn_forward.11} parent=0 // pred_check_branch
    %23 = sbr.rel (0) target = $region25
  $region24: #{timing_gcn_forward.11} parent=0 // pred_region
    _
  $region25: #{timing_gcn_forward.11} parent=0 // pred_fallthru
    _
  // Predicated region
  $region26: #{timing_gcn_forward.11} parent=0 // pred_check
    _
  $region27: #{timing_gcn_forward.11} parent=0 // pred_check_branch
    %25 = sbr.rel (0) target = $region29
  $region28: #{timing_gcn_forward.11} parent=0 // pred_region
    _
  $region29: #{timing_gcn_forward.11} parent=0 // pred_fallthru
    _
  %v27 = vld [vmem:[%s0] sm:$0xf]
  %v28 = vld [vmem:[%s0 + $0x4] sm:$0xf]
  %v29 = vld [vmem:[%s2] sm:$0xf]
  %v30 = vld [vmem:[%s2 + $0x4] sm:$0xf]
  %v31 = vld [vmem:[%s2 + $0x8] sm:$0xf]
  %v32 = vld [vmem:[%s2 + $0xc] sm:$0xf]
  %v33 = vld [vmem:[%s1] sm:$0xf]
  %v34 = vld [vmem:[%s1 + $0x4] sm:$0xf]
  %v35 = vld [vmem:[%s3] sm:$0xf]
  %v36 = vld [vmem:[%s3 + $0x4] sm:$0xf]
  %v39 = vunpack.c.l.b16 %v33
  %v40 = vunpack.c.l.b16 %v34
  %v41 = vpack.c.b16 %v40, %v39
  %v44 = vunpack.c.l.b16 %v35
  %v45 = vunpack.c.l.b16 %v36
  %v46 = vpack.c.b16 %v45, %v44
  %vm48 = vcmask 130048
  %v50 = vsel %vm48, %v41, 0
  %52 = vmatprep.subr.bf16.mxu0 0
  %53 = vmatpush1.bf16.msra.mxu0 0
  %54 = vmatprep.subr.bf16.mxu0 0
  %55 = vmatpush1.bf16.msra.mxu0 0
  %56 = vmatprep.subr.bf16.mxu0 0
  %57 = vmatpush1.bf16.msra.mxu0 0
  %58 = vmatprep.subr.bf16.mxu0 0
  %59 = vmatpush1.bf16.msra.mxu0 0
  %60 = vmatprep.subr.bf16.mxu0 0
  %61 = vmatpush1.bf16.msra.mxu0 0
  %62 = vmatprep.subr.bf16.mxu0 0
  %63 = vmatpush1.bf16.msra.mxu0 0
  %64 = vmatprep.subr.bf16.mxu0 0
  %65 = vmatpush1.bf16.msra.mxu0 0
  %66 = vmatprep.subr.bf16.mxu0 0
  %67 = vmatpush1.bf16.msra.mxu0 %v46
  %68 = vmatprep.subr.bf16.mxu0 0
  %69 = vmatpush2.bf16.msra.mxu0 0
  %70 = vmatprep.subr.bf16.mxu0 0
  %71 = vmatpush2.bf16.msra.mxu0 0
  %72 = vmatprep.subr.bf16.mxu0 0
  %73 = vmatpush2.bf16.msra.mxu0 0
  %74 = vmatprep.subr.bf16.mxu0 0
  %75 = vmatpush2.bf16.msra.mxu0 0
  %76 = vmatprep.subr.bf16.mxu0 0
  %77 = vmatpush2.bf16.msra.mxu0 0
  %78 = vmatprep.subr.bf16.mxu0 0
  %79 = vmatpush2.bf16.msra.mxu0 0
  %80 = vmatprep.subr.bf16.mxu0 0
  %81 = vmatpush2.bf16.msra.mxu0 0
  %82 = vmatprep.subr.bf16.mxu0 0
  %83 = vmatpush2.bf16.msra.mxu0 0
  %84 = vmatprep.mubr.bf16.mxu0 0
  %85 = vmatmul.mubr.bf16.gmra.mxu0 %v50
  %v86 = vpop.f32.mrf.mxu0
  %v87 = vadd.f32 0.0, %v86
  %v88 = vpop.f32.mrf.mxu0
  %v89 = vpop.f32.mrf.mxu0
  %v90 = vadd.f32 0.0, %v89
  %v91 = vpop.f32.mrf.mxu0
  %92 = vdwg.mxu0
  %v95 = vunpack.c.l.b16 %v27
  %v96 = vunpack.c.l.b16 %v28
  %v97 = vpack.c.b16 %v96, %v95
  %v102 = vunpack.c.l.b16 %v29
  %v103 = vunpack.c.l.b16 %v30
  %v104 = vunpack.c.l.b16 %v31
  %v105 = vunpack.c.l.b16 %v32
  %v106 = vpack.c.b16 %v103, %v102
  %v107 = vpack.c.b16 %v105, %v104
  %vm110 = vcmask 261120
  %v112 = vsel %vm110, %v97, 0
  %114 = vmatprep.subr.bf16.mxu0 0
  %115 = vmatpush1.bf16.msra.mxu0 0
  %116 = vmatprep.subr.bf16.mxu0 0
  %117 = vmatpush1.bf16.msra.mxu0 0
  %118 = vmatprep.subr.bf16.mxu0 0
  %119 = vmatpush1.bf16.msra.mxu0 0
  %120 = vmatprep.subr.bf16.mxu0 0
  %121 = vmatpush1.bf16.msra.mxu0 0
  %122 = vmatprep.subr.bf16.mxu0 0
  %123 = vmatpush1.bf16.msra.mxu0 0
  %124 = vmatprep.subr.bf16.mxu0 0
  %125 = vmatpush1.bf16.msra.mxu0 0
  %126 = vmatprep.subr.bf16.mxu0 0
  %127 = vmatpush1.bf16.msra.mxu0 %v107
  %128 = vmatprep.subr.bf16.mxu0 0
  %129 = vmatpush1.bf16.msra.mxu0 %v106
  %130 = vmatprep.subr.bf16.mxu0 0
  %131 = vmatpush2.bf16.msra.mxu0 0
  %132 = vmatprep.subr.bf16.mxu0 0
  %133 = vmatpush2.bf16.msra.mxu0 0
  %134 = vmatprep.subr.bf16.mxu0 0
  %135 = vmatpush2.bf16.msra.mxu0 0
  %136 = vmatprep.subr.bf16.mxu0 0
  %137 = vmatpush2.bf16.msra.mxu0 0
  %138 = vmatprep.subr.bf16.mxu0 0
  %139 = vmatpush2.bf16.msra.mxu0 0
  %140 = vmatprep.subr.bf16.mxu0 0
  %141 = vmatpush2.bf16.msra.mxu0 0
  %142 = vmatprep.subr.bf16.mxu0 0
  %143 = vmatpush2.bf16.msra.mxu0 0
  %144 = vmatprep.subr.bf16.mxu0 0
  %145 = vmatpush2.bf16.msra.mxu0 0
  %146 = vmatprep.mubr.bf16.mxu0 0
  %147 = vmatmul.mubr.bf16.gmra.mxu0 %v112
  %v148 = vpop.f32.mrf.mxu0
  %v149 = vadd.f32 %v87, %v148
  %v150 = vpop.f32.mrf.mxu0
  %v151 = vpop.f32.mrf.mxu0
  %v152 = vadd.f32 %v90, %v151
  %v153 = vpop.f32.mrf.mxu0
  %154 = vdwg.mxu0
  %v155 = vld [vmem:[%s4] sm:$0x1]
  %v157 = vlaneseq
  %v158 = vshrl.u32 %v157, 7
  %v159 = vsub.s32 0, %v158
  %v160 = vrot.slane %v155, %v159
  %v162 = vadd.f32 %v149, %v160
  %v163 = vadd.f32 %v152, %v160
  %vm164 = vcmp.gt.f32.partialorder %v162, 0.0
  %vm165 = vcmp.gt.f32.partialorder %v163, 0.0
  %v166 = vmul.f32 %v162, 0.2
  %v167 = vmul.f32 %v163, 0.2
  %v168 = vsel %vm164, %v162, %v166
  %v169 = vsel %vm165, %v163, %v167
  %v170 = vpack.c.bf16 %v169, %v168
  %v171 = vld [vmem:[%s5] sm:$0xf]
  %v172 = vld [vmem:[%s5 + $0x4] sm:$0xf]
  %v173 = vld [vmem:[%s5 + $0x8] sm:$0xf]
  %v174 = vld [vmem:[%s5 + $0xc] sm:$0xf]
  %v175 = vld [vmem:[%s5 + $0x10] sm:$0xf]
  %v176 = vld [vmem:[%s5 + $0x14] sm:$0xf]
  %v177 = vld [vmem:[%s5 + $0x18] sm:$0xf]
  %v178 = vld [vmem:[%s5 + $0x1c] sm:$0xf]
  %v179 = vld [vmem:[%s6] sm:$0x1]
  %v181 = vlaneseq
  %v182 = vshrl.u32 %v181, 7
  %v183 = vsub.s32 0, %v182
  %v184 = vrot.slane %v179, %v183
  %v194 = vunpack.c.l.b16 %v171
  %v195 = vunpack.c.l.b16 %v172
  %v196 = vunpack.c.l.b16 %v173
  %v197 = vunpack.c.l.b16 %v174
  %v198 = vunpack.c.l.b16 %v175
  %v199 = vunpack.c.l.b16 %v176
  %v200 = vunpack.c.l.b16 %v177
  %v201 = vunpack.c.l.b16 %v178
  %v202 = vpack.c.b16 %v195, %v194
  %v203 = vpack.c.b16 %v197, %v196
  %v204 = vpack.c.b16 %v199, %v198
  %v205 = vpack.c.b16 %v201, %v200
  %vm210 = vcmask 523264
  %v212 = vsel %vm210, %v170, 0
  %214 = vmatprep.subr.bf16.mxu0 0
  %215 = vmatpush1.bf16.msra.mxu0 0
  %216 = vmatprep.subr.bf16.mxu0 0
  %217 = vmatpush1.bf16.msra.mxu0 0
  %218 = vmatprep.subr.bf16.mxu0 0
  %219 = vmatpush1.bf16.msra.mxu0 0
  %220 = vmatprep.subr.bf16.mxu0 0
  %221 = vmatpush1.bf16.msra.mxu0 0
  %222 = vmatprep.subr.bf16.mxu0 0
  %223 = vmatpush1.bf16.msra.mxu0 %v205
  %224 = vmatprep.subr.bf16.mxu0 0
  %225 = vmatpush1.bf16.msra.mxu0 %v204
  %226 = vmatprep.subr.bf16.mxu0 0
  %227 = vmatpush1.bf16.msra.mxu0 %v203
  %228 = vmatprep.subr.bf16.mxu0 0
  %229 = vmatpush1.bf16.msra.mxu0 %v202
  %230 = vmatprep.subr.bf16.mxu0 0
  %231 = vmatpush2.bf16.msra.mxu0 0
  %232 = vmatprep.subr.bf16.mxu0 0
  %233 = vmatpush2.bf16.msra.mxu0 0
  %234 = vmatprep.subr.bf16.mxu0 0
  %235 = vmatpush2.bf16.msra.mxu0 0
  %236 = vmatprep.subr.bf16.mxu0 0
  %237 = vmatpush2.bf16.msra.mxu0 0
  %238 = vmatprep.subr.bf16.mxu0 0
  %239 = vmatpush2.bf16.msra.mxu0 0
  %240 = vmatprep.subr.bf16.mxu0 0
  %241 = vmatpush2.bf16.msra.mxu0 0
  %242 = vmatprep.subr.bf16.mxu0 0
  %243 = vmatpush2.bf16.msra.mxu0 0
  %244 = vmatprep.subr.bf16.mxu0 0
  %245 = vmatpush2.bf16.msra.mxu0 0
  %246 = vmatprep.mubr.bf16.mxu0 0
  %247 = vmatmul.mubr.bf16.gmra.mxu0 %v212
  %v248 = vpop.f32.mrf.mxu0
  %v249 = vadd.f32 %v184, %v248
  %v250 = vpop.f32.mrf.mxu0
  %v251 = vpop.f32.mrf.mxu0
  %v252 = vadd.f32 %v184, %v251
  %v253 = vpop.f32.mrf.mxu0
  %254 = vdwg.mxu0
  %v255 = vmax.f32 %v249, 0.0
  %v256 = vmax.f32 %v252, 0.0
  %v257 = vpack.c.bf16 %v256, %v255
  %v259 = vunpack.c.l.b16 %v257
  %v260 = vunpack.c.h.b16 %v257
  %v261 = vpack.c.b16 %v259, %v259
  %v262 = vpack.c.b16 %v260, %v260
  %265 = vst [vmem:[%s7] sm:$0xf] %v261
  %266 = vst [vmem:[%s7 + $0x4] sm:$0xf] %v262
  // Predicated region
  $region30: #{timing_gcn_forward.11} parent=0 // pred_check
    _
  $region31: #{timing_gcn_forward.11} parent=0 // pred_check_branch
    %268 = sbr.rel (0) target = $region33
  $region32: #{timing_gcn_forward.11} parent=0 // pred_region
    _
  $region33: #{timing_gcn_forward.11} parent=0 // pred_fallthru
    _
  // Predicated region
  $region34: #{timing_gcn_forward.11} parent=0 // pred_check
    _
  $region35: #{timing_gcn_forward.11} parent=0 // pred_check_branch
    %270 = sbr.rel (0) target = $region37
  $region36: #{timing_gcn_forward.11} parent=0 // pred_region
    _
  $region37: #{timing_gcn_forward.11} parent=0 // pred_fallthru
    _

// kernel: timing_gcn_forward.12
$region0: #{timing_gcn_forward.12}
  #allocation0 [shape = 'u32[]', space=smem, size = 0x4, offset = 0x4, fixed_abs, tag = 'smem constant byte address 0x4 - core index']
  #allocation1 [shape = 'u32[144,128]{1,0:T(1,128)}', space=vmem, size = 0x12000, scoped, tag = 'internal scratch']
  %s0 = inlined_call_operand.vmem [shape: bf16[32,32], index: 0, kind: input, shape index: {}]
  %s1 = inlined_call_operand.vmem [shape: bf16[32,64], index: 1, kind: input, shape index: {}]
  %s2 = inlined_call_operand.vmem [shape: bf16[32,64], index: 2, kind: input, shape index: {}]
  %s3 = inlined_call_operand.vmem [shape: f32[1,64], index: 3, kind: input, shape index: {}]
  %s4 = inlined_call_operand.vmem [shape: bf16[64,4], index: 4, kind: input, shape index: {}]
  %s5 = inlined_call_operand.vmem [shape: f32[1,4], index: 5, kind: input, shape index: {}]
  %s6 = inlined_call_operand.vmem [shape: bf16[32,4], index: 6, kind: output, shape index: {}]
  %s7 = sld [smem:[#allocation0]]
  $region34: #{timing_gcn_forward.12} parent=0
    _
  %s9 = ssub.s32 1, %s7
  %s10 = scalar_select 0, %s9, %s7
  // Predicated region
  $region2: #{timing_gcn_forward.12} parent=0 // pred_check
    _
  $region3: #{timing_gcn_forward.12} parent=0 // pred_check_branch
    %12 = sbr.rel (0) target = $region5
  $region4: #{timing_gcn_forward.12} parent=0 // pred_region
    _
  $region5: #{timing_gcn_forward.12} parent=0 // pred_fallthru
    _
  // Predicated region
  $region6: #{timing_gcn_forward.12} parent=0 // pred_check
    _
  $region7: #{timing_gcn_forward.12} parent=0 // pred_check_branch
    %14 = sbr.rel (0) target = $region9
  $region8: #{timing_gcn_forward.12} parent=0 // pred_region
    _
  $region9: #{timing_gcn_forward.12} parent=0 // pred_fallthru
    _
  // Predicated region
  $region10: #{timing_gcn_forward.12} parent=0 // pred_check
    _
  $region11: #{timing_gcn_forward.12} parent=0 // pred_check_branch
    %16 = sbr.rel (0) target = $region13
  $region12: #{timing_gcn_forward.12} parent=0 // pred_region
    _
  $region13: #{timing_gcn_forward.12} parent=0 // pred_fallthru
    _
  // Predicated region
  $region14: #{timing_gcn_forward.12} parent=0 // pred_check
    _
  $region15: #{timing_gcn_forward.12} parent=0 // pred_check_branch
    %18 = sbr.rel (0) target = $region17
  $region16: #{timing_gcn_forward.12} parent=0 // pred_region
    _
  $region17: #{timing_gcn_forward.12} parent=0 // pred_fallthru
    _
  // Predicated region
  $region18: #{timing_gcn_forward.12} parent=0 // pred_check
    _
  $region19: #{timing_gcn_forward.12} parent=0 // pred_check_branch
    %20 = sbr.rel (0) target = $region21
  $region20: #{timing_gcn_forward.12} parent=0 // pred_region
    _
  $region21: #{timing_gcn_forward.12} parent=0 // pred_fallthru
    _
  // Predicated region
  $region22: #{timing_gcn_forward.12} parent=0 // pred_check
    _
  $region23: #{timing_gcn_forward.12} parent=0 // pred_check_branch
    %22 = sbr.rel (0) target = $region25
  $region24: #{timing_gcn_forward.12} parent=0 // pred_region
    _
  $region25: #{timing_gcn_forward.12} parent=0 // pred_fallthru
    _
  %v24 = vld [vmem:[%s0] sm:$0xf]
  %v25 = vld [vmem:[%s0 + $0x4] sm:$0xf]
  %v26 = vld [vmem:[%s0 + $0x8] sm:$0xf]
  %v27 = vld [vmem:[%s0 + $0xc] sm:$0xf]
  %v28 = vld [vmem:[%s2] sm:$0xf]
  %v29 = vld [vmem:[%s2 + $0x4] sm:$0xf]
  %v30 = vld [vmem:[%s2 + $0x8] sm:$0xf]
  %v31 = vld [vmem:[%s2 + $0xc] sm:$0xf]
  %v32 = vld [vmem:[%s1] sm:$0xf]
  %v33 = vld [vmem:[%s1 + $0x4] sm:$0xf]
  %v34 = vld [vmem:[%s1 + $0x8] sm:$0xf]
  %v35 = vld [vmem:[%s1 + $0xc] sm:$0xf]
  %v36 = vunpack.c.l.bf16 %v32
  %v37 = vunpack.c.l.bf16 %v33
  %v38 = vunpack.c.l.bf16 %v34
  %v39 = vunpack.c.l.bf16 %v35
  %v44 = vunpack.c.l.b16 %v24
  %v45 = vunpack.c.l.b16 %v25
  %v46 = vunpack.c.l.b16 %v26
  %v47 = vunpack.c.l.b16 %v27
  %v48 = vpack.c.b16 %v45, %v44
  %v49 = vpack.c.b16 %v47, %v46
  %v54 = vunpack.c.l.b16 %v28
  %v55 = vunpack.c.l.b16 %v29
  %v56 = vunpack.c.l.b16 %v30
  %v57 = vunpack.c.l.b16 %v31
  %v58 = vpack.c.b16 %v55, %v54
  %v59 = vpack.c.b16 %v57, %v56
  %vm62 = vcmask 261120
  %v64 = vsel %vm62, %v48, 0
  %v67 = vsel %vm62, %v49, 0
  %69 = vmatprep.subr.bf16.mxu0 0
  %70 = vmatpush1.bf16.msra.mxu0 0
  %71 = vmatprep.subr.bf16.mxu0 0
  %72 = vmatpush1.bf16.msra.mxu0 0
  %73 = vmatprep.subr.bf16.mxu0 0
  %74 = vmatpush1.bf16.msra.mxu0 0
  %75 = vmatprep.subr.bf16.mxu0 0
  %76 = vmatpush1.bf16.msra.mxu0 0
  %77 = vmatprep.subr.bf16.mxu0 0
  %78 = vmatpush1.bf16.msra.mxu0 0
  %79 = vmatprep.subr.bf16.mxu0 0
  %80 = vmatpush1.bf16.msra.mxu0 0
  %81 = vmatprep.subr.bf16.mxu0 0
  %82 = vmatpush1.bf16.msra.mxu0 %v59
  %83 = vmatprep.subr.bf16.mxu0 0
  %84 = vmatpush1.bf16.msra.mxu0 %v58
  %85 = vmatprep.subr.bf16.mxu0 0
  %86 = vmatpush2.bf16.msra.mxu0 0
  %87 = vmatprep.subr.bf16.mxu0 0
  %88 = vmatpush2.bf16.msra.mxu0 0
  %89 = vmatprep.subr.bf16.mxu0 0
  %90 = vmatpush2.bf16.msra.mxu0 0
  %91 = vmatprep.subr.bf16.mxu0 0
  %92 = vmatpush2.bf16.msra.mxu0 0
  %93 = vmatprep.subr.bf16.mxu0 0
  %94 = vmatpush2.bf16.msra.mxu0 0
  %95 = vmatprep.subr.bf16.mxu0 0
  %96 = vmatpush2.bf16.msra.mxu0 0
  %97 = vmatprep.subr.bf16.mxu0 0
  %98 = vmatpush2.bf16.msra.mxu0 0
  %99 = vmatprep.subr.bf16.mxu0 0
  %100 = vmatpush2.bf16.msra.mxu0 0
  %101 = vmatprep.mubr.bf16.mxu0 0
  %102 = vmatmul.mubr.bf16.gmra.mxu0 %v64
  %v103 = vpop.f32.mrf.mxu0
  %v104 = vadd.f32 %v36, %v103
  %v105 = vpop.f32.mrf.mxu0
  %v106 = vpop.f32.mrf.mxu0
  %v107 = vadd.f32 %v37, %v106
  %v108 = vpop.f32.mrf.mxu0
  %109 = vmatprep.mubr.bf16.mxu0 0
  %110 = vmatmul.mubr.bf16.gmra.mxu0 %v67
  %v111 = vpop.f32.mrf.mxu0
  %v112 = vadd.f32 %v38, %v111
  %v113 = vpop.f32.mrf.mxu0
  %v114 = vpop.f32.mrf.mxu0
  %v115 = vadd.f32 %v39, %v114
  %v116 = vpop.f32.mrf.mxu0
  %117 = vdwg.mxu0
  %v118 = vld [vmem:[%s3] sm:$0x1]
  %v120 = vlaneseq
  %v121 = vshrl.u32 %v120, 7
  %v122 = vsub.s32 0, %v121
  %v123 = vrot.slane %v118, %v122
  %v125 = vadd.f32 %v104, %v123
  %v126 = vadd.f32 %v107, %v123
  %v127 = vadd.f32 %v112, %v123
  %v128 = vadd.f32 %v115, %v123
  %vm129 = vcmp.gt.f32.partialorder %v125, 0.0
  %vm130 = vcmp.gt.f32.partialorder %v126, 0.0
  %vm131 = vcmp.gt.f32.partialorder %v127, 0.0
  %vm132 = vcmp.gt.f32.partialorder %v128, 0.0
  %v133 = vmul.f32 %v125, 0.2
  %v134 = vmul.f32 %v126, 0.2
  %v135 = vmul.f32 %v127, 0.2
  %v136 = vmul.f32 %v128, 0.2
  %v137 = vsel %vm129, %v125, %v133
  %v138 = vsel %vm130, %v126, %v134
  %v139 = vsel %vm131, %v127, %v135
  %v140 = vsel %vm132, %v128, %v136
  %v141 = vpack.c.bf16 %v138, %v137
  %v142 = vpack.c.bf16 %v140, %v139
  %v143 = vld [vmem:[%s4] sm:$0xf]
  %v144 = vld [vmem:[%s4 + $0x4] sm:$0xf]
  %v145 = vld [vmem:[%s4 + $0x8] sm:$0xf]
  %v146 = vld [vmem:[%s4 + $0xc] sm:$0xf]
  %v147 = vld [vmem:[%s4 + $0x10] sm:$0xf]
  %v148 = vld [vmem:[%s4 + $0x14] sm:$0xf]
  %v149 = vld [vmem:[%s4 + $0x18] sm:$0xf]
  %v150 = vld [vmem:[%s4 + $0x1c] sm:$0xf]
  %v151 = vld [vmem:[%s5] sm:$0x1]
  %v153 = vlaneseq
  %v154 = vshrl.u32 %v153, 7
  %v155 = vsub.s32 0, %v154
  %v156 = vrot.slane %v151, %v155
  %v166 = vunpack.c.l.b16 %v143
  %v167 = vunpack.c.l.b16 %v144
  %v168 = vunpack.c.l.b16 %v145
  %v169 = vunpack.c.l.b16 %v146
  %v170 = vunpack.c.l.b16 %v147
  %v171 = vunpack.c.l.b16 %v148
  %v172 = vunpack.c.l.b16 %v149
  %v173 = vunpack.c.l.b16 %v150
  %v174 = vpack.c.b16 %v167, %v166
  %v175 = vpack.c.b16 %v169, %v168
  %v176 = vpack.c.b16 %v171, %v170
  %v177 = vpack.c.b16 %v173, %v172
  %vm182 = vcmask 523264
  %v184 = vsel %vm182, %v141, 0
  %v187 = vsel %vm182, %v142, 0
  %189 = vmatprep.subr.bf16.mxu0 0
  %190 = vmatpush1.bf16.msra.mxu0 0
  %191 = vmatprep.subr.bf16.mxu0 0
  %192 = vmatpush1.bf16.msra.mxu0 0
  %193 = vmatprep.subr.bf16.mxu0 0
  %194 = vmatpush1.bf16.msra.mxu0 0
  %195 = vmatprep.subr.bf16.mxu0 0
  %196 = vmatpush1.bf16.msra.mxu0 0
  %197 = vmatprep.subr.bf16.mxu0 0
  %198 = vmatpush1.bf16.msra.mxu0 %v177
  %199 = vmatprep.subr.bf16.mxu0 0
  %200 = vmatpush1.bf16.msra.mxu0 %v176
  %201 = vmatprep.subr.bf16.mxu0 0
  %202 = vmatpush1.bf16.msra.mxu0 %v175
  %203 = vmatprep.subr.bf16.mxu0 0
  %204 = vmatpush1.bf16.msra.mxu0 %v174
  %205 = vmatprep.subr.bf16.mxu0 0
  %206 = vmatpush2.bf16.msra.mxu0 0
  %207 = vmatprep.subr.bf16.mxu0 0
  %208 = vmatpush2.bf16.msra.mxu0 0
  %209 = vmatprep.subr.bf16.mxu0 0
  %210 = vmatpush2.bf16.msra.mxu0 0
  %211 = vmatprep.subr.bf16.mxu0 0
  %212 = vmatpush2.bf16.msra.mxu0 0
  %213 = vmatprep.subr.bf16.mxu0 0
  %214 = vmatpush2.bf16.msra.mxu0 0
  %215 = vmatprep.subr.bf16.mxu0 0
  %216 = vmatpush2.bf16.msra.mxu0 0
  %217 = vmatprep.subr.bf16.mxu0 0
  %218 = vmatpush2.bf16.msra.mxu0 0
  %219 = vmatprep.subr.bf16.mxu0 0
  %220 = vmatpush2.bf16.msra.mxu0 0
  %221 = vmatprep.mubr.bf16.mxu0 0
  %222 = vmatmul.mubr.bf16.gmra.mxu0 %v184
  %v223 = vpop.f32.mrf.mxu0
  %v224 = vadd.f32 %v156, %v223
  %v225 = vpop.f32.mrf.mxu0
  %v226 = vpop.f32.mrf.mxu0
  %v227 = vadd.f32 %v156, %v226
  %v228 = vpop.f32.mrf.mxu0
  %229 = vmatprep.mubr.bf16.mxu0 0
  %230 = vmatmul.mubr.bf16.gmra.mxu0 %v187
  %v231 = vpop.f32.mrf.mxu0
  %v232 = vadd.f32 %v156, %v231
  %v233 = vpop.f32.mrf.mxu0
  %v234 = vpop.f32.mrf.mxu0
  %v235 = vadd.f32 %v156, %v234
  %v236 = vpop.f32.mrf.mxu0
  %237 = vdwg.mxu0
  %v238 = vpack.c.bf16 %v227, %v224
  %v239 = vpack.c.bf16 %v235, %v232
  %v242 = vunpack.c.l.b16 %v238
  %v243 = vunpack.c.h.b16 %v238
  %v244 = vunpack.c.l.b16 %v239
  %v245 = vunpack.c.h.b16 %v239
  %v246 = vpack.c.b16 %v242, %v242
  %v247 = vpack.c.b16 %v243, %v243
  %v248 = vpack.c.b16 %v244, %v244
  %v249 = vpack.c.b16 %v245, %v245
  %vm254 = vcmask 27648
  %255 = vst.msk [vmem:[%s6] sm:$0xf] %vm254, %v246
  %256 = vst.msk [vmem:[%s6 + $0x4] sm:$0xf] %vm254, %v247
  %257 = vst.msk [vmem:[%s6 + $0x8] sm:$0xf] %vm254, %v248
  %258 = vst.msk [vmem:[%s6 + $0xc] sm:$0xf] %vm254, %v249
  // Predicated region
  $region26: #{timing_gcn_forward.12} parent=0 // pred_check
    _
  $region27: #{timing_gcn_forward.12} parent=0 // pred_check_branch
    %260 = sbr.rel (0) target = $region29
  $region28: #{timing_gcn_forward.12} parent=0 // pred_region
    _
  $region29: #{timing_gcn_forward.12} parent=0 // pred_fallthru
    _
  // Predicated region
  $region30: #{timing_gcn_forward.12} parent=0 // pred_check
    _
  $region31: #{timing_gcn_forward.12} parent=0 // pred_check_branch
    %262 = sbr.rel (0) target = $region33
  $region32: #{timing_gcn_forward.12} parent=0 // pred_region
    _
  $region33: #{timing_gcn_forward.12} parent=0 // pred_fallthru
    _

// kernel: timing_gcn_forward.13
$region0: #{timing_gcn_forward.13}
  #allocation0 [shape = 'u32[]', space=smem, size = 0x4, offset = 0x4, fixed_abs, tag = 'smem constant byte address 0x4 - core index']
  #allocation1 [shape = 'u32[144,128]{1,0:T(1,128)}', space=vmem, size = 0x12000, scoped, tag = 'internal scratch']
  %s0 = inlined_call_operand.vmem [shape: bf16[16,16], index: 0, kind: input, shape index: {}]
  %s1 = inlined_call_operand.vmem [shape: bf16[16,4], index: 1, kind: input, shape index: {}]
  %s2 = inlined_call_operand.vmem [shape: bf16[16,64], index: 2, kind: input, shape index: {}]
  %s3 = inlined_call_operand.vmem [shape: bf16[4,64], index: 3, kind: input, shape index: {}]
  %s4 = inlined_call_operand.vmem [shape: f32[1,64], index: 4, kind: input, shape index: {}]
  %s5 = inlined_call_operand.vmem [shape: bf16[64,128], index: 5, kind: input, shape index: {}]
  %s6 = inlined_call_operand.vmem [shape: f32[1,128], index: 6, kind: input, shape index: {}]
  %s7 = inlined_call_operand.vmem [shape: f32[16,128], index: 7, kind: output, shape index: {}]
  %s8 = sld [smem:[#allocation0]]
  $region38: #{timing_gcn_forward.13} parent=0
    _
  %s10 = ssub.s32 1, %s8
  %s11 = scalar_select 0, %s10, %s8
  // Predicated region
  $region2: #{timing_gcn_forward.13} parent=0 // pred_check
    _
  $region3: #{timing_gcn_forward.13} parent=0 // pred_check_branch
    %13 = sbr.rel (0) target = $region5
  $region4: #{timing_gcn_forward.13} parent=0 // pred_region
    _
  $region5: #{timing_gcn_forward.13} parent=0 // pred_fallthru
    _
  // Predicated region
  $region6: #{timing_gcn_forward.13} parent=0 // pred_check
    _
  $region7: #{timing_gcn_forward.13} parent=0 // pred_check_branch
    %15 = sbr.rel (0) target = $region9
  $region8: #{timing_gcn_forward.13} parent=0 // pred_region
    _
  $region9: #{timing_gcn_forward.13} parent=0 // pred_fallthru
    _
  // Predicated region
  $region10: #{timing_gcn_forward.13} parent=0 // pred_check
    _
  $region11: #{timing_gcn_forward.13} parent=0 // pred_check_branch
    %17 = sbr.rel (0) target = $region13
  $region12: #{timing_gcn_forward.13} parent=0 // pred_region
    _
  $region13: #{timing_gcn_forward.13} parent=0 // pred_fallthru
    _
  // Predicated region
  $region14: #{timing_gcn_forward.13} parent=0 // pred_check
    _
  $region15: #{timing_gcn_forward.13} parent=0 // pred_check_branch
    %19 = sbr.rel (0) target = $region17
  $region16: #{timing_gcn_forward.13} parent=0 // pred_region
    _
  $region17: #{timing_gcn_forward.13} parent=0 // pred_fallthru
    _
  // Predicated region
  $region18: #{timing_gcn_forward.13} parent=0 // pred_check
    _
  $region19: #{timing_gcn_forward.13} parent=0 // pred_check_branch
    %21 = sbr.rel (0) target = $region21
  $region20: #{timing_gcn_forward.13} parent=0 // pred_region
    _
  $region21: #{timing_gcn_forward.13} parent=0 // pred_fallthru
    _
  // Predicated region
  $region22: #{timing_gcn_forward.13} parent=0 // pred_check
    _
  $region23: #{timing_gcn_forward.13} parent=0 // pred_check_branch
    %23 = sbr.rel (0) target = $region25
  $region24: #{timing_gcn_forward.13} parent=0 // pred_region
    _
  $region25: #{timing_gcn_forward.13} parent=0 // pred_fallthru
    _
  // Predicated region
  $region26: #{timing_gcn_forward.13} parent=0 // pred_check
    _
  $region27: #{timing_gcn_forward.13} parent=0 // pred_check_branch
    %25 = sbr.rel (0) target = $region29
  $region28: #{timing_gcn_forward.13} parent=0 // pred_region
    _
  $region29: #{timing_gcn_forward.13} parent=0 // pred_fallthru
    _
  %v27 = vld [vmem:[%s0] sm:$0xf]
  %v28 = vld [vmem:[%s0 + $0x4] sm:$0xf]
  %v29 = vld [vmem:[%s2] sm:$0xf]
  %v30 = vld [vmem:[%s2 + $0x4] sm:$0xf]
  %v31 = vld [vmem:[%s1] sm:$0xf]
  %v32 = vld [vmem:[%s1 + $0x4] sm:$0xf]
  %v33 = vld [vmem:[%s3] sm:$0x3]
  %v36 = vunpack.c.l.b16 %v31
  %v37 = vunpack.c.l.b16 %v32
  %v38 = vpack.c.b16 %v37, %v36
  %vm39 = vcmask 31744
  %v41 = vsel %vm39, %v38, 0
  %vm43 = vcmask 1041408
  %v45 = vsel %vm43, %v33, 0
  %47 = vmatprep.subr.bf16.mxu0 0
  %48 = vmatpush1.bf16.msra.mxu0 0
  %49 = vmatprep.subr.bf16.mxu0 0
  %50 = vmatpush1.bf16.msra.mxu0 0
  %51 = vmatprep.subr.bf16.mxu0 0
  %52 = vmatpush1.bf16.msra.mxu0 0
  %53 = vmatprep.subr.bf16.mxu0 0
  %54 = vmatpush1.bf16.msra.mxu0 0
  %55 = vmatprep.subr.bf16.mxu0 0
  %56 = vmatpush1.bf16.msra.mxu0 0
  %57 = vmatprep.subr.bf16.mxu0 0
  %58 = vmatpush1.bf16.msra.mxu0 0
  %59 = vmatprep.subr.bf16.mxu0 0
  %60 = vmatpush1.bf16.msra.mxu0 0
  %61 = vmatprep.subr.bf16.mxu0 0
  %62 = vmatpush1.bf16.msra.mxu0 %v45
  %63 = vmatprep.subr.bf16.mxu0 0
  %64 = vmatpush2.bf16.msra.mxu0 0
  %65 = vmatprep.subr.bf16.mxu0 0
  %66 = vmatpush2.bf16.msra.mxu0 0
  %67 = vmatprep.subr.bf16.mxu0 0
  %68 = vmatpush2.bf16.msra.mxu0 0
  %69 = vmatprep.subr.bf16.mxu0 0
  %70 = vmatpush2.bf16.msra.mxu0 0
  %71 = vmatprep.subr.bf16.mxu0 0
  %72 = vmatpush2.bf16.msra.mxu0 0
  %73 = vmatprep.subr.bf16.mxu0 0
  %74 = vmatpush2.bf16.msra.mxu0 0
  %75 = vmatprep.subr.bf16.mxu0 0
  %76 = vmatpush2.bf16.msra.mxu0 0
  %77 = vmatprep.subr.bf16.mxu0 0
  %78 = vmatpush2.bf16.msra.mxu0 0
  %79 = vmatprep.mubr.bf16.mxu0 0
  %80 = vmatmul.mubr.bf16.gmra.mxu0 %v41
  %v81 = vpop.f32.mrf.mxu0
  %v82 = vadd.f32 0.0, %v81
  %v83 = vpop.f32.mrf.mxu0
  %v84 = vpop.f32.mrf.mxu0
  %v85 = vadd.f32 0.0, %v84
  %v86 = vpop.f32.mrf.mxu0
  %87 = vdwg.mxu0
  %v90 = vunpack.c.l.b16 %v27
  %v91 = vunpack.c.l.b16 %v28
  %v92 = vpack.c.b16 %v91, %v90
  %v95 = vunpack.c.l.b16 %v29
  %v96 = vunpack.c.l.b16 %v30
  %v97 = vpack.c.b16 %v96, %v95
  %vm99 = vcmask 130048
  %v101 = vsel %vm99, %v92, 0
  %103 = vmatprep.subr.bf16.mxu0 0
  %104 = vmatpush1.bf16.msra.mxu0 0
  %105 = vmatprep.subr.bf16.mxu0 0
  %106 = vmatpush1.bf16.msra.mxu0 0
  %107 = vmatprep.subr.bf16.mxu0 0
  %108 = vmatpush1.bf16.msra.mxu0 0
  %109 = vmatprep.subr.bf16.mxu0 0
  %110 = vmatpush1.bf16.msra.mxu0 0
  %111 = vmatprep.subr.bf16.mxu0 0
  %112 = vmatpush1.bf16.msra.mxu0 0
  %113 = vmatprep.subr.bf16.mxu0 0
  %114 = vmatpush1.bf16.msra.mxu0 0
  %115 = vmatprep.subr.bf16.mxu0 0
  %116 = vmatpush1.bf16.msra.mxu0 0
  %117 = vmatprep.subr.bf16.mxu0 0
  %118 = vmatpush1.bf16.msra.mxu0 %v97
  %119 = vmatprep.subr.bf16.mxu0 0
  %120 = vmatpush2.bf16.msra.mxu0 0
  %121 = vmatprep.subr.bf16.mxu0 0
  %122 = vmatpush2.bf16.msra.mxu0 0
  %123 = vmatprep.subr.bf16.mxu0 0
  %124 = vmatpush2.bf16.msra.mxu0 0
  %125 = vmatprep.subr.bf16.mxu0 0
  %126 = vmatpush2.bf16.msra.mxu0 0
  %127 = vmatprep.subr.bf16.mxu0 0
  %128 = vmatpush2.bf16.msra.mxu0 0
  %129 = vmatprep.subr.bf16.mxu0 0
  %130 = vmatpush2.bf16.msra.mxu0 0
  %131 = vmatprep.subr.bf16.mxu0 0
  %132 = vmatpush2.bf16.msra.mxu0 0
  %133 = vmatprep.subr.bf16.mxu0 0
  %134 = vmatpush2.bf16.msra.mxu0 0
  %135 = vmatprep.mubr.bf16.mxu0 0
  %136 = vmatmul.mubr.bf16.gmra.mxu0 %v101
  %v137 = vpop.f32.mrf.mxu0
  %v138 = vadd.f32 %v82, %v137
  %v139 = vpop.f32.mrf.mxu0
  %v140 = vpop.f32.mrf.mxu0
  %v141 = vadd.f32 %v85, %v140
  %v142 = vpop.f32.mrf.mxu0
  %143 = vdwg.mxu0
  %v144 = vld [vmem:[%s4] sm:$0x1]
  %v146 = vlaneseq
  %v147 = vshrl.u32 %v146, 7
  %v148 = vsub.s32 0, %v147
  %v149 = vrot.slane %v144, %v148
  %v151 = vadd.f32 %v138, %v149
  %v152 = vadd.f32 %v141, %v149
  %vm153 = vcmp.gt.f32.partialorder %v151, 0.0
  %vm154 = vcmp.gt.f32.partialorder %v152, 0.0
  %v155 = vmul.f32 %v151, 0.2
  %v156 = vmul.f32 %v152, 0.2
  %v157 = vsel %vm153, %v151, %v155
  %v158 = vsel %vm154, %v152, %v156
  %v159 = vpack.c.bf16 %v158, %v157
  %v160 = vld [vmem:[%s5] sm:$0xf]
  %v161 = vld [vmem:[%s5 + $0x4] sm:$0xf]
  %v162 = vld [vmem:[%s5 + $0x8] sm:$0xf]
  %v163 = vld [vmem:[%s5 + $0xc] sm:$0xf]
  %v164 = vld [vmem:[%s5 + $0x10] sm:$0xf]
  %v165 = vld [vmem:[%s5 + $0x14] sm:$0xf]
  %v166 = vld [vmem:[%s5 + $0x18] sm:$0xf]
  %v167 = vld [vmem:[%s5 + $0x1c] sm:$0xf]
  %v168 = vld [vmem:[%s6] sm:$0x1]
  %v170 = vlaneseq
  %v171 = vshrl.u32 %v170, 7
  %v172 = vsub.s32 0, %v171
  %v173 = vrot.slane %v168, %v172
  %v183 = vunpack.c.l.b16 %v160
  %v184 = vunpack.c.l.b16 %v161
  %v185 = vunpack.c.l.b16 %v162
  %v186 = vunpack.c.l.b16 %v163
  %v187 = vunpack.c.l.b16 %v164
  %v188 = vunpack.c.l.b16 %v165
  %v189 = vunpack.c.l.b16 %v166
  %v190 = vunpack.c.l.b16 %v167
  %v191 = vpack.c.b16 %v184, %v183
  %v192 = vpack.c.b16 %v186, %v185
  %v193 = vpack.c.b16 %v188, %v187
  %v194 = vpack.c.b16 %v190, %v189
  %vm199 = vcmask 523264
  %v201 = vsel %vm199, %v159, 0
  %203 = vmatprep.subr.bf16.mxu0 0
  %204 = vmatpush1.bf16.msra.mxu0 0
  %205 = vmatprep.subr.bf16.mxu0 0
  %206 = vmatpush1.bf16.msra.mxu0 0
  %207 = vmatprep.subr.bf16.mxu0 0
  %208 = vmatpush1.bf16.msra.mxu0 0
  %209 = vmatprep.subr.bf16.mxu0 0
  %210 = vmatpush1.bf16.msra.mxu0 0
  %211 = vmatprep.subr.bf16.mxu0 0
  %212 = vmatpush1.bf16.msra.mxu0 %v194
  %213 = vmatprep.subr.bf16.mxu0 0
  %214 = vmatpush1.bf16.msra.mxu0 %v193
  %215 = vmatprep.subr.bf16.mxu0 0
  %216 = vmatpush1.bf16.msra.mxu0 %v192
  %217 = vmatprep.subr.bf16.mxu0 0
  %218 = vmatpush1.bf16.msra.mxu0 %v191
  %219 = vmatprep.subr.bf16.mxu0 0
  %220 = vmatpush2.bf16.msra.mxu0 0
  %221 = vmatprep.subr.bf16.mxu0 0
  %222 = vmatpush2.bf16.msra.mxu0 0
  %223 = vmatprep.subr.bf16.mxu0 0
  %224 = vmatpush2.bf16.msra.mxu0 0
  %225 = vmatprep.subr.bf16.mxu0 0
  %226 = vmatpush2.bf16.msra.mxu0 0
  %227 = vmatprep.subr.bf16.mxu0 0
  %228 = vmatpush2.bf16.msra.mxu0 0
  %229 = vmatprep.subr.bf16.mxu0 0
  %230 = vmatpush2.bf16.msra.mxu0 0
  %231 = vmatprep.subr.bf16.mxu0 0
  %232 = vmatpush2.bf16.msra.mxu0 0
  %233 = vmatprep.subr.bf16.mxu0 0
  %234 = vmatpush2.bf16.msra.mxu0 0
  %235 = vmatprep.mubr.bf16.mxu0 0
  %236 = vmatmul.mubr.bf16.gmra.mxu0 %v201
  %v237 = vpop.f32.mrf.mxu0
  %v238 = vadd.f32 %v173, %v237
  %v239 = vpop.f32.mrf.mxu0
  %v240 = vpop.f32.mrf.mxu0
  %v241 = vadd.f32 %v173, %v240
  %v242 = vpop.f32.mrf.mxu0
  %243 = vdwg.mxu0
  %244 = vst [vmem:[%s7] sm:$0xff] %v238
  %245 = vst [vmem:[%s7 + $0x8] sm:$0xff] %v241
  // Predicated region
  $region30: #{timing_gcn_forward.13} parent=0 // pred_check
    _
  $region31: #{timing_gcn_forward.13} parent=0 // pred_check_branch
    %247 = sbr.rel (0) target = $region33
  $region32: #{timing_gcn_forward.13} parent=0 // pred_region
    _
  $region33: #{timing_gcn_forward.13} parent=0 // pred_fallthru
    _
  // Predicated region
  $region34: #{timing_gcn_forward.13} parent=0 // pred_check
    _
  $region35: #{timing_gcn_forward.13} parent=0 // pred_check_branch
    %249 = sbr.rel (0) target = $region37
  $region36: #{timing_gcn_forward.13} parent=0 // pred_region
    _
  $region37: #{timing_gcn_forward.13} parent=0 // pred_fallthru
    _

</llo_original>
